<compile_context>
chip_gen: v6e
topology: v6e:2x2x1
jax: 0.10.0
libtpu: 0.0.40
codegen_flags: <defaults>
</compile_context>

<pallas_src>
import math

import jax
import jax.numpy as jnp
from jax.experimental import pallas as pl
from jax.experimental.pallas import tpu as pltpu

# ---- problem sizes (small, consistent with the module) ----
N, H, W, C = 2, 16, 16, 128      # batch, height, width, dim
K = 3                            # depthwise kernel size
PAD = 1                          # "same" padding for K=3
EPS = 1e-5                       # BatchNorm2d default eps

_SQRT_2_OVER_PI = math.sqrt(2.0 / math.pi)

# Row layout of the coalesced (16, C) parameter array (padded to 2 aligned (8,128) tiles).
ROW_DWB, ROW_G1, ROW_B1, ROW_PWB, ROW_G2, ROW_B2 = 9, 10, 11, 12, 13, 14


# ----------------- in-kernel math helpers (pure jnp, trace into the kernel) -----------------
def _gelu_tanh(x):
    # tanh-approximate GELU; tanh runs on the EUP so the VALU slot stays free.
    return 0.5 * x * (1.0 + jnp.tanh(_SQRT_2_OVER_PI * (x + 0.044715 * x * x * x)))


def _bn_train(v, gamma, beta):
    """BatchNorm2d, training mode: biased variance over all rows, single-pass statistics."""
    flat = v.reshape(-1, v.shape[-1])              # (M, C); layout-preserving reshape
    inv_m = 1.0 / flat.shape[0]
    s = jnp.sum(flat, axis=0)                      # (C,)
    ss = jnp.sum(flat * flat, axis=0)              # (C,)
    mean = s * inv_m
    # E[x^2] - mean^2 can go slightly negative from f32 cancellation; clamp before rsqrt.
    var = jnp.maximum(ss * inv_m - mean * mean, 0.0)
    scale = jax.lax.rsqrt(var + EPS) * gamma       # fold affine into one scale/shift
    shift = beta - mean * scale
    return (flat * scale + shift).reshape(v.shape)


# --------------------------------- Pallas kernel ---------------------------------
def wsconvmixer_kernel(xc_ref, par_ref, pww_ref, o_ref):
    # xc: H-padded input, (N, H+2, W, C).  W (size 16) rides the sublane axis, C the lane axis.
    xc = xc_ref[...]

    # Derive the w-1 / w+1 neighbours in-kernel: sublane rotation on the XLU + edge mask on the
    # VPU.  No extra HBM traffic, no in-kernel concatenates, no sublane-misaligned slices.
    w_idx = jax.lax.broadcasted_iota(jnp.int32, xc.shape, 2)
    xl = jnp.where(w_idx == 0, 0.0, pltpu.roll(xc, shift=1, axis=2))        # value at w-1
    xr = jnp.where(w_idx == W - 1, 0.0, pltpu.roll(xc, shift=W - 1, axis=2))  # value at w+1

    # Hoisted per-channel taps / biases (one coalesced (16, C) load, rows read once).
    taps = [par_ref[k, :] for k in range(K * K)]   # each (C,)
    dwb = par_ref[ROW_DWB, :]
    g1, b1 = par_ref[ROW_G1, :], par_ref[ROW_B1, :]
    pwb = par_ref[ROW_PWB, :]
    g2, b2 = par_ref[ROW_G2, :], par_ref[ROW_B2, :]

    # ---- depthwise 3x3 conv (groups=C), "same" padding ----
    # H shifts are static slices on a major (non-minor) dim => plain offset vector loads.
    def tap_rows(kh):
        sl = slice(kh, kh + H)
        return (xl[:, sl] * taps[kh * K + 0]
                + xc[:, sl] * taps[kh * K + 1]
                + xr[:, sl] * taps[kh * K + 2])

    acc = tap_rows(0) + tap_rows(1) + tap_rows(2)

    a = _bn_train(_gelu_tanh(acc + dwb), g1, b1)
    x = xc[:, PAD:PAD + H]                         # the original (un-padded) input
    x1 = x + a                                     # first residual

    # ---- pointwise 1x1 conv == channel matmul on the MXU (bf16 operands, f32 accumulate) ----
    # (512,128)x(128,128): ~17 MFLOP, <1% of runtime — not worth tuning; DMA bytes dominate.
    x2 = x1.reshape(N * H * W, C).astype(jnp.bfloat16)
    y2 = jnp.dot(x2, pww_ref[...], preferred_element_type=jnp.float32) + pwb
    y2 = _bn_train(_gelu_tanh(y2), g2, b2)

    o_ref[...] = x1 + y2.reshape(N, H, W, C)       # second residual


@jax.jit
def wsconvmixer_block(x, dw_w, dw_b, g1, b1, pw_w_t, pw_b, g2, b2):
    # Wrapper-side layout plumbing only:
    #  * pad H by 1 (the W halo is produced in-kernel via roll+mask),
    #  * coalesce the seven tiny per-channel operands into one (16, C) array (one DMA),
    #  * cast the pointwise weight to bf16 at the call boundary (half the weight DMA).
    xp = jnp.pad(x, ((0, 0), (PAD, PAD), (0, 0), (0, 0)))        # (N, H+2, W, C)
    params = jnp.concatenate(
        [dw_w, dw_b, g1, b1, pw_b, g2, b2, jnp.zeros((1, C), jnp.float32)], axis=0)  # (16, C)
    pw_bf16 = pw_w_t.astype(jnp.bfloat16)

    vmem = pl.BlockSpec(memory_space=pltpu.MemorySpace.VMEM)
    # Single grid point: total footprint ~0.6 MiB of operands + ~1 MiB of live intermediates,
    # comfortably inside scoped VMEM on v5e/v6e (16/32 MiB default, 128 MiB physical) and on
    # v7x (32 MiB default scoped, 64 MiB physical).  If N*H*W grows: add a leading "parallel"
    # grid axis over N or H tiles (uses the second v7x TensorCore), convert both BatchNorms to
    # two-phase statistics (per-tile sum/sumsq into scratch, finalize under pl.when on the last
    # step — training-mode BN couples all tiles), budget against v7x's smaller VMEM with
    # 2x double-buffering per BlockSpec input, and raise the limit explicitly via
    # pltpu.CompilerParams(vmem_limit_bytes=...).
    return pl.pallas_call(
        wsconvmixer_kernel,
        out_shape=jax.ShapeDtypeStruct((N, H, W, C), jnp.float32),
        in_specs=[vmem, vmem, vmem],
        out_specs=vmem,
    )(xp, params, pw_bf16)


# ------------------------------- pure-JAX reference -------------------------------
def reference(x, dw_w, dw_b, g1, b1, pw_w_t, pw_b, g2, b2):
    def gelu(v):
        return 0.5 * v * (1.0 + jax.lax.erf(v / jnp.sqrt(2.0)))

    def bn(v, g, b):
        flat = v.reshape(-1, v.shape[-1])
        m = jnp.mean(flat, axis=0, keepdims=True)
        var = jnp.mean((flat - m) ** 2, axis=0, keepdims=True)
        return ((flat - m) * jax.lax.rsqrt(var + EPS) * g + b).reshape(v.shape)

    xp = jnp.pad(x, ((0, 0), (PAD, PAD), (PAD, PAD), (0, 0)))
    acc = jnp.zeros_like(x)
    for kh in range(K):
        for kw in range(K):
            acc = acc + xp[:, kh:kh + H, kw:kw + W, :] * dw_w[kh * K + kw]
    x1 = x + bn(gelu(acc + dw_b[0]), g1[0], b1[0])
    y2 = jnp.einsum("nhwc,cd->nhwd", x1, pw_w_t,
                    precision=jax.lax.Precision.HIGHEST) + pw_b[0]
    return x1 + bn(gelu(y2), g2[0], b2[0])


if __name__ == "__main__":
    key = jax.random.PRNGKey(0)
    ks = jax.random.split(key, 9)

    x = jax.random.normal(ks[0], (N, H, W, C), jnp.float32)
    # depthwise conv params: weight (dim,1,K,K) -> (K*K, C), bias (C,) -> (1, C)
    dw_w = jax.random.normal(ks[1], (K * K, C), jnp.float32) * (1.0 / math.sqrt(K * K))
    dw_b = 0.1 * jax.random.normal(ks[2], (1, C), jnp.float32)
    # BatchNorm1 affine params
    g1 = 1.0 + 0.1 * jax.random.normal(ks[3], (1, C), jnp.float32)
    b1 = 0.1 * jax.random.normal(ks[4], (1, C), jnp.float32)
    # pointwise conv params: weight (dim,dim,1,1) -> transposed (C_in, C_out), bias (1, C)
    pw_w_t = jax.random.normal(ks[5], (C, C), jnp.float32) * (1.0 / math.sqrt(C))
    pw_b = 0.1 * jax.random.normal(ks[6], (1, C), jnp.float32)
    # BatchNorm2 affine params
    g2 = 1.0 + 0.1 * jax.random.normal(ks[7], (1, C), jnp.float32)
    b2 = 0.1 * jax.random.normal(ks[8], (1, C), jnp.float32)

    out = wsconvmixer_block(x, dw_w, dw_b, g1, b1, pw_w_t, pw_b, g2, b2)
    out = jax.block_until_ready(out)

    ref = jax.block_until_ready(reference(x, dw_w, dw_b, g1, b1, pw_w_t, pw_b, g2, b2))
    assert out.shape == (N, H, W, C) and out.dtype == jnp.float32
    assert jnp.allclose(out, ref, atol=3e-2, rtol=3e-2)

    print("KERNEL_OK")
</pallas_src>

<mosaic_0001>
module attributes {stable_mosaic.version = 11 : i64} {
  func.func @wsconvmixer_kernel(%arg0: memref<2x18x16x128xf32, #tpu.memory_space<vmem>>, %arg1: memref<16x128xf32, #tpu.memory_space<vmem>>, %arg2: memref<128x128xbf16, #tpu.memory_space<vmem>>, %arg3: memref<2x16x16x128xf32, #tpu.memory_space<vmem>>) attributes {dimension_semantics = [], scalar_prefetch = 0 : i64, scratch_operands = 0 : i64, tpu.core_type = #tpu.core_type<tc>} {
    %c0 = arith.constant 0 : index
    %c0_0 = arith.constant 0 : index
    %c0_1 = arith.constant 0 : index
    %c0_2 = arith.constant 0 : index
    %0 = vector.load %arg0[%c0, %c0_0, %c0_1, %c0_2] : memref<2x18x16x128xf32, #tpu.memory_space<vmem>>, vector<2x18x16x128xf32>
    %1 = tpu.iota {dimensions = array<i32: 2>} : vector<2x18x16x128xi32>
    %c0_i32 = arith.constant 0 : i32
    %2 = vector.broadcast %c0_i32 : i32 to vector<2x18x16x128xi32>
    %3 = arith.cmpi eq, %1, %2 : vector<2x18x16x128xi32>
    %c1_i32 = arith.constant 1 : i32
    %4 = tpu.dynamic_rotate %0 by %c1_i32 dim 2 : vector<2x18x16x128xf32>, i32 -> vector<2x18x16x128xf32>
    %cst = arith.constant 0.000000e+00 : f32
    %5 = vector.broadcast %cst : f32 to vector<2x18x16x128xf32>
    %6 = arith.select %3, %5, %4 : vector<2x18x16x128xi1>, vector<2x18x16x128xf32>
    %c15_i32 = arith.constant 15 : i32
    %7 = vector.broadcast %c15_i32 : i32 to vector<2x18x16x128xi32>
    %8 = arith.cmpi eq, %1, %7 : vector<2x18x16x128xi32>
    %c15_i32_3 = arith.constant 15 : i32
    %9 = tpu.dynamic_rotate %0 by %c15_i32_3 dim 2 : vector<2x18x16x128xf32>, i32 -> vector<2x18x16x128xf32>
    %cst_4 = arith.constant 0.000000e+00 : f32
    %10 = vector.broadcast %cst_4 : f32 to vector<2x18x16x128xf32>
    %11 = arith.select %8, %10, %9 : vector<2x18x16x128xi1>, vector<2x18x16x128xf32>
    %c0_5 = arith.constant 0 : index
    %c0_6 = arith.constant 0 : index
    %12 = vector.load %arg1[%c0_5, %c0_6] : memref<16x128xf32, #tpu.memory_space<vmem>>, vector<1x128xf32>
    %13 = vector.shape_cast %12 : vector<1x128xf32> to vector<128xf32>
    %c1 = arith.constant 1 : index
    %c0_7 = arith.constant 0 : index
    %14 = vector.load %arg1[%c1, %c0_7] : memref<16x128xf32, #tpu.memory_space<vmem>>, vector<1x128xf32>
    %15 = vector.shape_cast %14 : vector<1x128xf32> to vector<128xf32>
    %c2 = arith.constant 2 : index
    %c0_8 = arith.constant 0 : index
    %16 = vector.load %arg1[%c2, %c0_8] : memref<16x128xf32, #tpu.memory_space<vmem>>, vector<1x128xf32>
    %17 = vector.shape_cast %16 : vector<1x128xf32> to vector<128xf32>
    %c3 = arith.constant 3 : index
    %c0_9 = arith.constant 0 : index
    %18 = vector.load %arg1[%c3, %c0_9] : memref<16x128xf32, #tpu.memory_space<vmem>>, vector<1x128xf32>
    %19 = vector.shape_cast %18 : vector<1x128xf32> to vector<128xf32>
    %c4 = arith.constant 4 : index
    %c0_10 = arith.constant 0 : index
    %20 = vector.load %arg1[%c4, %c0_10] : memref<16x128xf32, #tpu.memory_space<vmem>>, vector<1x128xf32>
    %21 = vector.shape_cast %20 : vector<1x128xf32> to vector<128xf32>
    %c5 = arith.constant 5 : index
    %c0_11 = arith.constant 0 : index
    %22 = vector.load %arg1[%c5, %c0_11] : memref<16x128xf32, #tpu.memory_space<vmem>>, vector<1x128xf32>
    %23 = vector.shape_cast %22 : vector<1x128xf32> to vector<128xf32>
    %c6 = arith.constant 6 : index
    %c0_12 = arith.constant 0 : index
    %24 = vector.load %arg1[%c6, %c0_12] : memref<16x128xf32, #tpu.memory_space<vmem>>, vector<1x128xf32>
    %25 = vector.shape_cast %24 : vector<1x128xf32> to vector<128xf32>
    %c7 = arith.constant 7 : index
    %c0_13 = arith.constant 0 : index
    %26 = vector.load %arg1[%c7, %c0_13] : memref<16x128xf32, #tpu.memory_space<vmem>>, vector<1x128xf32>
    %27 = vector.shape_cast %26 : vector<1x128xf32> to vector<128xf32>
    %c8 = arith.constant 8 : index
    %c0_14 = arith.constant 0 : index
    %28 = vector.load %arg1[%c8, %c0_14] : memref<16x128xf32, #tpu.memory_space<vmem>>, vector<1x128xf32>
    %29 = vector.shape_cast %28 : vector<1x128xf32> to vector<128xf32>
    %c9 = arith.constant 9 : index
    %c0_15 = arith.constant 0 : index
    %30 = vector.load %arg1[%c9, %c0_15] : memref<16x128xf32, #tpu.memory_space<vmem>>, vector<1x128xf32>
    %31 = vector.shape_cast %30 : vector<1x128xf32> to vector<128xf32>
    %c10 = arith.constant 10 : index
    %c0_16 = arith.constant 0 : index
    %32 = vector.load %arg1[%c10, %c0_16] : memref<16x128xf32, #tpu.memory_space<vmem>>, vector<1x128xf32>
    %33 = vector.shape_cast %32 : vector<1x128xf32> to vector<128xf32>
    %c11 = arith.constant 11 : index
    %c0_17 = arith.constant 0 : index
    %34 = vector.load %arg1[%c11, %c0_17] : memref<16x128xf32, #tpu.memory_space<vmem>>, vector<1x128xf32>
    %35 = vector.shape_cast %34 : vector<1x128xf32> to vector<128xf32>
    %c12 = arith.constant 12 : index
    %c0_18 = arith.constant 0 : index
    %36 = vector.load %arg1[%c12, %c0_18] : memref<16x128xf32, #tpu.memory_space<vmem>>, vector<1x128xf32>
    %37 = vector.shape_cast %36 : vector<1x128xf32> to vector<128xf32>
    %c13 = arith.constant 13 : index
    %c0_19 = arith.constant 0 : index
    %38 = vector.load %arg1[%c13, %c0_19] : memref<16x128xf32, #tpu.memory_space<vmem>>, vector<1x128xf32>
    %39 = vector.shape_cast %38 : vector<1x128xf32> to vector<128xf32>
    %c14 = arith.constant 14 : index
    %c0_20 = arith.constant 0 : index
    %40 = vector.load %arg1[%c14, %c0_20] : memref<16x128xf32, #tpu.memory_space<vmem>>, vector<1x128xf32>
    %41 = vector.shape_cast %40 : vector<1x128xf32> to vector<128xf32>
    %42 = vector.extract_strided_slice %6 {offsets = [0, 0, 0, 0], sizes = [2, 16, 16, 128], strides = [1, 1, 1, 1]} : vector<2x18x16x128xf32> to vector<2x16x16x128xf32>
    %43 = vector.shape_cast %13 : vector<128xf32> to vector<1x1x1x128xf32>
    %44 = vector.broadcast %43 : vector<1x1x1x128xf32> to vector<2x16x16x128xf32>
    %45 = arith.mulf %42, %44 : vector<2x16x16x128xf32>
    %46 = vector.extract_strided_slice %0 {offsets = [0, 0, 0, 0], sizes = [2, 16, 16, 128], strides = [1, 1, 1, 1]} : vector<2x18x16x128xf32> to vector<2x16x16x128xf32>
    %47 = vector.shape_cast %15 : vector<128xf32> to vector<1x1x1x128xf32>
    %48 = vector.broadcast %47 : vector<1x1x1x128xf32> to vector<2x16x16x128xf32>
    %49 = arith.mulf %46, %48 : vector<2x16x16x128xf32>
    %50 = arith.addf %45, %49 : vector<2x16x16x128xf32>
    %51 = vector.extract_strided_slice %11 {offsets = [0, 0, 0, 0], sizes = [2, 16, 16, 128], strides = [1, 1, 1, 1]} : vector<2x18x16x128xf32> to vector<2x16x16x128xf32>
    %52 = vector.shape_cast %17 : vector<128xf32> to vector<1x1x1x128xf32>
    %53 = vector.broadcast %52 : vector<1x1x1x128xf32> to vector<2x16x16x128xf32>
    %54 = arith.mulf %51, %53 : vector<2x16x16x128xf32>
    %55 = arith.addf %50, %54 : vector<2x16x16x128xf32>
    %56 = vector.extract_strided_slice %6 {offsets = [0, 1, 0, 0], sizes = [2, 16, 16, 128], strides = [1, 1, 1, 1]} : vector<2x18x16x128xf32> to vector<2x16x16x128xf32>
    %57 = vector.shape_cast %19 : vector<128xf32> to vector<1x1x1x128xf32>
    %58 = vector.broadcast %57 : vector<1x1x1x128xf32> to vector<2x16x16x128xf32>
    %59 = arith.mulf %56, %58 : vector<2x16x16x128xf32>
    %60 = vector.extract_strided_slice %0 {offsets = [0, 1, 0, 0], sizes = [2, 16, 16, 128], strides = [1, 1, 1, 1]} : vector<2x18x16x128xf32> to vector<2x16x16x128xf32>
    %61 = vector.shape_cast %21 : vector<128xf32> to vector<1x1x1x128xf32>
    %62 = vector.broadcast %61 : vector<1x1x1x128xf32> to vector<2x16x16x128xf32>
    %63 = arith.mulf %60, %62 : vector<2x16x16x128xf32>
    %64 = arith.addf %59, %63 : vector<2x16x16x128xf32>
    %65 = vector.extract_strided_slice %11 {offsets = [0, 1, 0, 0], sizes = [2, 16, 16, 128], strides = [1, 1, 1, 1]} : vector<2x18x16x128xf32> to vector<2x16x16x128xf32>
    %66 = vector.shape_cast %23 : vector<128xf32> to vector<1x1x1x128xf32>
    %67 = vector.broadcast %66 : vector<1x1x1x128xf32> to vector<2x16x16x128xf32>
    %68 = arith.mulf %65, %67 : vector<2x16x16x128xf32>
    %69 = arith.addf %64, %68 : vector<2x16x16x128xf32>
    %70 = arith.addf %55, %69 : vector<2x16x16x128xf32>
    %71 = vector.extract_strided_slice %6 {offsets = [0, 2, 0, 0], sizes = [2, 16, 16, 128], strides = [1, 1, 1, 1]} : vector<2x18x16x128xf32> to vector<2x16x16x128xf32>
    %72 = vector.shape_cast %25 : vector<128xf32> to vector<1x1x1x128xf32>
    %73 = vector.broadcast %72 : vector<1x1x1x128xf32> to vector<2x16x16x128xf32>
    %74 = arith.mulf %71, %73 : vector<2x16x16x128xf32>
    %75 = vector.extract_strided_slice %0 {offsets = [0, 2, 0, 0], sizes = [2, 16, 16, 128], strides = [1, 1, 1, 1]} : vector<2x18x16x128xf32> to vector<2x16x16x128xf32>
    %76 = vector.shape_cast %27 : vector<128xf32> to vector<1x1x1x128xf32>
    %77 = vector.broadcast %76 : vector<1x1x1x128xf32> to vector<2x16x16x128xf32>
    %78 = arith.mulf %75, %77 : vector<2x16x16x128xf32>
    %79 = arith.addf %74, %78 : vector<2x16x16x128xf32>
    %80 = vector.extract_strided_slice %11 {offsets = [0, 2, 0, 0], sizes = [2, 16, 16, 128], strides = [1, 1, 1, 1]} : vector<2x18x16x128xf32> to vector<2x16x16x128xf32>
    %81 = vector.shape_cast %29 : vector<128xf32> to vector<1x1x1x128xf32>
    %82 = vector.broadcast %81 : vector<1x1x1x128xf32> to vector<2x16x16x128xf32>
    %83 = arith.mulf %80, %82 : vector<2x16x16x128xf32>
    %84 = arith.addf %79, %83 : vector<2x16x16x128xf32>
    %85 = arith.addf %70, %84 : vector<2x16x16x128xf32>
    %86 = vector.shape_cast %31 : vector<128xf32> to vector<1x1x1x128xf32>
    %87 = vector.broadcast %86 : vector<1x1x1x128xf32> to vector<2x16x16x128xf32>
    %88 = arith.addf %85, %87 : vector<2x16x16x128xf32>
    %cst_21 = arith.constant 5.000000e-01 : f32
    %89 = vector.broadcast %cst_21 : f32 to vector<2x16x16x128xf32>
    %90 = arith.mulf %89, %88 : vector<2x16x16x128xf32>
    %cst_22 = arith.constant 4.471500e-02 : f32
    %91 = vector.broadcast %cst_22 : f32 to vector<2x16x16x128xf32>
    %92 = arith.mulf %91, %88 : vector<2x16x16x128xf32>
    %93 = arith.mulf %92, %88 : vector<2x16x16x128xf32>
    %94 = arith.mulf %93, %88 : vector<2x16x16x128xf32>
    %95 = arith.addf %88, %94 : vector<2x16x16x128xf32>
    %cst_23 = arith.constant 0.797884583 : f32
    %96 = vector.broadcast %cst_23 : f32 to vector<2x16x16x128xf32>
    %97 = arith.mulf %96, %95 : vector<2x16x16x128xf32>
    %98 = math.tanh %97 : vector<2x16x16x128xf32>
    %cst_24 = arith.constant 1.000000e+00 : f32
    %99 = vector.broadcast %cst_24 : f32 to vector<2x16x16x128xf32>
    %100 = arith.addf %99, %98 : vector<2x16x16x128xf32>
    %101 = arith.mulf %90, %100 : vector<2x16x16x128xf32>
    %102 = vector.shape_cast %101 : vector<2x16x16x128xf32> to vector<512x128xf32>
    %cst_25 = arith.constant dense<0.000000e+00> : vector<128xf32>
    %103 = vector.multi_reduction <add>, %102, %cst_25 [0] : vector<512x128xf32> to vector<128xf32>
    %104 = arith.mulf %102, %102 : vector<512x128xf32>
    %cst_26 = arith.constant dense<0.000000e+00> : vector<128xf32>
    %105 = vector.multi_reduction <add>, %104, %cst_26 [0] : vector<512x128xf32> to vector<128xf32>
    %cst_27 = arith.constant 0.001953125 : f32
    %106 = vector.broadcast %cst_27 : f32 to vector<128xf32>
    %107 = arith.mulf %103, %106 : vector<128xf32>
    %cst_28 = arith.constant 0.001953125 : f32
    %108 = vector.broadcast %cst_28 : f32 to vector<128xf32>
    %109 = arith.mulf %105, %108 : vector<128xf32>
    %110 = arith.mulf %107, %107 : vector<128xf32>
    %111 = arith.subf %109, %110 : vector<128xf32>
    %cst_29 = arith.constant 0.000000e+00 : f32
    %112 = vector.broadcast %cst_29 : f32 to vector<128xf32>
    %113 = arith.maximumf %111, %112 : vector<128xf32>
    %cst_30 = arith.constant 9.99999974E-6 : f32
    %114 = vector.broadcast %cst_30 : f32 to vector<128xf32>
    %115 = arith.addf %113, %114 : vector<128xf32>
    %116 = math.rsqrt %115 : vector<128xf32>
    %117 = arith.mulf %116, %33 : vector<128xf32>
    %118 = arith.mulf %107, %117 : vector<128xf32>
    %119 = arith.subf %35, %118 : vector<128xf32>
    %120 = vector.shape_cast %117 : vector<128xf32> to vector<1x128xf32>
    %121 = vector.broadcast %120 : vector<1x128xf32> to vector<512x128xf32>
    %122 = arith.mulf %102, %121 : vector<512x128xf32>
    %123 = vector.shape_cast %119 : vector<128xf32> to vector<1x128xf32>
    %124 = vector.broadcast %123 : vector<1x128xf32> to vector<512x128xf32>
    %125 = arith.addf %122, %124 : vector<512x128xf32>
    %126 = vector.shape_cast %125 : vector<512x128xf32> to vector<2x16x16x128xf32>
    %127 = vector.extract_strided_slice %0 {offsets = [0, 1, 0, 0], sizes = [2, 16, 16, 128], strides = [1, 1, 1, 1]} : vector<2x18x16x128xf32> to vector<2x16x16x128xf32>
    %128 = arith.addf %127, %126 : vector<2x16x16x128xf32>
    %129 = vector.shape_cast %128 : vector<2x16x16x128xf32> to vector<512x128xf32>
    %130 = arith.truncf %129 : vector<512x128xf32> to vector<512x128xbf16>
    %c0_31 = arith.constant 0 : index
    %c0_32 = arith.constant 0 : index
    %131 = vector.load %arg2[%c0_31, %c0_32] : memref<128x128xbf16, #tpu.memory_space<vmem>>, vector<128x128xbf16>
    %cst_33 = arith.constant dense<0.000000e+00> : vector<512x128xf32>
    %132 = tpu.matmul %130, %131, %cst_33 {dimension_numbers = #tpu.dot_dimension_numbers<[1], [0], [0], [1], [0, 0, 1, 1], [], []>} : vector<512x128xbf16>, vector<128x128xbf16>, vector<512x128xf32> -> vector<512x128xf32>
    %133 = vector.shape_cast %37 : vector<128xf32> to vector<1x128xf32>
    %134 = vector.broadcast %133 : vector<1x128xf32> to vector<512x128xf32>
    %135 = arith.addf %132, %134 : vector<512x128xf32>
    %cst_34 = arith.constant 5.000000e-01 : f32
    %136 = vector.broadcast %cst_34 : f32 to vector<512x128xf32>
    %137 = arith.mulf %136, %135 : vector<512x128xf32>
    %cst_35 = arith.constant 4.471500e-02 : f32
    %138 = vector.broadcast %cst_35 : f32 to vector<512x128xf32>
    %139 = arith.mulf %138, %135 : vector<512x128xf32>
    %140 = arith.mulf %139, %135 : vector<512x128xf32>
    %141 = arith.mulf %140, %135 : vector<512x128xf32>
    %142 = arith.addf %135, %141 : vector<512x128xf32>
    %cst_36 = arith.constant 0.797884583 : f32
    %143 = vector.broadcast %cst_36 : f32 to vector<512x128xf32>
    %144 = arith.mulf %143, %142 : vector<512x128xf32>
    %145 = math.tanh %144 : vector<512x128xf32>
    %cst_37 = arith.constant 1.000000e+00 : f32
    %146 = vector.broadcast %cst_37 : f32 to vector<512x128xf32>
    %147 = arith.addf %146, %145 : vector<512x128xf32>
    %148 = arith.mulf %137, %147 : vector<512x128xf32>
    %cst_38 = arith.constant dense<0.000000e+00> : vector<128xf32>
    %149 = vector.multi_reduction <add>, %148, %cst_38 [0] : vector<512x128xf32> to vector<128xf32>
    %150 = arith.mulf %148, %148 : vector<512x128xf32>
    %cst_39 = arith.constant dense<0.000000e+00> : vector<128xf32>
    %151 = vector.multi_reduction <add>, %150, %cst_39 [0] : vector<512x128xf32> to vector<128xf32>
    %cst_40 = arith.constant 0.001953125 : f32
    %152 = vector.broadcast %cst_40 : f32 to vector<128xf32>
    %153 = arith.mulf %149, %152 : vector<128xf32>
    %cst_41 = arith.constant 0.001953125 : f32
    %154 = vector.broadcast %cst_41 : f32 to vector<128xf32>
    %155 = arith.mulf %151, %154 : vector<128xf32>
    %156 = arith.mulf %153, %153 : vector<128xf32>
    %157 = arith.subf %155, %156 : vector<128xf32>
    %cst_42 = arith.constant 0.000000e+00 : f32
    %158 = vector.broadcast %cst_42 : f32 to vector<128xf32>
    %159 = arith.maximumf %157, %158 : vector<128xf32>
    %cst_43 = arith.constant 9.99999974E-6 : f32
    %160 = vector.broadcast %cst_43 : f32 to vector<128xf32>
    %161 = arith.addf %159, %160 : vector<128xf32>
    %162 = math.rsqrt %161 : vector<128xf32>
    %163 = arith.mulf %162, %39 : vector<128xf32>
    %164 = arith.mulf %153, %163 : vector<128xf32>
    %165 = arith.subf %41, %164 : vector<128xf32>
    %166 = vector.shape_cast %163 : vector<128xf32> to vector<1x128xf32>
    %167 = vector.broadcast %166 : vector<1x128xf32> to vector<512x128xf32>
    %168 = arith.mulf %148, %167 : vector<512x128xf32>
    %169 = vector.shape_cast %165 : vector<128xf32> to vector<1x128xf32>
    %170 = vector.broadcast %169 : vector<1x128xf32> to vector<512x128xf32>
    %171 = arith.addf %168, %170 : vector<512x128xf32>
    %172 = vector.shape_cast %171 : vector<512x128xf32> to vector<2x16x16x128xf32>
    %173 = arith.addf %128, %172 : vector<2x16x16x128xf32>
    %c0_44 = arith.constant 0 : index
    %c0_45 = arith.constant 0 : index
    %c0_46 = arith.constant 0 : index
    %c0_47 = arith.constant 0 : index
    %174 = vector.load %arg3[%c0_44, %c0_45, %c0_46, %c0_47] : memref<2x16x16x128xf32, #tpu.memory_space<vmem>>, vector<2x16x16x128xf32>
    tpu.vector_store %arg3[%c0_44, %c0_45, %c0_46, %c0_47], %173 {strides = array<i32>} : memref<2x16x16x128xf32, #tpu.memory_space<vmem>>, vector<2x16x16x128xf32>,
    return
  }
}

</mosaic_0001>

<llo_original>
// kernel: wsconvmixer_block.1
$region0: #{wsconvmixer_block.1}
  #allocation0 [shape = 'u32[]', space=smem, size = 0x4, offset = 0x4, fixed_abs, tag = 'smem constant byte address 0x4 - core index']
  #allocation1 [shape = 'u32[144,128]{1,0:T(1,128)}', space=vmem, size = 0x12000, scoped, tag = 'internal scratch']
  %s0 = inlined_call_operand.vmem [shape: f32[2,18,16,128], index: 0, kind: input, shape index: {}]
  %s1 = inlined_call_operand.vmem [shape: f32[16,128], index: 1, kind: input, shape index: {}]
  %s2 = inlined_call_operand.vmem [shape: bf16[128,128], index: 2, kind: input, shape index: {}]
  %s3 = inlined_call_operand.hbm [shape: f32[2,16,16,128], index: 3, kind: output, shape index: {}]
  %s4 = sld [smem:[#allocation0]]
  $region22: #{wsconvmixer_block.1} parent=0
    _
  %s6 = ssub.s32 1, %s4
  %s7 = scalar_select 0, %s6, %s4
  $region1: #{wsconvmixer_block.1} parent=0
    #allocation2 [shape = 'u8[262144]{0}', space=vmem, size = 0x40000, scoped, tag = 'output window, operand 0, single buffered']
    #allocation3 [shape = 's32[1]{0}', space=sflag, size = 0x4, scoped, tag = 'scoped memory for wsconvmixer_block.1']
    %8 = vsyncpa [#allocation3], 0
    // Predicated region
    $region2: #{wsconvmixer_block.1} parent=1 // pred_check
      _
    $region3: #{wsconvmixer_block.1} parent=1 // pred_check_branch
      %10 = sbr.rel (0) target = $region5
    $region4: #{wsconvmixer_block.1} parent=1 // pred_region
      _
    $region5: #{wsconvmixer_block.1} parent=1 // pred_fallthru
      _
    // Predicated region
    $region6: #{wsconvmixer_block.1} parent=1 // pred_check
      _
    $region7: #{wsconvmixer_block.1} parent=1 // pred_check_branch
      %12 = sbr.rel (0) target = $region9
    $region8: #{wsconvmixer_block.1} parent=1 // pred_region
      _
    $region9: #{wsconvmixer_block.1} parent=1 // pred_fallthru
      _
    // Predicated region
    $region10: #{wsconvmixer_block.1} parent=1 // pred_check
      _
    $region11: #{wsconvmixer_block.1} parent=1 // pred_check_branch
      %14 = sbr.rel (0) target = $region13
    $region12: #{wsconvmixer_block.1} parent=1 // pred_region
      _
    $region13: #{wsconvmixer_block.1} parent=1 // pred_fallthru
      _
    %v16 = vld [vmem:[%s0] sm:$0xff]
    %v17 = vld [vmem:[%s0 + $0x8] sm:$0xff]
    %v18 = vld [vmem:[%s0 + $0x10] sm:$0xff]
    %v19 = vld [vmem:[%s0 + $0x18] sm:$0xff]
    %v20 = vld [vmem:[%s0 + $0x20] sm:$0xff]
    %v21 = vld [vmem:[%s0 + $0x28] sm:$0xff]
    %v22 = vld [vmem:[%s0 + $0x30] sm:$0xff]
    %v23 = vld [vmem:[%s0 + $0x38] sm:$0xff]
    %v24 = vld [vmem:[%s0 + $0x40] sm:$0xff]
    %v25 = vld [vmem:[%s0 + $0x48] sm:$0xff]
    %v26 = vld [vmem:[%s0 + $0x50] sm:$0xff]
    %v27 = vld [vmem:[%s0 + $0x58] sm:$0xff]
    %v28 = vld [vmem:[%s0 + $0x60] sm:$0xff]
    %v29 = vld [vmem:[%s0 + $0x68] sm:$0xff]
    %v30 = vld [vmem:[%s0 + $0x70] sm:$0xff]
    %v31 = vld [vmem:[%s0 + $0x78] sm:$0xff]
    %v32 = vld [vmem:[%s0 + $0x80] sm:$0xff]
    %v33 = vld [vmem:[%s0 + $0x88] sm:$0xff]
    %v34 = vld [vmem:[%s0 + $0x90] sm:$0xff]
    %v35 = vld [vmem:[%s0 + $0x98] sm:$0xff]
    %v36 = vld [vmem:[%s0 + $0xa0] sm:$0xff]
    %v37 = vld [vmem:[%s0 + $0xa8] sm:$0xff]
    %v38 = vld [vmem:[%s0 + $0xb0] sm:$0xff]
    %v39 = vld [vmem:[%s0 + $0xb8] sm:$0xff]
    %v40 = vld [vmem:[%s0 + $0xc0] sm:$0xff]
    %v41 = vld [vmem:[%s0 + $0xc8] sm:$0xff]
    %v42 = vld [vmem:[%s0 + $0xd0] sm:$0xff]
    %v43 = vld [vmem:[%s0 + $0xd8] sm:$0xff]
    %v44 = vld [vmem:[%s0 + $0xe0] sm:$0xff]
    %v45 = vld [vmem:[%s0 + $0xe8] sm:$0xff]
    %v46 = vld [vmem:[%s0 + $0xf0] sm:$0xff]
    %v47 = vld [vmem:[%s0 + $0xf8] sm:$0xff]
    %v48 = vld [vmem:[%s0 + $0x100] sm:$0xff]
    %v49 = vld [vmem:[%s0 + $0x108] sm:$0xff]
    %v50 = vld [vmem:[%s0 + $0x110] sm:$0xff]
    %v51 = vld [vmem:[%s0 + $0x118] sm:$0xff]
    %v52 = vld [vmem:[%s0 + $0x120] sm:$0xff]
    %v53 = vld [vmem:[%s0 + $0x128] sm:$0xff]
    %v54 = vld [vmem:[%s0 + $0x130] sm:$0xff]
    %v55 = vld [vmem:[%s0 + $0x138] sm:$0xff]
    %v56 = vld [vmem:[%s0 + $0x140] sm:$0xff]
    %v57 = vld [vmem:[%s0 + $0x148] sm:$0xff]
    %v58 = vld [vmem:[%s0 + $0x150] sm:$0xff]
    %v59 = vld [vmem:[%s0 + $0x158] sm:$0xff]
    %v60 = vld [vmem:[%s0 + $0x160] sm:$0xff]
    %v61 = vld [vmem:[%s0 + $0x168] sm:$0xff]
    %v62 = vld [vmem:[%s0 + $0x170] sm:$0xff]
    %v63 = vld [vmem:[%s0 + $0x178] sm:$0xff]
    %v64 = vld [vmem:[%s0 + $0x180] sm:$0xff]
    %v65 = vld [vmem:[%s0 + $0x188] sm:$0xff]
    %v66 = vld [vmem:[%s0 + $0x190] sm:$0xff]
    %v67 = vld [vmem:[%s0 + $0x198] sm:$0xff]
    %v68 = vld [vmem:[%s0 + $0x1a0] sm:$0xff]
    %v69 = vld [vmem:[%s0 + $0x1a8] sm:$0xff]
    %v70 = vld [vmem:[%s0 + $0x1b0] sm:$0xff]
    %v71 = vld [vmem:[%s0 + $0x1b8] sm:$0xff]
    %v72 = vld [vmem:[%s0 + $0x1c0] sm:$0xff]
    %v73 = vld [vmem:[%s0 + $0x1c8] sm:$0xff]
    %v74 = vld [vmem:[%s0 + $0x1d0] sm:$0xff]
    %v75 = vld [vmem:[%s0 + $0x1d8] sm:$0xff]
    %v76 = vld [vmem:[%s0 + $0x1e0] sm:$0xff]
    %v77 = vld [vmem:[%s0 + $0x1e8] sm:$0xff]
    %v78 = vld [vmem:[%s0 + $0x1f0] sm:$0xff]
    %v79 = vld [vmem:[%s0 + $0x1f8] sm:$0xff]
    %v80 = vld [vmem:[%s0 + $0x200] sm:$0xff]
    %v81 = vld [vmem:[%s0 + $0x208] sm:$0xff]
    %v82 = vld [vmem:[%s0 + $0x210] sm:$0xff]
    %v83 = vld [vmem:[%s0 + $0x218] sm:$0xff]
    %v84 = vld [vmem:[%s0 + $0x220] sm:$0xff]
    %v85 = vld [vmem:[%s0 + $0x228] sm:$0xff]
    %v86 = vld [vmem:[%s0 + $0x230] sm:$0xff]
    %v87 = vld [vmem:[%s0 + $0x238] sm:$0xff]
    %v88 = vlaneseq
    %v89 = vshrl.u32 %v88, 7
    %v90 = vadd.s32 %v89, 8
    %vm91 = vcmp.eq.s32.totalorder %v89, 0
    %vm92 = vcmp.eq.s32.totalorder %v90, 0
    %v93 = vrot.slane %v16, 7
    %v94 = vrot.slane %v18, 7
    %v95 = vrot.slane %v20, 7
    %v96 = vrot.slane %v22, 7
    %v97 = vrot.slane %v24, 7
    %v98 = vrot.slane %v26, 7
    %v99 = vrot.slane %v28, 7
    %v100 = vrot.slane %v30, 7
    %v101 = vrot.slane %v32, 7
    %v102 = vrot.slane %v34, 7
    %v103 = vrot.slane %v36, 7
    %v104 = vrot.slane %v38, 7
    %v105 = vrot.slane %v40, 7
    %v106 = vrot.slane %v42, 7
    %v107 = vrot.slane %v44, 7
    %v108 = vrot.slane %v46, 7
    %v109 = vrot.slane %v48, 7
    %v110 = vrot.slane %v50, 7
    %v111 = vrot.slane %v52, 7
    %v112 = vrot.slane %v54, 7
    %v113 = vrot.slane %v56, 7
    %v114 = vrot.slane %v58, 7
    %v115 = vrot.slane %v60, 7
    %v116 = vrot.slane %v62, 7
    %v117 = vrot.slane %v64, 7
    %v118 = vrot.slane %v66, 7
    %v119 = vrot.slane %v68, 7
    %v120 = vrot.slane %v70, 7
    %v121 = vrot.slane %v72, 7
    %v122 = vrot.slane %v74, 7
    %v123 = vrot.slane %v76, 7
    %v124 = vrot.slane %v78, 7
    %v125 = vrot.slane %v80, 7
    %v126 = vrot.slane %v82, 7
    %v127 = vrot.slane %v84, 7
    %v128 = vrot.slane %v86, 7
    %v129 = vrot.slane %v17, 7
    %v130 = vrot.slane %v19, 7
    %v131 = vrot.slane %v21, 7
    %v132 = vrot.slane %v23, 7
    %v133 = vrot.slane %v25, 7
    %v134 = vrot.slane %v27, 7
    %v135 = vrot.slane %v29, 7
    %v136 = vrot.slane %v31, 7
    %v137 = vrot.slane %v33, 7
    %v138 = vrot.slane %v35, 7
    %v139 = vrot.slane %v37, 7
    %v140 = vrot.slane %v39, 7
    %v141 = vrot.slane %v41, 7
    %v142 = vrot.slane %v43, 7
    %v143 = vrot.slane %v45, 7
    %v144 = vrot.slane %v47, 7
    %v145 = vrot.slane %v49, 7
    %v146 = vrot.slane %v51, 7
    %v147 = vrot.slane %v53, 7
    %v148 = vrot.slane %v55, 7
    %v149 = vrot.slane %v57, 7
    %v150 = vrot.slane %v59, 7
    %v151 = vrot.slane %v61, 7
    %v152 = vrot.slane %v63, 7
    %v153 = vrot.slane %v65, 7
    %v154 = vrot.slane %v67, 7
    %v155 = vrot.slane %v69, 7
    %v156 = vrot.slane %v71, 7
    %v157 = vrot.slane %v73, 7
    %v158 = vrot.slane %v75, 7
    %v159 = vrot.slane %v77, 7
    %v160 = vrot.slane %v79, 7
    %v161 = vrot.slane %v81, 7
    %v162 = vrot.slane %v83, 7
    %v163 = vrot.slane %v85, 7
    %v164 = vrot.slane %v87, 7
    %vm165 = vcmp.lt.s32.totalorder %v89, 1
    %v166 = vsel %vm165, %v93, %v129
    %v167 = vsel %vm165, %v94, %v130
    %v168 = vsel %vm165, %v95, %v131
    %v169 = vsel %vm165, %v96, %v132
    %v170 = vsel %vm165, %v97, %v133
    %v171 = vsel %vm165, %v98, %v134
    %v172 = vsel %vm165, %v99, %v135
    %v173 = vsel %vm165, %v100, %v136
    %v174 = vsel %vm165, %v101, %v137
    %v175 = vsel %vm165, %v102, %v138
    %v176 = vsel %vm165, %v103, %v139
    %v177 = vsel %vm165, %v104, %v140
    %v178 = vsel %vm165, %v105, %v141
    %v179 = vsel %vm165, %v106, %v142
    %v180 = vsel %vm165, %v107, %v143
    %v181 = vsel %vm165, %v108, %v144
    %v182 = vsel %vm165, %v109, %v145
    %v183 = vsel %vm165, %v110, %v146
    %v184 = vsel %vm165, %v111, %v147
    %v185 = vsel %vm165, %v112, %v148
    %v186 = vsel %vm165, %v113, %v149
    %v187 = vsel %vm165, %v114, %v150
    %v188 = vsel %vm165, %v115, %v151
    %v189 = vsel %vm165, %v116, %v152
    %v190 = vsel %vm165, %v117, %v153
    %v191 = vsel %vm165, %v118, %v154
    %v192 = vsel %vm165, %v119, %v155
    %v193 = vsel %vm165, %v120, %v156
    %v194 = vsel %vm165, %v121, %v157
    %v195 = vsel %vm165, %v122, %v158
    %v196 = vsel %vm165, %v123, %v159
    %v197 = vsel %vm165, %v124, %v160
    %v198 = vsel %vm165, %v125, %v161
    %v199 = vsel %vm165, %v126, %v162
    %v200 = vsel %vm165, %v127, %v163
    %v201 = vsel %vm165, %v128, %v164
    %v202 = vsel %vm165, %v129, %v93
    %v203 = vsel %vm165, %v130, %v94
    %v204 = vsel %vm165, %v131, %v95
    %v205 = vsel %vm165, %v132, %v96
    %v206 = vsel %vm165, %v133, %v97
    %v207 = vsel %vm165, %v134, %v98
    %v208 = vsel %vm165, %v135, %v99
    %v209 = vsel %vm165, %v136, %v100
    %v210 = vsel %vm165, %v137, %v101
    %v211 = vsel %vm165, %v138, %v102
    %v212 = vsel %vm165, %v139, %v103
    %v213 = vsel %vm165, %v140, %v104
    %v214 = vsel %vm165, %v141, %v105
    %v215 = vsel %vm165, %v142, %v106
    %v216 = vsel %vm165, %v143, %v107
    %v217 = vsel %vm165, %v144, %v108
    %v218 = vsel %vm165, %v145, %v109
    %v219 = vsel %vm165, %v146, %v110
    %v220 = vsel %vm165, %v147, %v111
    %v221 = vsel %vm165, %v148, %v112
    %v222 = vsel %vm165, %v149, %v113
    %v223 = vsel %vm165, %v150, %v114
    %v224 = vsel %vm165, %v151, %v115
    %v225 = vsel %vm165, %v152, %v116
    %v226 = vsel %vm165, %v153, %v117
    %v227 = vsel %vm165, %v154, %v118
    %v228 = vsel %vm165, %v155, %v119
    %v229 = vsel %vm165, %v156, %v120
    %v230 = vsel %vm165, %v157, %v121
    %v231 = vsel %vm165, %v158, %v122
    %v232 = vsel %vm165, %v159, %v123
    %v233 = vsel %vm165, %v160, %v124
    %v234 = vsel %vm165, %v161, %v125
    %v235 = vsel %vm165, %v162, %v126
    %v236 = vsel %vm165, %v163, %v127
    %v237 = vsel %vm165, %v164, %v128
    %v238 = vsel %vm91, 0.0, %v202
    %v239 = vsel %vm92, 0.0, %v166
    %v240 = vsel %vm91, 0.0, %v203
    %v241 = vsel %vm92, 0.0, %v167
    %v242 = vsel %vm91, 0.0, %v204
    %v243 = vsel %vm92, 0.0, %v168
    %v244 = vsel %vm91, 0.0, %v205
    %v245 = vsel %vm92, 0.0, %v169
    %v246 = vsel %vm91, 0.0, %v206
    %v247 = vsel %vm92, 0.0, %v170
    %v248 = vsel %vm91, 0.0, %v207
    %v249 = vsel %vm92, 0.0, %v171
    %v250 = vsel %vm91, 0.0, %v208
    %v251 = vsel %vm92, 0.0, %v172
    %v252 = vsel %vm91, 0.0, %v209
    %v253 = vsel %vm92, 0.0, %v173
    %v254 = vsel %vm91, 0.0, %v210
    %v255 = vsel %vm92, 0.0, %v174
    %v256 = vsel %vm91, 0.0, %v211
    %v257 = vsel %vm92, 0.0, %v175
    %v258 = vsel %vm91, 0.0, %v212
    %v259 = vsel %vm92, 0.0, %v176
    %v260 = vsel %vm91, 0.0, %v213
    %v261 = vsel %vm92, 0.0, %v177
    %v262 = vsel %vm91, 0.0, %v214
    %v263 = vsel %vm92, 0.0, %v178
    %v264 = vsel %vm91, 0.0, %v215
    %v265 = vsel %vm92, 0.0, %v179
    %v266 = vsel %vm91, 0.0, %v216
    %v267 = vsel %vm92, 0.0, %v180
    %v268 = vsel %vm91, 0.0, %v217
    %v269 = vsel %vm92, 0.0, %v181
    %v270 = vsel %vm91, 0.0, %v218
    %v271 = vsel %vm92, 0.0, %v182
    %v272 = vsel %vm91, 0.0, %v219
    %v273 = vsel %vm92, 0.0, %v183
    %v274 = vsel %vm91, 0.0, %v220
    %v275 = vsel %vm92, 0.0, %v184
    %v276 = vsel %vm91, 0.0, %v221
    %v277 = vsel %vm92, 0.0, %v185
    %v278 = vsel %vm91, 0.0, %v222
    %v279 = vsel %vm92, 0.0, %v186
    %v280 = vsel %vm91, 0.0, %v223
    %v281 = vsel %vm92, 0.0, %v187
    %v282 = vsel %vm91, 0.0, %v224
    %v283 = vsel %vm92, 0.0, %v188
    %v284 = vsel %vm91, 0.0, %v225
    %v285 = vsel %vm92, 0.0, %v189
    %v286 = vsel %vm91, 0.0, %v226
    %v287 = vsel %vm92, 0.0, %v190
    %v288 = vsel %vm91, 0.0, %v227
    %v289 = vsel %vm92, 0.0, %v191
    %v290 = vsel %vm91, 0.0, %v228
    %v291 = vsel %vm92, 0.0, %v192
    %v292 = vsel %vm91, 0.0, %v229
    %v293 = vsel %vm92, 0.0, %v193
    %v294 = vsel %vm91, 0.0, %v230
    %v295 = vsel %vm92, 0.0, %v194
    %v296 = vsel %vm91, 0.0, %v231
    %v297 = vsel %vm92, 0.0, %v195
    %v298 = vsel %vm91, 0.0, %v232
    %v299 = vsel %vm92, 0.0, %v196
    %v300 = vsel %vm91, 0.0, %v233
    %v301 = vsel %vm92, 0.0, %v197
    %v302 = vsel %vm91, 0.0, %v234
    %v303 = vsel %vm92, 0.0, %v198
    %v304 = vsel %vm91, 0.0, %v235
    %v305 = vsel %vm92, 0.0, %v199
    %v306 = vsel %vm91, 0.0, %v236
    %v307 = vsel %vm92, 0.0, %v200
    %v308 = vsel %vm91, 0.0, %v237
    %v309 = vsel %vm92, 0.0, %v201
    %vm310 = vcmp.eq.s32.totalorder %v89, 15
    %vm311 = vcmp.eq.s32.totalorder %v90, 15
    %v312 = vrot.slane %v16, 1
    %v313 = vrot.slane %v18, 1
    %v314 = vrot.slane %v20, 1
    %v315 = vrot.slane %v22, 1
    %v316 = vrot.slane %v24, 1
    %v317 = vrot.slane %v26, 1
    %v318 = vrot.slane %v28, 1
    %v319 = vrot.slane %v30, 1
    %v320 = vrot.slane %v32, 1
    %v321 = vrot.slane %v34, 1
    %v322 = vrot.slane %v36, 1
    %v323 = vrot.slane %v38, 1
    %v324 = vrot.slane %v40, 1
    %v325 = vrot.slane %v42, 1
    %v326 = vrot.slane %v44, 1
    %v327 = vrot.slane %v46, 1
    %v328 = vrot.slane %v48, 1
    %v329 = vrot.slane %v50, 1
    %v330 = vrot.slane %v52, 1
    %v331 = vrot.slane %v54, 1
    %v332 = vrot.slane %v56, 1
    %v333 = vrot.slane %v58, 1
    %v334 = vrot.slane %v60, 1
    %v335 = vrot.slane %v62, 1
    %v336 = vrot.slane %v64, 1
    %v337 = vrot.slane %v66, 1
    %v338 = vrot.slane %v68, 1
    %v339 = vrot.slane %v70, 1
    %v340 = vrot.slane %v72, 1
    %v341 = vrot.slane %v74, 1
    %v342 = vrot.slane %v76, 1
    %v343 = vrot.slane %v78, 1
    %v344 = vrot.slane %v80, 1
    %v345 = vrot.slane %v82, 1
    %v346 = vrot.slane %v84, 1
    %v347 = vrot.slane %v86, 1
    %v348 = vrot.slane %v17, 1
    %v349 = vrot.slane %v19, 1
    %v350 = vrot.slane %v21, 1
    %v351 = vrot.slane %v23, 1
    %v352 = vrot.slane %v25, 1
    %v353 = vrot.slane %v27, 1
    %v354 = vrot.slane %v29, 1
    %v355 = vrot.slane %v31, 1
    %v356 = vrot.slane %v33, 1
    %v357 = vrot.slane %v35, 1
    %v358 = vrot.slane %v37, 1
    %v359 = vrot.slane %v39, 1
    %v360 = vrot.slane %v41, 1
    %v361 = vrot.slane %v43, 1
    %v362 = vrot.slane %v45, 1
    %v363 = vrot.slane %v47, 1
    %v364 = vrot.slane %v49, 1
    %v365 = vrot.slane %v51, 1
    %v366 = vrot.slane %v53, 1
    %v367 = vrot.slane %v55, 1
    %v368 = vrot.slane %v57, 1
    %v369 = vrot.slane %v59, 1
    %v370 = vrot.slane %v61, 1
    %v371 = vrot.slane %v63, 1
    %v372 = vrot.slane %v65, 1
    %v373 = vrot.slane %v67, 1
    %v374 = vrot.slane %v69, 1
    %v375 = vrot.slane %v71, 1
    %v376 = vrot.slane %v73, 1
    %v377 = vrot.slane %v75, 1
    %v378 = vrot.slane %v77, 1
    %v379 = vrot.slane %v79, 1
    %v380 = vrot.slane %v81, 1
    %v381 = vrot.slane %v83, 1
    %v382 = vrot.slane %v85, 1
    %v383 = vrot.slane %v87, 1
    %vm384 = vcmp.lt.s32.totalorder %v89, 7
    %v385 = vsel %vm384, %v312, %v348
    %v386 = vsel %vm384, %v313, %v349
    %v387 = vsel %vm384, %v314, %v350
    %v388 = vsel %vm384, %v315, %v351
    %v389 = vsel %vm384, %v316, %v352
    %v390 = vsel %vm384, %v317, %v353
    %v391 = vsel %vm384, %v318, %v354
    %v392 = vsel %vm384, %v319, %v355
    %v393 = vsel %vm384, %v320, %v356
    %v394 = vsel %vm384, %v321, %v357
    %v395 = vsel %vm384, %v322, %v358
    %v396 = vsel %vm384, %v323, %v359
    %v397 = vsel %vm384, %v324, %v360
    %v398 = vsel %vm384, %v325, %v361
    %v399 = vsel %vm384, %v326, %v362
    %v400 = vsel %vm384, %v327, %v363
    %v401 = vsel %vm384, %v328, %v364
    %v402 = vsel %vm384, %v329, %v365
    %v403 = vsel %vm384, %v330, %v366
    %v404 = vsel %vm384, %v331, %v367
    %v405 = vsel %vm384, %v332, %v368
    %v406 = vsel %vm384, %v333, %v369
    %v407 = vsel %vm384, %v334, %v370
    %v408 = vsel %vm384, %v335, %v371
    %v409 = vsel %vm384, %v336, %v372
    %v410 = vsel %vm384, %v337, %v373
    %v411 = vsel %vm384, %v338, %v374
    %v412 = vsel %vm384, %v339, %v375
    %v413 = vsel %vm384, %v340, %v376
    %v414 = vsel %vm384, %v341, %v377
    %v415 = vsel %vm384, %v342, %v378
    %v416 = vsel %vm384, %v343, %v379
    %v417 = vsel %vm384, %v344, %v380
    %v418 = vsel %vm384, %v345, %v381
    %v419 = vsel %vm384, %v346, %v382
    %v420 = vsel %vm384, %v347, %v383
    %v421 = vsel %vm384, %v348, %v312
    %v422 = vsel %vm384, %v349, %v313
    %v423 = vsel %vm384, %v350, %v314
    %v424 = vsel %vm384, %v351, %v315
    %v425 = vsel %vm384, %v352, %v316
    %v426 = vsel %vm384, %v353, %v317
    %v427 = vsel %vm384, %v354, %v318
    %v428 = vsel %vm384, %v355, %v319
    %v429 = vsel %vm384, %v356, %v320
    %v430 = vsel %vm384, %v357, %v321
    %v431 = vsel %vm384, %v358, %v322
    %v432 = vsel %vm384, %v359, %v323
    %v433 = vsel %vm384, %v360, %v324
    %v434 = vsel %vm384, %v361, %v325
    %v435 = vsel %vm384, %v362, %v326
    %v436 = vsel %vm384, %v363, %v327
    %v437 = vsel %vm384, %v364, %v328
    %v438 = vsel %vm384, %v365, %v329
    %v439 = vsel %vm384, %v366, %v330
    %v440 = vsel %vm384, %v367, %v331
    %v441 = vsel %vm384, %v368, %v332
    %v442 = vsel %vm384, %v369, %v333
    %v443 = vsel %vm384, %v370, %v334
    %v444 = vsel %vm384, %v371, %v335
    %v445 = vsel %vm384, %v372, %v336
    %v446 = vsel %vm384, %v373, %v337
    %v447 = vsel %vm384, %v374, %v338
    %v448 = vsel %vm384, %v375, %v339
    %v449 = vsel %vm384, %v376, %v340
    %v450 = vsel %vm384, %v377, %v341
    %v451 = vsel %vm384, %v378, %v342
    %v452 = vsel %vm384, %v379, %v343
    %v453 = vsel %vm384, %v380, %v344
    %v454 = vsel %vm384, %v381, %v345
    %v455 = vsel %vm384, %v382, %v346
    %v456 = vsel %vm384, %v383, %v347
    %v457 = vsel %vm310, 0.0, %v385
    %v458 = vsel %vm311, 0.0, %v421
    %v459 = vsel %vm310, 0.0, %v386
    %v460 = vsel %vm311, 0.0, %v422
    %v461 = vsel %vm310, 0.0, %v387
    %v462 = vsel %vm311, 0.0, %v423
    %v463 = vsel %vm310, 0.0, %v388
    %v464 = vsel %vm311, 0.0, %v424
    %v465 = vsel %vm310, 0.0, %v389
    %v466 = vsel %vm311, 0.0, %v425
    %v467 = vsel %vm310, 0.0, %v390
    %v468 = vsel %vm311, 0.0, %v426
    %v469 = vsel %vm310, 0.0, %v391
    %v470 = vsel %vm311, 0.0, %v427
    %v471 = vsel %vm310, 0.0, %v392
    %v472 = vsel %vm311, 0.0, %v428
    %v473 = vsel %vm310, 0.0, %v393
    %v474 = vsel %vm311, 0.0, %v429
    %v475 = vsel %vm310, 0.0, %v394
    %v476 = vsel %vm311, 0.0, %v430
    %v477 = vsel %vm310, 0.0, %v395
    %v478 = vsel %vm311, 0.0, %v431
    %v479 = vsel %vm310, 0.0, %v396
    %v480 = vsel %vm311, 0.0, %v432
    %v481 = vsel %vm310, 0.0, %v397
    %v482 = vsel %vm311, 0.0, %v433
    %v483 = vsel %vm310, 0.0, %v398
    %v484 = vsel %vm311, 0.0, %v434
    %v485 = vsel %vm310, 0.0, %v399
    %v486 = vsel %vm311, 0.0, %v435
    %v487 = vsel %vm310, 0.0, %v400
    %v488 = vsel %vm311, 0.0, %v436
    %v489 = vsel %vm310, 0.0, %v401
    %v490 = vsel %vm311, 0.0, %v437
    %v491 = vsel %vm310, 0.0, %v402
    %v492 = vsel %vm311, 0.0, %v438
    %v493 = vsel %vm310, 0.0, %v403
    %v494 = vsel %vm311, 0.0, %v439
    %v495 = vsel %vm310, 0.0, %v404
    %v496 = vsel %vm311, 0.0, %v440
    %v497 = vsel %vm310, 0.0, %v405
    %v498 = vsel %vm311, 0.0, %v441
    %v499 = vsel %vm310, 0.0, %v406
    %v500 = vsel %vm311, 0.0, %v442
    %v501 = vsel %vm310, 0.0, %v407
    %v502 = vsel %vm311, 0.0, %v443
    %v503 = vsel %vm310, 0.0, %v408
    %v504 = vsel %vm311, 0.0, %v444
    %v505 = vsel %vm310, 0.0, %v409
    %v506 = vsel %vm311, 0.0, %v445
    %v507 = vsel %vm310, 0.0, %v410
    %v508 = vsel %vm311, 0.0, %v446
    %v509 = vsel %vm310, 0.0, %v411
    %v510 = vsel %vm311, 0.0, %v447
    %v511 = vsel %vm310, 0.0, %v412
    %v512 = vsel %vm311, 0.0, %v448
    %v513 = vsel %vm310, 0.0, %v413
    %v514 = vsel %vm311, 0.0, %v449
    %v515 = vsel %vm310, 0.0, %v414
    %v516 = vsel %vm311, 0.0, %v450
    %v517 = vsel %vm310, 0.0, %v415
    %v518 = vsel %vm311, 0.0, %v451
    %v519 = vsel %vm310, 0.0, %v416
    %v520 = vsel %vm311, 0.0, %v452
    %v521 = vsel %vm310, 0.0, %v417
    %v522 = vsel %vm311, 0.0, %v453
    %v523 = vsel %vm310, 0.0, %v418
    %v524 = vsel %vm311, 0.0, %v454
    %v525 = vsel %vm310, 0.0, %v419
    %v526 = vsel %vm311, 0.0, %v455
    %v527 = vsel %vm310, 0.0, %v420
    %v528 = vsel %vm311, 0.0, %v456
    %v529 = vld [vmem:[%s1] sm:$0x1]
    %v530 = vld [vmem:[%s1 + $0x1] sm:$0x1]
    %v531 = vld [vmem:[%s1 + $0x2] sm:$0x1]
    %v532 = vld [vmem:[%s1 + $0x3] sm:$0x1]
    %v533 = vld [vmem:[%s1 + $0x4] sm:$0x1]
    %v534 = vld [vmem:[%s1 + $0x5] sm:$0x1]
    %v535 = vld [vmem:[%s1 + $0x6] sm:$0x1]
    %v536 = vld [vmem:[%s1 + $0x7] sm:$0x1]
    %v537 = vld [vmem:[%s1 + $0x8] sm:$0x1]
    %v538 = vld [vmem:[%s1 + $0x9] sm:$0x1]
    %v539 = vld [vmem:[%s1 + $0xa] sm:$0x1]
    %v540 = vld [vmem:[%s1 + $0xb] sm:$0x1]
    %v541 = vld [vmem:[%s1 + $0xc] sm:$0x1]
    %v542 = vld [vmem:[%s1 + $0xd] sm:$0x1]
    %v543 = vld [vmem:[%s1 + $0xe] sm:$0x1]
    %v544 = vlaneseq
    %v545 = vshrl.u32 %v544, 7
    %v546 = vsub.s32 0, %v545
    %v547 = vrot.slane %v529, %v546
    %v548 = vmul.f32 %v238, %v547
    %v549 = vmul.f32 %v239, %v547
    %v550 = vmul.f32 %v240, %v547
    %v551 = vmul.f32 %v241, %v547
    %v552 = vmul.f32 %v242, %v547
    %v553 = vmul.f32 %v243, %v547
    %v554 = vmul.f32 %v244, %v547
    %v555 = vmul.f32 %v245, %v547
    %v556 = vmul.f32 %v246, %v547
    %v557 = vmul.f32 %v247, %v547
    %v558 = vmul.f32 %v248, %v547
    %v559 = vmul.f32 %v249, %v547
    %v560 = vmul.f32 %v250, %v547
    %v561 = vmul.f32 %v251, %v547
    %v562 = vmul.f32 %v252, %v547
    %v563 = vmul.f32 %v253, %v547
    %v564 = vmul.f32 %v254, %v547
    %v565 = vmul.f32 %v255, %v547
    %v566 = vmul.f32 %v256, %v547
    %v567 = vmul.f32 %v257, %v547
    %v568 = vmul.f32 %v258, %v547
    %v569 = vmul.f32 %v259, %v547
    %v570 = vmul.f32 %v260, %v547
    %v571 = vmul.f32 %v261, %v547
    %v572 = vmul.f32 %v262, %v547
    %v573 = vmul.f32 %v263, %v547
    %v574 = vmul.f32 %v264, %v547
    %v575 = vmul.f32 %v265, %v547
    %v576 = vmul.f32 %v266, %v547
    %v577 = vmul.f32 %v267, %v547
    %v578 = vmul.f32 %v268, %v547
    %v579 = vmul.f32 %v269, %v547
    %v580 = vmul.f32 %v274, %v547
    %v581 = vmul.f32 %v275, %v547
    %v582 = vmul.f32 %v276, %v547
    %v583 = vmul.f32 %v277, %v547
    %v584 = vmul.f32 %v278, %v547
    %v585 = vmul.f32 %v279, %v547
    %v586 = vmul.f32 %v280, %v547
    %v587 = vmul.f32 %v281, %v547
    %v588 = vmul.f32 %v282, %v547
    %v589 = vmul.f32 %v283, %v547
    %v590 = vmul.f32 %v284, %v547
    %v591 = vmul.f32 %v285, %v547
    %v592 = vmul.f32 %v286, %v547
    %v593 = vmul.f32 %v287, %v547
    %v594 = vmul.f32 %v288, %v547
    %v595 = vmul.f32 %v289, %v547
    %v596 = vmul.f32 %v290, %v547
    %v597 = vmul.f32 %v291, %v547
    %v598 = vmul.f32 %v292, %v547
    %v599 = vmul.f32 %v293, %v547
    %v600 = vmul.f32 %v294, %v547
    %v601 = vmul.f32 %v295, %v547
    %v602 = vmul.f32 %v296, %v547
    %v603 = vmul.f32 %v297, %v547
    %v604 = vmul.f32 %v298, %v547
    %v605 = vmul.f32 %v299, %v547
    %v606 = vmul.f32 %v300, %v547
    %v607 = vmul.f32 %v301, %v547
    %v608 = vmul.f32 %v302, %v547
    %v609 = vmul.f32 %v303, %v547
    %v610 = vmul.f32 %v304, %v547
    %v611 = vmul.f32 %v305, %v547
    %v612 = vlaneseq
    %v613 = vshrl.u32 %v612, 7
    %v614 = vsub.s32 0, %v613
    %v615 = vrot.slane %v530, %v614
    %v616 = vmul.f32 %v16, %v615
    %v617 = vmul.f32 %v17, %v615
    %v618 = vmul.f32 %v18, %v615
    %v619 = vmul.f32 %v19, %v615
    %v620 = vmul.f32 %v20, %v615
    %v621 = vmul.f32 %v21, %v615
    %v622 = vmul.f32 %v22, %v615
    %v623 = vmul.f32 %v23, %v615
    %v624 = vmul.f32 %v24, %v615
    %v625 = vmul.f32 %v25, %v615
    %v626 = vmul.f32 %v26, %v615
    %v627 = vmul.f32 %v27, %v615
    %v628 = vmul.f32 %v28, %v615
    %v629 = vmul.f32 %v29, %v615
    %v630 = vmul.f32 %v30, %v615
    %v631 = vmul.f32 %v31, %v615
    %v632 = vmul.f32 %v32, %v615
    %v633 = vmul.f32 %v33, %v615
    %v634 = vmul.f32 %v34, %v615
    %v635 = vmul.f32 %v35, %v615
    %v636 = vmul.f32 %v36, %v615
    %v637 = vmul.f32 %v37, %v615
    %v638 = vmul.f32 %v38, %v615
    %v639 = vmul.f32 %v39, %v615
    %v640 = vmul.f32 %v40, %v615
    %v641 = vmul.f32 %v41, %v615
    %v642 = vmul.f32 %v42, %v615
    %v643 = vmul.f32 %v43, %v615
    %v644 = vmul.f32 %v44, %v615
    %v645 = vmul.f32 %v45, %v615
    %v646 = vmul.f32 %v46, %v615
    %v647 = vmul.f32 %v47, %v615
    %v648 = vmul.f32 %v52, %v615
    %v649 = vmul.f32 %v53, %v615
    %v650 = vmul.f32 %v54, %v615
    %v651 = vmul.f32 %v55, %v615
    %v652 = vmul.f32 %v56, %v615
    %v653 = vmul.f32 %v57, %v615
    %v654 = vmul.f32 %v58, %v615
    %v655 = vmul.f32 %v59, %v615
    %v656 = vmul.f32 %v60, %v615
    %v657 = vmul.f32 %v61, %v615
    %v658 = vmul.f32 %v62, %v615
    %v659 = vmul.f32 %v63, %v615
    %v660 = vmul.f32 %v64, %v615
    %v661 = vmul.f32 %v65, %v615
    %v662 = vmul.f32 %v66, %v615
    %v663 = vmul.f32 %v67, %v615
    %v664 = vmul.f32 %v68, %v615
    %v665 = vmul.f32 %v69, %v615
    %v666 = vmul.f32 %v70, %v615
    %v667 = vmul.f32 %v71, %v615
    %v668 = vmul.f32 %v72, %v615
    %v669 = vmul.f32 %v73, %v615
    %v670 = vmul.f32 %v74, %v615
    %v671 = vmul.f32 %v75, %v615
    %v672 = vmul.f32 %v76, %v615
    %v673 = vmul.f32 %v77, %v615
    %v674 = vmul.f32 %v78, %v615
    %v675 = vmul.f32 %v79, %v615
    %v676 = vmul.f32 %v80, %v615
    %v677 = vmul.f32 %v81, %v615
    %v678 = vmul.f32 %v82, %v615
    %v679 = vmul.f32 %v83, %v615
    %v680 = vadd.f32 %v548, %v616
    %v681 = vadd.f32 %v549, %v617
    %v682 = vadd.f32 %v550, %v618
    %v683 = vadd.f32 %v551, %v619
    %v684 = vadd.f32 %v552, %v620
    %v685 = vadd.f32 %v553, %v621
    %v686 = vadd.f32 %v554, %v622
    %v687 = vadd.f32 %v555, %v623
    %v688 = vadd.f32 %v556, %v624
    %v689 = vadd.f32 %v557, %v625
    %v690 = vadd.f32 %v558, %v626
    %v691 = vadd.f32 %v559, %v627
    %v692 = vadd.f32 %v560, %v628
    %v693 = vadd.f32 %v561, %v629
    %v694 = vadd.f32 %v562, %v630
    %v695 = vadd.f32 %v563, %v631
    %v696 = vadd.f32 %v564, %v632
    %v697 = vadd.f32 %v565, %v633
    %v698 = vadd.f32 %v566, %v634
    %v699 = vadd.f32 %v567, %v635
    %v700 = vadd.f32 %v568, %v636
    %v701 = vadd.f32 %v569, %v637
    %v702 = vadd.f32 %v570, %v638
    %v703 = vadd.f32 %v571, %v639
    %v704 = vadd.f32 %v572, %v640
    %v705 = vadd.f32 %v573, %v641
    %v706 = vadd.f32 %v574, %v642
    %v707 = vadd.f32 %v575, %v643
    %v708 = vadd.f32 %v576, %v644
    %v709 = vadd.f32 %v577, %v645
    %v710 = vadd.f32 %v578, %v646
    %v711 = vadd.f32 %v579, %v647
    %v712 = vadd.f32 %v580, %v648
    %v713 = vadd.f32 %v581, %v649
    %v714 = vadd.f32 %v582, %v650
    %v715 = vadd.f32 %v583, %v651
    %v716 = vadd.f32 %v584, %v652
    %v717 = vadd.f32 %v585, %v653
    %v718 = vadd.f32 %v586, %v654
    %v719 = vadd.f32 %v587, %v655
    %v720 = vadd.f32 %v588, %v656
    %v721 = vadd.f32 %v589, %v657
    %v722 = vadd.f32 %v590, %v658
    %v723 = vadd.f32 %v591, %v659
    %v724 = vadd.f32 %v592, %v660
    %v725 = vadd.f32 %v593, %v661
    %v726 = vadd.f32 %v594, %v662
    %v727 = vadd.f32 %v595, %v663
    %v728 = vadd.f32 %v596, %v664
    %v729 = vadd.f32 %v597, %v665
    %v730 = vadd.f32 %v598, %v666
    %v731 = vadd.f32 %v599, %v667
    %v732 = vadd.f32 %v600, %v668
    %v733 = vadd.f32 %v601, %v669
    %v734 = vadd.f32 %v602, %v670
    %v735 = vadd.f32 %v603, %v671
    %v736 = vadd.f32 %v604, %v672
    %v737 = vadd.f32 %v605, %v673
    %v738 = vadd.f32 %v606, %v674
    %v739 = vadd.f32 %v607, %v675
    %v740 = vadd.f32 %v608, %v676
    %v741 = vadd.f32 %v609, %v677
    %v742 = vadd.f32 %v610, %v678
    %v743 = vadd.f32 %v611, %v679
    %v744 = vlaneseq
    %v745 = vshrl.u32 %v744, 7
    %v746 = vsub.s32 0, %v745
    %v747 = vrot.slane %v531, %v746
    %v748 = vmul.f32 %v457, %v747
    %v749 = vmul.f32 %v458, %v747
    %v750 = vmul.f32 %v459, %v747
    %v751 = vmul.f32 %v460, %v747
    %v752 = vmul.f32 %v461, %v747
    %v753 = vmul.f32 %v462, %v747
    %v754 = vmul.f32 %v463, %v747
    %v755 = vmul.f32 %v464, %v747
    %v756 = vmul.f32 %v465, %v747
    %v757 = vmul.f32 %v466, %v747
    %v758 = vmul.f32 %v467, %v747
    %v759 = vmul.f32 %v468, %v747
    %v760 = vmul.f32 %v469, %v747
    %v761 = vmul.f32 %v470, %v747
    %v762 = vmul.f32 %v471, %v747
    %v763 = vmul.f32 %v472, %v747
    %v764 = vmul.f32 %v473, %v747
    %v765 = vmul.f32 %v474, %v747
    %v766 = vmul.f32 %v475, %v747
    %v767 = vmul.f32 %v476, %v747
    %v768 = vmul.f32 %v477, %v747
    %v769 = vmul.f32 %v478, %v747
    %v770 = vmul.f32 %v479, %v747
    %v771 = vmul.f32 %v480, %v747
    %v772 = vmul.f32 %v481, %v747
    %v773 = vmul.f32 %v482, %v747
    %v774 = vmul.f32 %v483, %v747
    %v775 = vmul.f32 %v484, %v747
    %v776 = vmul.f32 %v485, %v747
    %v777 = vmul.f32 %v486, %v747
    %v778 = vmul.f32 %v487, %v747
    %v779 = vmul.f32 %v488, %v747
    %v780 = vmul.f32 %v493, %v747
    %v781 = vmul.f32 %v494, %v747
    %v782 = vmul.f32 %v495, %v747
    %v783 = vmul.f32 %v496, %v747
    %v784 = vmul.f32 %v497, %v747
    %v785 = vmul.f32 %v498, %v747
    %v786 = vmul.f32 %v499, %v747
    %v787 = vmul.f32 %v500, %v747
    %v788 = vmul.f32 %v501, %v747
    %v789 = vmul.f32 %v502, %v747
    %v790 = vmul.f32 %v503, %v747
    %v791 = vmul.f32 %v504, %v747
    %v792 = vmul.f32 %v505, %v747
    %v793 = vmul.f32 %v506, %v747
    %v794 = vmul.f32 %v507, %v747
    %v795 = vmul.f32 %v508, %v747
    %v796 = vmul.f32 %v509, %v747
    %v797 = vmul.f32 %v510, %v747
    %v798 = vmul.f32 %v511, %v747
    %v799 = vmul.f32 %v512, %v747
    %v800 = vmul.f32 %v513, %v747
    %v801 = vmul.f32 %v514, %v747
    %v802 = vmul.f32 %v515, %v747
    %v803 = vmul.f32 %v516, %v747
    %v804 = vmul.f32 %v517, %v747
    %v805 = vmul.f32 %v518, %v747
    %v806 = vmul.f32 %v519, %v747
    %v807 = vmul.f32 %v520, %v747
    %v808 = vmul.f32 %v521, %v747
    %v809 = vmul.f32 %v522, %v747
    %v810 = vmul.f32 %v523, %v747
    %v811 = vmul.f32 %v524, %v747
    %v812 = vadd.f32 %v680, %v748
    %v813 = vadd.f32 %v681, %v749
    %v814 = vadd.f32 %v682, %v750
    %v815 = vadd.f32 %v683, %v751
    %v816 = vadd.f32 %v684, %v752
    %v817 = vadd.f32 %v685, %v753
    %v818 = vadd.f32 %v686, %v754
    %v819 = vadd.f32 %v687, %v755
    %v820 = vadd.f32 %v688, %v756
    %v821 = vadd.f32 %v689, %v757
    %v822 = vadd.f32 %v690, %v758
    %v823 = vadd.f32 %v691, %v759
    %v824 = vadd.f32 %v692, %v760
    %v825 = vadd.f32 %v693, %v761
    %v826 = vadd.f32 %v694, %v762
    %v827 = vadd.f32 %v695, %v763
    %v828 = vadd.f32 %v696, %v764
    %v829 = vadd.f32 %v697, %v765
    %v830 = vadd.f32 %v698, %v766
    %v831 = vadd.f32 %v699, %v767
    %v832 = vadd.f32 %v700, %v768
    %v833 = vadd.f32 %v701, %v769
    %v834 = vadd.f32 %v702, %v770
    %v835 = vadd.f32 %v703, %v771
    %v836 = vadd.f32 %v704, %v772
    %v837 = vadd.f32 %v705, %v773
    %v838 = vadd.f32 %v706, %v774
    %v839 = vadd.f32 %v707, %v775
    %v840 = vadd.f32 %v708, %v776
    %v841 = vadd.f32 %v709, %v777
    %v842 = vadd.f32 %v710, %v778
    %v843 = vadd.f32 %v711, %v779
    %v844 = vadd.f32 %v712, %v780
    %v845 = vadd.f32 %v713, %v781
    %v846 = vadd.f32 %v714, %v782
    %v847 = vadd.f32 %v715, %v783
    %v848 = vadd.f32 %v716, %v784
    %v849 = vadd.f32 %v717, %v785
    %v850 = vadd.f32 %v718, %v786
    %v851 = vadd.f32 %v719, %v787
    %v852 = vadd.f32 %v720, %v788
    %v853 = vadd.f32 %v721, %v789
    %v854 = vadd.f32 %v722, %v790
    %v855 = vadd.f32 %v723, %v791
    %v856 = vadd.f32 %v724, %v792
    %v857 = vadd.f32 %v725, %v793
    %v858 = vadd.f32 %v726, %v794
    %v859 = vadd.f32 %v727, %v795
    %v860 = vadd.f32 %v728, %v796
    %v861 = vadd.f32 %v729, %v797
    %v862 = vadd.f32 %v730, %v798
    %v863 = vadd.f32 %v731, %v799
    %v864 = vadd.f32 %v732, %v800
    %v865 = vadd.f32 %v733, %v801
    %v866 = vadd.f32 %v734, %v802
    %v867 = vadd.f32 %v735, %v803
    %v868 = vadd.f32 %v736, %v804
    %v869 = vadd.f32 %v737, %v805
    %v870 = vadd.f32 %v738, %v806
    %v871 = vadd.f32 %v739, %v807
    %v872 = vadd.f32 %v740, %v808
    %v873 = vadd.f32 %v741, %v809
    %v874 = vadd.f32 %v742, %v810
    %v875 = vadd.f32 %v743, %v811
    %v876 = vlaneseq
    %v877 = vshrl.u32 %v876, 7
    %v878 = vsub.s32 0, %v877
    %v879 = vrot.slane %v532, %v878
    %v880 = vmul.f32 %v240, %v879
    %v881 = vmul.f32 %v241, %v879
    %v882 = vmul.f32 %v242, %v879
    %v883 = vmul.f32 %v243, %v879
    %v884 = vmul.f32 %v244, %v879
    %v885 = vmul.f32 %v245, %v879
    %v886 = vmul.f32 %v246, %v879
    %v887 = vmul.f32 %v247, %v879
    %v888 = vmul.f32 %v248, %v879
    %v889 = vmul.f32 %v249, %v879
    %v890 = vmul.f32 %v250, %v879
    %v891 = vmul.f32 %v251, %v879
    %v892 = vmul.f32 %v252, %v879
    %v893 = vmul.f32 %v253, %v879
    %v894 = vmul.f32 %v254, %v879
    %v895 = vmul.f32 %v255, %v879
    %v896 = vmul.f32 %v256, %v879
    %v897 = vmul.f32 %v257, %v879
    %v898 = vmul.f32 %v258, %v879
    %v899 = vmul.f32 %v259, %v879
    %v900 = vmul.f32 %v260, %v879
    %v901 = vmul.f32 %v261, %v879
    %v902 = vmul.f32 %v262, %v879
    %v903 = vmul.f32 %v263, %v879
    %v904 = vmul.f32 %v264, %v879
    %v905 = vmul.f32 %v265, %v879
    %v906 = vmul.f32 %v266, %v879
    %v907 = vmul.f32 %v267, %v879
    %v908 = vmul.f32 %v268, %v879
    %v909 = vmul.f32 %v269, %v879
    %v910 = vmul.f32 %v270, %v879
    %v911 = vmul.f32 %v271, %v879
    %v912 = vmul.f32 %v276, %v879
    %v913 = vmul.f32 %v277, %v879
    %v914 = vmul.f32 %v278, %v879
    %v915 = vmul.f32 %v279, %v879
    %v916 = vmul.f32 %v280, %v879
    %v917 = vmul.f32 %v281, %v879
    %v918 = vmul.f32 %v282, %v879
    %v919 = vmul.f32 %v283, %v879
    %v920 = vmul.f32 %v284, %v879
    %v921 = vmul.f32 %v285, %v879
    %v922 = vmul.f32 %v286, %v879
    %v923 = vmul.f32 %v287, %v879
    %v924 = vmul.f32 %v288, %v879
    %v925 = vmul.f32 %v289, %v879
    %v926 = vmul.f32 %v290, %v879
    %v927 = vmul.f32 %v291, %v879
    %v928 = vmul.f32 %v292, %v879
    %v929 = vmul.f32 %v293, %v879
    %v930 = vmul.f32 %v294, %v879
    %v931 = vmul.f32 %v295, %v879
    %v932 = vmul.f32 %v296, %v879
    %v933 = vmul.f32 %v297, %v879
    %v934 = vmul.f32 %v298, %v879
    %v935 = vmul.f32 %v299, %v879
    %v936 = vmul.f32 %v300, %v879
    %v937 = vmul.f32 %v301, %v879
    %v938 = vmul.f32 %v302, %v879
    %v939 = vmul.f32 %v303, %v879
    %v940 = vmul.f32 %v304, %v879
    %v941 = vmul.f32 %v305, %v879
    %v942 = vmul.f32 %v306, %v879
    %v943 = vmul.f32 %v307, %v879
    %v944 = vlaneseq
    %v945 = vshrl.u32 %v944, 7
    %v946 = vsub.s32 0, %v945
    %v947 = vrot.slane %v533, %v946
    %v948 = vmul.f32 %v18, %v947
    %v949 = vmul.f32 %v19, %v947
    %v950 = vmul.f32 %v20, %v947
    %v951 = vmul.f32 %v21, %v947
    %v952 = vmul.f32 %v22, %v947
    %v953 = vmul.f32 %v23, %v947
    %v954 = vmul.f32 %v24, %v947
    %v955 = vmul.f32 %v25, %v947
    %v956 = vmul.f32 %v26, %v947
    %v957 = vmul.f32 %v27, %v947
    %v958 = vmul.f32 %v28, %v947
    %v959 = vmul.f32 %v29, %v947
    %v960 = vmul.f32 %v30, %v947
    %v961 = vmul.f32 %v31, %v947
    %v962 = vmul.f32 %v32, %v947
    %v963 = vmul.f32 %v33, %v947
    %v964 = vmul.f32 %v34, %v947
    %v965 = vmul.f32 %v35, %v947
    %v966 = vmul.f32 %v36, %v947
    %v967 = vmul.f32 %v37, %v947
    %v968 = vmul.f32 %v38, %v947
    %v969 = vmul.f32 %v39, %v947
    %v970 = vmul.f32 %v40, %v947
    %v971 = vmul.f32 %v41, %v947
    %v972 = vmul.f32 %v42, %v947
    %v973 = vmul.f32 %v43, %v947
    %v974 = vmul.f32 %v44, %v947
    %v975 = vmul.f32 %v45, %v947
    %v976 = vmul.f32 %v46, %v947
    %v977 = vmul.f32 %v47, %v947
    %v978 = vmul.f32 %v48, %v947
    %v979 = vmul.f32 %v49, %v947
    %v980 = vmul.f32 %v54, %v947
    %v981 = vmul.f32 %v55, %v947
    %v982 = vmul.f32 %v56, %v947
    %v983 = vmul.f32 %v57, %v947
    %v984 = vmul.f32 %v58, %v947
    %v985 = vmul.f32 %v59, %v947
    %v986 = vmul.f32 %v60, %v947
    %v987 = vmul.f32 %v61, %v947
    %v988 = vmul.f32 %v62, %v947
    %v989 = vmul.f32 %v63, %v947
    %v990 = vmul.f32 %v64, %v947
    %v991 = vmul.f32 %v65, %v947
    %v992 = vmul.f32 %v66, %v947
    %v993 = vmul.f32 %v67, %v947
    %v994 = vmul.f32 %v68, %v947
    %v995 = vmul.f32 %v69, %v947
    %v996 = vmul.f32 %v70, %v947
    %v997 = vmul.f32 %v71, %v947
    %v998 = vmul.f32 %v72, %v947
    %v999 = vmul.f32 %v73, %v947
    %v1000 = vmul.f32 %v74, %v947
    %v1001 = vmul.f32 %v75, %v947
    %v1002 = vmul.f32 %v76, %v947
    %v1003 = vmul.f32 %v77, %v947
    %v1004 = vmul.f32 %v78, %v947
    %v1005 = vmul.f32 %v79, %v947
    %v1006 = vmul.f32 %v80, %v947
    %v1007 = vmul.f32 %v81, %v947
    %v1008 = vmul.f32 %v82, %v947
    %v1009 = vmul.f32 %v83, %v947
    %v1010 = vmul.f32 %v84, %v947
    %v1011 = vmul.f32 %v85, %v947
    %v1012 = vadd.f32 %v880, %v948
    %v1013 = vadd.f32 %v881, %v949
    %v1014 = vadd.f32 %v882, %v950
    %v1015 = vadd.f32 %v883, %v951
    %v1016 = vadd.f32 %v884, %v952
    %v1017 = vadd.f32 %v885, %v953
    %v1018 = vadd.f32 %v886, %v954
    %v1019 = vadd.f32 %v887, %v955
    %v1020 = vadd.f32 %v888, %v956
    %v1021 = vadd.f32 %v889, %v957
    %v1022 = vadd.f32 %v890, %v958
    %v1023 = vadd.f32 %v891, %v959
    %v1024 = vadd.f32 %v892, %v960
    %v1025 = vadd.f32 %v893, %v961
    %v1026 = vadd.f32 %v894, %v962
    %v1027 = vadd.f32 %v895, %v963
    %v1028 = vadd.f32 %v896, %v964
    %v1029 = vadd.f32 %v897, %v965
    %v1030 = vadd.f32 %v898, %v966
    %v1031 = vadd.f32 %v899, %v967
    %v1032 = vadd.f32 %v900, %v968
    %v1033 = vadd.f32 %v901, %v969
    %v1034 = vadd.f32 %v902, %v970
    %v1035 = vadd.f32 %v903, %v971
    %v1036 = vadd.f32 %v904, %v972
    %v1037 = vadd.f32 %v905, %v973
    %v1038 = vadd.f32 %v906, %v974
    %v1039 = vadd.f32 %v907, %v975
    %v1040 = vadd.f32 %v908, %v976
    %v1041 = vadd.f32 %v909, %v977
    %v1042 = vadd.f32 %v910, %v978
    %v1043 = vadd.f32 %v911, %v979
    %v1044 = vadd.f32 %v912, %v980
    %v1045 = vadd.f32 %v913, %v981
    %v1046 = vadd.f32 %v914, %v982
    %v1047 = vadd.f32 %v915, %v983
    %v1048 = vadd.f32 %v916, %v984
    %v1049 = vadd.f32 %v917, %v985
    %v1050 = vadd.f32 %v918, %v986
    %v1051 = vadd.f32 %v919, %v987
    %v1052 = vadd.f32 %v920, %v988
    %v1053 = vadd.f32 %v921, %v989
    %v1054 = vadd.f32 %v922, %v990
    %v1055 = vadd.f32 %v923, %v991
    %v1056 = vadd.f32 %v924, %v992
    %v1057 = vadd.f32 %v925, %v993
    %v1058 = vadd.f32 %v926, %v994
    %v1059 = vadd.f32 %v927, %v995
    %v1060 = vadd.f32 %v928, %v996
    %v1061 = vadd.f32 %v929, %v997
    %v1062 = vadd.f32 %v930, %v998
    %v1063 = vadd.f32 %v931, %v999
    %v1064 = vadd.f32 %v932, %v1000
    %v1065 = vadd.f32 %v933, %v1001
    %v1066 = vadd.f32 %v934, %v1002
    %v1067 = vadd.f32 %v935, %v1003
    %v1068 = vadd.f32 %v936, %v1004
    %v1069 = vadd.f32 %v937, %v1005
    %v1070 = vadd.f32 %v938, %v1006
    %v1071 = vadd.f32 %v939, %v1007
    %v1072 = vadd.f32 %v940, %v1008
    %v1073 = vadd.f32 %v941, %v1009
    %v1074 = vadd.f32 %v942, %v1010
    %v1075 = vadd.f32 %v943, %v1011
    %v1076 = vlaneseq
    %v1077 = vshrl.u32 %v1076, 7
    %v1078 = vsub.s32 0, %v1077
    %v1079 = vrot.slane %v534, %v1078
    %v1080 = vmul.f32 %v459, %v1079
    %v1081 = vmul.f32 %v460, %v1079
    %v1082 = vmul.f32 %v461, %v1079
    %v1083 = vmul.f32 %v462, %v1079
    %v1084 = vmul.f32 %v463, %v1079
    %v1085 = vmul.f32 %v464, %v1079
    %v1086 = vmul.f32 %v465, %v1079
    %v1087 = vmul.f32 %v466, %v1079
    %v1088 = vmul.f32 %v467, %v1079
    %v1089 = vmul.f32 %v468, %v1079
    %v1090 = vmul.f32 %v469, %v1079
    %v1091 = vmul.f32 %v470, %v1079
    %v1092 = vmul.f32 %v471, %v1079
    %v1093 = vmul.f32 %v472, %v1079
    %v1094 = vmul.f32 %v473, %v1079
    %v1095 = vmul.f32 %v474, %v1079
    %v1096 = vmul.f32 %v475, %v1079
    %v1097 = vmul.f32 %v476, %v1079
    %v1098 = vmul.f32 %v477, %v1079
    %v1099 = vmul.f32 %v478, %v1079
    %v1100 = vmul.f32 %v479, %v1079
    %v1101 = vmul.f32 %v480, %v1079
    %v1102 = vmul.f32 %v481, %v1079
    %v1103 = vmul.f32 %v482, %v1079
    %v1104 = vmul.f32 %v483, %v1079
    %v1105 = vmul.f32 %v484, %v1079
    %v1106 = vmul.f32 %v485, %v1079
    %v1107 = vmul.f32 %v486, %v1079
    %v1108 = vmul.f32 %v487, %v1079
    %v1109 = vmul.f32 %v488, %v1079
    %v1110 = vmul.f32 %v489, %v1079
    %v1111 = vmul.f32 %v490, %v1079
    %v1112 = vmul.f32 %v495, %v1079
    %v1113 = vmul.f32 %v496, %v1079
    %v1114 = vmul.f32 %v497, %v1079
    %v1115 = vmul.f32 %v498, %v1079
    %v1116 = vmul.f32 %v499, %v1079
    %v1117 = vmul.f32 %v500, %v1079
    %v1118 = vmul.f32 %v501, %v1079
    %v1119 = vmul.f32 %v502, %v1079
    %v1120 = vmul.f32 %v503, %v1079
    %v1121 = vmul.f32 %v504, %v1079
    %v1122 = vmul.f32 %v505, %v1079
    %v1123 = vmul.f32 %v506, %v1079
    %v1124 = vmul.f32 %v507, %v1079
    %v1125 = vmul.f32 %v508, %v1079
    %v1126 = vmul.f32 %v509, %v1079
    %v1127 = vmul.f32 %v510, %v1079
    %v1128 = vmul.f32 %v511, %v1079
    %v1129 = vmul.f32 %v512, %v1079
    %v1130 = vmul.f32 %v513, %v1079
    %v1131 = vmul.f32 %v514, %v1079
    %v1132 = vmul.f32 %v515, %v1079
    %v1133 = vmul.f32 %v516, %v1079
    %v1134 = vmul.f32 %v517, %v1079
    %v1135 = vmul.f32 %v518, %v1079
    %v1136 = vmul.f32 %v519, %v1079
    %v1137 = vmul.f32 %v520, %v1079
    %v1138 = vmul.f32 %v521, %v1079
    %v1139 = vmul.f32 %v522, %v1079
    %v1140 = vmul.f32 %v523, %v1079
    %v1141 = vmul.f32 %v524, %v1079
    %v1142 = vmul.f32 %v525, %v1079
    %v1143 = vmul.f32 %v526, %v1079
    %v1144 = vadd.f32 %v1012, %v1080
    %v1145 = vadd.f32 %v1013, %v1081
    %v1146 = vadd.f32 %v1014, %v1082
    %v1147 = vadd.f32 %v1015, %v1083
    %v1148 = vadd.f32 %v1016, %v1084
    %v1149 = vadd.f32 %v1017, %v1085
    %v1150 = vadd.f32 %v1018, %v1086
    %v1151 = vadd.f32 %v1019, %v1087
    %v1152 = vadd.f32 %v1020, %v1088
    %v1153 = vadd.f32 %v1021, %v1089
    %v1154 = vadd.f32 %v1022, %v1090
    %v1155 = vadd.f32 %v1023, %v1091
    %v1156 = vadd.f32 %v1024, %v1092
    %v1157 = vadd.f32 %v1025, %v1093
    %v1158 = vadd.f32 %v1026, %v1094
    %v1159 = vadd.f32 %v1027, %v1095
    %v1160 = vadd.f32 %v1028, %v1096
    %v1161 = vadd.f32 %v1029, %v1097
    %v1162 = vadd.f32 %v1030, %v1098
    %v1163 = vadd.f32 %v1031, %v1099
    %v1164 = vadd.f32 %v1032, %v1100
    %v1165 = vadd.f32 %v1033, %v1101
    %v1166 = vadd.f32 %v1034, %v1102
    %v1167 = vadd.f32 %v1035, %v1103
    %v1168 = vadd.f32 %v1036, %v1104
    %v1169 = vadd.f32 %v1037, %v1105
    %v1170 = vadd.f32 %v1038, %v1106
    %v1171 = vadd.f32 %v1039, %v1107
    %v1172 = vadd.f32 %v1040, %v1108
    %v1173 = vadd.f32 %v1041, %v1109
    %v1174 = vadd.f32 %v1042, %v1110
    %v1175 = vadd.f32 %v1043, %v1111
    %v1176 = vadd.f32 %v1044, %v1112
    %v1177 = vadd.f32 %v1045, %v1113
    %v1178 = vadd.f32 %v1046, %v1114
    %v1179 = vadd.f32 %v1047, %v1115
    %v1180 = vadd.f32 %v1048, %v1116
    %v1181 = vadd.f32 %v1049, %v1117
    %v1182 = vadd.f32 %v1050, %v1118
    %v1183 = vadd.f32 %v1051, %v1119
    %v1184 = vadd.f32 %v1052, %v1120
    %v1185 = vadd.f32 %v1053, %v1121
    %v1186 = vadd.f32 %v1054, %v1122
    %v1187 = vadd.f32 %v1055, %v1123
    %v1188 = vadd.f32 %v1056, %v1124
    %v1189 = vadd.f32 %v1057, %v1125
    %v1190 = vadd.f32 %v1058, %v1126
    %v1191 = vadd.f32 %v1059, %v1127
    %v1192 = vadd.f32 %v1060, %v1128
    %v1193 = vadd.f32 %v1061, %v1129
    %v1194 = vadd.f32 %v1062, %v1130
    %v1195 = vadd.f32 %v1063, %v1131
    %v1196 = vadd.f32 %v1064, %v1132
    %v1197 = vadd.f32 %v1065, %v1133
    %v1198 = vadd.f32 %v1066, %v1134
    %v1199 = vadd.f32 %v1067, %v1135
    %v1200 = vadd.f32 %v1068, %v1136
    %v1201 = vadd.f32 %v1069, %v1137
    %v1202 = vadd.f32 %v1070, %v1138
    %v1203 = vadd.f32 %v1071, %v1139
    %v1204 = vadd.f32 %v1072, %v1140
    %v1205 = vadd.f32 %v1073, %v1141
    %v1206 = vadd.f32 %v1074, %v1142
    %v1207 = vadd.f32 %v1075, %v1143
    %v1208 = vadd.f32 %v812, %v1144
    %v1209 = vadd.f32 %v813, %v1145
    %v1210 = vadd.f32 %v814, %v1146
    %v1211 = vadd.f32 %v815, %v1147
    %v1212 = vadd.f32 %v816, %v1148
    %v1213 = vadd.f32 %v817, %v1149
    %v1214 = vadd.f32 %v818, %v1150
    %v1215 = vadd.f32 %v819, %v1151
    %v1216 = vadd.f32 %v820, %v1152
    %v1217 = vadd.f32 %v821, %v1153
    %v1218 = vadd.f32 %v822, %v1154
    %v1219 = vadd.f32 %v823, %v1155
    %v1220 = vadd.f32 %v824, %v1156
    %v1221 = vadd.f32 %v825, %v1157
    %v1222 = vadd.f32 %v826, %v1158
    %v1223 = vadd.f32 %v827, %v1159
    %v1224 = vadd.f32 %v828, %v1160
    %v1225 = vadd.f32 %v829, %v1161
    %v1226 = vadd.f32 %v830, %v1162
    %v1227 = vadd.f32 %v831, %v1163
    %v1228 = vadd.f32 %v832, %v1164
    %v1229 = vadd.f32 %v833, %v1165
    %v1230 = vadd.f32 %v834, %v1166
    %v1231 = vadd.f32 %v835, %v1167
    %v1232 = vadd.f32 %v836, %v1168
    %v1233 = vadd.f32 %v837, %v1169
    %v1234 = vadd.f32 %v838, %v1170
    %v1235 = vadd.f32 %v839, %v1171
    %v1236 = vadd.f32 %v840, %v1172
    %v1237 = vadd.f32 %v841, %v1173
    %v1238 = vadd.f32 %v842, %v1174
    %v1239 = vadd.f32 %v843, %v1175
    %v1240 = vadd.f32 %v844, %v1176
    %v1241 = vadd.f32 %v845, %v1177
    %v1242 = vadd.f32 %v846, %v1178
    %v1243 = vadd.f32 %v847, %v1179
    %v1244 = vadd.f32 %v848, %v1180
    %v1245 = vadd.f32 %v849, %v1181
    %v1246 = vadd.f32 %v850, %v1182
    %v1247 = vadd.f32 %v851, %v1183
    %v1248 = vadd.f32 %v852, %v1184
    %v1249 = vadd.f32 %v853, %v1185
    %v1250 = vadd.f32 %v854, %v1186
    %v1251 = vadd.f32 %v855, %v1187
    %v1252 = vadd.f32 %v856, %v1188
    %v1253 = vadd.f32 %v857, %v1189
    %v1254 = vadd.f32 %v858, %v1190
    %v1255 = vadd.f32 %v859, %v1191
    %v1256 = vadd.f32 %v860, %v1192
    %v1257 = vadd.f32 %v861, %v1193
    %v1258 = vadd.f32 %v862, %v1194
    %v1259 = vadd.f32 %v863, %v1195
    %v1260 = vadd.f32 %v864, %v1196
    %v1261 = vadd.f32 %v865, %v1197
    %v1262 = vadd.f32 %v866, %v1198
    %v1263 = vadd.f32 %v867, %v1199
    %v1264 = vadd.f32 %v868, %v1200
    %v1265 = vadd.f32 %v869, %v1201
    %v1266 = vadd.f32 %v870, %v1202
    %v1267 = vadd.f32 %v871, %v1203
    %v1268 = vadd.f32 %v872, %v1204
    %v1269 = vadd.f32 %v873, %v1205
    %v1270 = vadd.f32 %v874, %v1206
    %v1271 = vadd.f32 %v875, %v1207
    %v1272 = vlaneseq
    %v1273 = vshrl.u32 %v1272, 7
    %v1274 = vsub.s32 0, %v1273
    %v1275 = vrot.slane %v535, %v1274
    %v1276 = vmul.f32 %v242, %v1275
    %v1277 = vmul.f32 %v243, %v1275
    %v1278 = vmul.f32 %v244, %v1275
    %v1279 = vmul.f32 %v245, %v1275
    %v1280 = vmul.f32 %v246, %v1275
    %v1281 = vmul.f32 %v247, %v1275
    %v1282 = vmul.f32 %v248, %v1275
    %v1283 = vmul.f32 %v249, %v1275
    %v1284 = vmul.f32 %v250, %v1275
    %v1285 = vmul.f32 %v251, %v1275
    %v1286 = vmul.f32 %v252, %v1275
    %v1287 = vmul.f32 %v253, %v1275
    %v1288 = vmul.f32 %v254, %v1275
    %v1289 = vmul.f32 %v255, %v1275
    %v1290 = vmul.f32 %v256, %v1275
    %v1291 = vmul.f32 %v257, %v1275
    %v1292 = vmul.f32 %v258, %v1275
    %v1293 = vmul.f32 %v259, %v1275
    %v1294 = vmul.f32 %v260, %v1275
    %v1295 = vmul.f32 %v261, %v1275
    %v1296 = vmul.f32 %v262, %v1275
    %v1297 = vmul.f32 %v263, %v1275
    %v1298 = vmul.f32 %v264, %v1275
    %v1299 = vmul.f32 %v265, %v1275
    %v1300 = vmul.f32 %v266, %v1275
    %v1301 = vmul.f32 %v267, %v1275
    %v1302 = vmul.f32 %v268, %v1275
    %v1303 = vmul.f32 %v269, %v1275
    %v1304 = vmul.f32 %v270, %v1275
    %v1305 = vmul.f32 %v271, %v1275
    %v1306 = vmul.f32 %v272, %v1275
    %v1307 = vmul.f32 %v273, %v1275
    %v1308 = vmul.f32 %v278, %v1275
    %v1309 = vmul.f32 %v279, %v1275
    %v1310 = vmul.f32 %v280, %v1275
    %v1311 = vmul.f32 %v281, %v1275
    %v1312 = vmul.f32 %v282, %v1275
    %v1313 = vmul.f32 %v283, %v1275
    %v1314 = vmul.f32 %v284, %v1275
    %v1315 = vmul.f32 %v285, %v1275
    %v1316 = vmul.f32 %v286, %v1275
    %v1317 = vmul.f32 %v287, %v1275
    %v1318 = vmul.f32 %v288, %v1275
    %v1319 = vmul.f32 %v289, %v1275
    %v1320 = vmul.f32 %v290, %v1275
    %v1321 = vmul.f32 %v291, %v1275
    %v1322 = vmul.f32 %v292, %v1275
    %v1323 = vmul.f32 %v293, %v1275
    %v1324 = vmul.f32 %v294, %v1275
    %v1325 = vmul.f32 %v295, %v1275
    %v1326 = vmul.f32 %v296, %v1275
    %v1327 = vmul.f32 %v297, %v1275
    %v1328 = vmul.f32 %v298, %v1275
    %v1329 = vmul.f32 %v299, %v1275
    %v1330 = vmul.f32 %v300, %v1275
    %v1331 = vmul.f32 %v301, %v1275
    %v1332 = vmul.f32 %v302, %v1275
    %v1333 = vmul.f32 %v303, %v1275
    %v1334 = vmul.f32 %v304, %v1275
    %v1335 = vmul.f32 %v305, %v1275
    %v1336 = vmul.f32 %v306, %v1275
    %v1337 = vmul.f32 %v307, %v1275
    %v1338 = vmul.f32 %v308, %v1275
    %v1339 = vmul.f32 %v309, %v1275
    %v1340 = vlaneseq
    %v1341 = vshrl.u32 %v1340, 7
    %v1342 = vsub.s32 0, %v1341
    %v1343 = vrot.slane %v536, %v1342
    %v1344 = vmul.f32 %v20, %v1343
    %v1345 = vmul.f32 %v21, %v1343
    %v1346 = vmul.f32 %v22, %v1343
    %v1347 = vmul.f32 %v23, %v1343
    %v1348 = vmul.f32 %v24, %v1343
    %v1349 = vmul.f32 %v25, %v1343
    %v1350 = vmul.f32 %v26, %v1343
    %v1351 = vmul.f32 %v27, %v1343
    %v1352 = vmul.f32 %v28, %v1343
    %v1353 = vmul.f32 %v29, %v1343
    %v1354 = vmul.f32 %v30, %v1343
    %v1355 = vmul.f32 %v31, %v1343
    %v1356 = vmul.f32 %v32, %v1343
    %v1357 = vmul.f32 %v33, %v1343
    %v1358 = vmul.f32 %v34, %v1343
    %v1359 = vmul.f32 %v35, %v1343
    %v1360 = vmul.f32 %v36, %v1343
    %v1361 = vmul.f32 %v37, %v1343
    %v1362 = vmul.f32 %v38, %v1343
    %v1363 = vmul.f32 %v39, %v1343
    %v1364 = vmul.f32 %v40, %v1343
    %v1365 = vmul.f32 %v41, %v1343
    %v1366 = vmul.f32 %v42, %v1343
    %v1367 = vmul.f32 %v43, %v1343
    %v1368 = vmul.f32 %v44, %v1343
    %v1369 = vmul.f32 %v45, %v1343
    %v1370 = vmul.f32 %v46, %v1343
    %v1371 = vmul.f32 %v47, %v1343
    %v1372 = vmul.f32 %v48, %v1343
    %v1373 = vmul.f32 %v49, %v1343
    %v1374 = vmul.f32 %v50, %v1343
    %v1375 = vmul.f32 %v51, %v1343
    %v1376 = vmul.f32 %v56, %v1343
    %v1377 = vmul.f32 %v57, %v1343
    %v1378 = vmul.f32 %v58, %v1343
    %v1379 = vmul.f32 %v59, %v1343
    %v1380 = vmul.f32 %v60, %v1343
    %v1381 = vmul.f32 %v61, %v1343
    %v1382 = vmul.f32 %v62, %v1343
    %v1383 = vmul.f32 %v63, %v1343
    %v1384 = vmul.f32 %v64, %v1343
    %v1385 = vmul.f32 %v65, %v1343
    %v1386 = vmul.f32 %v66, %v1343
    %v1387 = vmul.f32 %v67, %v1343
    %v1388 = vmul.f32 %v68, %v1343
    %v1389 = vmul.f32 %v69, %v1343
    %v1390 = vmul.f32 %v70, %v1343
    %v1391 = vmul.f32 %v71, %v1343
    %v1392 = vmul.f32 %v72, %v1343
    %v1393 = vmul.f32 %v73, %v1343
    %v1394 = vmul.f32 %v74, %v1343
    %v1395 = vmul.f32 %v75, %v1343
    %v1396 = vmul.f32 %v76, %v1343
    %v1397 = vmul.f32 %v77, %v1343
    %v1398 = vmul.f32 %v78, %v1343
    %v1399 = vmul.f32 %v79, %v1343
    %v1400 = vmul.f32 %v80, %v1343
    %v1401 = vmul.f32 %v81, %v1343
    %v1402 = vmul.f32 %v82, %v1343
    %v1403 = vmul.f32 %v83, %v1343
    %v1404 = vmul.f32 %v84, %v1343
    %v1405 = vmul.f32 %v85, %v1343
    %v1406 = vmul.f32 %v86, %v1343
    %v1407 = vmul.f32 %v87, %v1343
    %v1408 = vadd.f32 %v1276, %v1344
    %v1409 = vadd.f32 %v1277, %v1345
    %v1410 = vadd.f32 %v1278, %v1346
    %v1411 = vadd.f32 %v1279, %v1347
    %v1412 = vadd.f32 %v1280, %v1348
    %v1413 = vadd.f32 %v1281, %v1349
    %v1414 = vadd.f32 %v1282, %v1350
    %v1415 = vadd.f32 %v1283, %v1351
    %v1416 = vadd.f32 %v1284, %v1352
    %v1417 = vadd.f32 %v1285, %v1353
    %v1418 = vadd.f32 %v1286, %v1354
    %v1419 = vadd.f32 %v1287, %v1355
    %v1420 = vadd.f32 %v1288, %v1356
    %v1421 = vadd.f32 %v1289, %v1357
    %v1422 = vadd.f32 %v1290, %v1358
    %v1423 = vadd.f32 %v1291, %v1359
    %v1424 = vadd.f32 %v1292, %v1360
    %v1425 = vadd.f32 %v1293, %v1361
    %v1426 = vadd.f32 %v1294, %v1362
    %v1427 = vadd.f32 %v1295, %v1363
    %v1428 = vadd.f32 %v1296, %v1364
    %v1429 = vadd.f32 %v1297, %v1365
    %v1430 = vadd.f32 %v1298, %v1366
    %v1431 = vadd.f32 %v1299, %v1367
    %v1432 = vadd.f32 %v1300, %v1368
    %v1433 = vadd.f32 %v1301, %v1369
    %v1434 = vadd.f32 %v1302, %v1370
    %v1435 = vadd.f32 %v1303, %v1371
    %v1436 = vadd.f32 %v1304, %v1372
    %v1437 = vadd.f32 %v1305, %v1373
    %v1438 = vadd.f32 %v1306, %v1374
    %v1439 = vadd.f32 %v1307, %v1375
    %v1440 = vadd.f32 %v1308, %v1376
    %v1441 = vadd.f32 %v1309, %v1377
    %v1442 = vadd.f32 %v1310, %v1378
    %v1443 = vadd.f32 %v1311, %v1379
    %v1444 = vadd.f32 %v1312, %v1380
    %v1445 = vadd.f32 %v1313, %v1381
    %v1446 = vadd.f32 %v1314, %v1382
    %v1447 = vadd.f32 %v1315, %v1383
    %v1448 = vadd.f32 %v1316, %v1384
    %v1449 = vadd.f32 %v1317, %v1385
    %v1450 = vadd.f32 %v1318, %v1386
    %v1451 = vadd.f32 %v1319, %v1387
    %v1452 = vadd.f32 %v1320, %v1388
    %v1453 = vadd.f32 %v1321, %v1389
    %v1454 = vadd.f32 %v1322, %v1390
    %v1455 = vadd.f32 %v1323, %v1391
    %v1456 = vadd.f32 %v1324, %v1392
    %v1457 = vadd.f32 %v1325, %v1393
    %v1458 = vadd.f32 %v1326, %v1394
    %v1459 = vadd.f32 %v1327, %v1395
    %v1460 = vadd.f32 %v1328, %v1396
    %v1461 = vadd.f32 %v1329, %v1397
    %v1462 = vadd.f32 %v1330, %v1398
    %v1463 = vadd.f32 %v1331, %v1399
    %v1464 = vadd.f32 %v1332, %v1400
    %v1465 = vadd.f32 %v1333, %v1401
    %v1466 = vadd.f32 %v1334, %v1402
    %v1467 = vadd.f32 %v1335, %v1403
    %v1468 = vadd.f32 %v1336, %v1404
    %v1469 = vadd.f32 %v1337, %v1405
    %v1470 = vadd.f32 %v1338, %v1406
    %v1471 = vadd.f32 %v1339, %v1407
    %v1472 = vlaneseq
    %v1473 = vshrl.u32 %v1472, 7
    %v1474 = vsub.s32 0, %v1473
    %v1475 = vrot.slane %v537, %v1474
    %v1476 = vmul.f32 %v461, %v1475
    %v1477 = vmul.f32 %v462, %v1475
    %v1478 = vmul.f32 %v463, %v1475
    %v1479 = vmul.f32 %v464, %v1475
    %v1480 = vmul.f32 %v465, %v1475
    %v1481 = vmul.f32 %v466, %v1475
    %v1482 = vmul.f32 %v467, %v1475
    %v1483 = vmul.f32 %v468, %v1475
    %v1484 = vmul.f32 %v469, %v1475
    %v1485 = vmul.f32 %v470, %v1475
    %v1486 = vmul.f32 %v471, %v1475
    %v1487 = vmul.f32 %v472, %v1475
    %v1488 = vmul.f32 %v473, %v1475
    %v1489 = vmul.f32 %v474, %v1475
    %v1490 = vmul.f32 %v475, %v1475
    %v1491 = vmul.f32 %v476, %v1475
    %v1492 = vmul.f32 %v477, %v1475
    %v1493 = vmul.f32 %v478, %v1475
    %v1494 = vmul.f32 %v479, %v1475
    %v1495 = vmul.f32 %v480, %v1475
    %v1496 = vmul.f32 %v481, %v1475
    %v1497 = vmul.f32 %v482, %v1475
    %v1498 = vmul.f32 %v483, %v1475
    %v1499 = vmul.f32 %v484, %v1475
    %v1500 = vmul.f32 %v485, %v1475
    %v1501 = vmul.f32 %v486, %v1475
    %v1502 = vmul.f32 %v487, %v1475
    %v1503 = vmul.f32 %v488, %v1475
    %v1504 = vmul.f32 %v489, %v1475
    %v1505 = vmul.f32 %v490, %v1475
    %v1506 = vmul.f32 %v491, %v1475
    %v1507 = vmul.f32 %v492, %v1475
    %v1508 = vmul.f32 %v497, %v1475
    %v1509 = vmul.f32 %v498, %v1475
    %v1510 = vmul.f32 %v499, %v1475
    %v1511 = vmul.f32 %v500, %v1475
    %v1512 = vmul.f32 %v501, %v1475
    %v1513 = vmul.f32 %v502, %v1475
    %v1514 = vmul.f32 %v503, %v1475
    %v1515 = vmul.f32 %v504, %v1475
    %v1516 = vmul.f32 %v505, %v1475
    %v1517 = vmul.f32 %v506, %v1475
    %v1518 = vmul.f32 %v507, %v1475
    %v1519 = vmul.f32 %v508, %v1475
    %v1520 = vmul.f32 %v509, %v1475
    %v1521 = vmul.f32 %v510, %v1475
    %v1522 = vmul.f32 %v511, %v1475
    %v1523 = vmul.f32 %v512, %v1475
    %v1524 = vmul.f32 %v513, %v1475
    %v1525 = vmul.f32 %v514, %v1475
    %v1526 = vmul.f32 %v515, %v1475
    %v1527 = vmul.f32 %v516, %v1475
    %v1528 = vmul.f32 %v517, %v1475
    %v1529 = vmul.f32 %v518, %v1475
    %v1530 = vmul.f32 %v519, %v1475
    %v1531 = vmul.f32 %v520, %v1475
    %v1532 = vmul.f32 %v521, %v1475
    %v1533 = vmul.f32 %v522, %v1475
    %v1534 = vmul.f32 %v523, %v1475
    %v1535 = vmul.f32 %v524, %v1475
    %v1536 = vmul.f32 %v525, %v1475
    %v1537 = vmul.f32 %v526, %v1475
    %v1538 = vmul.f32 %v527, %v1475
    %v1539 = vmul.f32 %v528, %v1475
    %v1540 = vadd.f32 %v1408, %v1476
    %v1541 = vadd.f32 %v1409, %v1477
    %v1542 = vadd.f32 %v1410, %v1478
    %v1543 = vadd.f32 %v1411, %v1479
    %v1544 = vadd.f32 %v1412, %v1480
    %v1545 = vadd.f32 %v1413, %v1481
    %v1546 = vadd.f32 %v1414, %v1482
    %v1547 = vadd.f32 %v1415, %v1483
    %v1548 = vadd.f32 %v1416, %v1484
    %v1549 = vadd.f32 %v1417, %v1485
    %v1550 = vadd.f32 %v1418, %v1486
    %v1551 = vadd.f32 %v1419, %v1487
    %v1552 = vadd.f32 %v1420, %v1488
    %v1553 = vadd.f32 %v1421, %v1489
    %v1554 = vadd.f32 %v1422, %v1490
    %v1555 = vadd.f32 %v1423, %v1491
    %v1556 = vadd.f32 %v1424, %v1492
    %v1557 = vadd.f32 %v1425, %v1493
    %v1558 = vadd.f32 %v1426, %v1494
    %v1559 = vadd.f32 %v1427, %v1495
    %v1560 = vadd.f32 %v1428, %v1496
    %v1561 = vadd.f32 %v1429, %v1497
    %v1562 = vadd.f32 %v1430, %v1498
    %v1563 = vadd.f32 %v1431, %v1499
    %v1564 = vadd.f32 %v1432, %v1500
    %v1565 = vadd.f32 %v1433, %v1501
    %v1566 = vadd.f32 %v1434, %v1502
    %v1567 = vadd.f32 %v1435, %v1503
    %v1568 = vadd.f32 %v1436, %v1504
    %v1569 = vadd.f32 %v1437, %v1505
    %v1570 = vadd.f32 %v1438, %v1506
    %v1571 = vadd.f32 %v1439, %v1507
    %v1572 = vadd.f32 %v1440, %v1508
    %v1573 = vadd.f32 %v1441, %v1509
    %v1574 = vadd.f32 %v1442, %v1510
    %v1575 = vadd.f32 %v1443, %v1511
    %v1576 = vadd.f32 %v1444, %v1512
    %v1577 = vadd.f32 %v1445, %v1513
    %v1578 = vadd.f32 %v1446, %v1514
    %v1579 = vadd.f32 %v1447, %v1515
    %v1580 = vadd.f32 %v1448, %v1516
    %v1581 = vadd.f32 %v1449, %v1517
    %v1582 = vadd.f32 %v1450, %v1518
    %v1583 = vadd.f32 %v1451, %v1519
    %v1584 = vadd.f32 %v1452, %v1520
    %v1585 = vadd.f32 %v1453, %v1521
    %v1586 = vadd.f32 %v1454, %v1522
    %v1587 = vadd.f32 %v1455, %v1523
    %v1588 = vadd.f32 %v1456, %v1524
    %v1589 = vadd.f32 %v1457, %v1525
    %v1590 = vadd.f32 %v1458, %v1526
    %v1591 = vadd.f32 %v1459, %v1527
    %v1592 = vadd.f32 %v1460, %v1528
    %v1593 = vadd.f32 %v1461, %v1529
    %v1594 = vadd.f32 %v1462, %v1530
    %v1595 = vadd.f32 %v1463, %v1531
    %v1596 = vadd.f32 %v1464, %v1532
    %v1597 = vadd.f32 %v1465, %v1533
    %v1598 = vadd.f32 %v1466, %v1534
    %v1599 = vadd.f32 %v1467, %v1535
    %v1600 = vadd.f32 %v1468, %v1536
    %v1601 = vadd.f32 %v1469, %v1537
    %v1602 = vadd.f32 %v1470, %v1538
    %v1603 = vadd.f32 %v1471, %v1539
    %v1604 = vadd.f32 %v1208, %v1540
    %v1605 = vadd.f32 %v1209, %v1541
    %v1606 = vadd.f32 %v1210, %v1542
    %v1607 = vadd.f32 %v1211, %v1543
    %v1608 = vadd.f32 %v1212, %v1544
    %v1609 = vadd.f32 %v1213, %v1545
    %v1610 = vadd.f32 %v1214, %v1546
    %v1611 = vadd.f32 %v1215, %v1547
    %v1612 = vadd.f32 %v1216, %v1548
    %v1613 = vadd.f32 %v1217, %v1549
    %v1614 = vadd.f32 %v1218, %v1550
    %v1615 = vadd.f32 %v1219, %v1551
    %v1616 = vadd.f32 %v1220, %v1552
    %v1617 = vadd.f32 %v1221, %v1553
    %v1618 = vadd.f32 %v1222, %v1554
    %v1619 = vadd.f32 %v1223, %v1555
    %v1620 = vadd.f32 %v1224, %v1556
    %v1621 = vadd.f32 %v1225, %v1557
    %v1622 = vadd.f32 %v1226, %v1558
    %v1623 = vadd.f32 %v1227, %v1559
    %v1624 = vadd.f32 %v1228, %v1560
    %v1625 = vadd.f32 %v1229, %v1561
    %v1626 = vadd.f32 %v1230, %v1562
    %v1627 = vadd.f32 %v1231, %v1563
    %v1628 = vadd.f32 %v1232, %v1564
    %v1629 = vadd.f32 %v1233, %v1565
    %v1630 = vadd.f32 %v1234, %v1566
    %v1631 = vadd.f32 %v1235, %v1567
    %v1632 = vadd.f32 %v1236, %v1568
    %v1633 = vadd.f32 %v1237, %v1569
    %v1634 = vadd.f32 %v1238, %v1570
    %v1635 = vadd.f32 %v1239, %v1571
    %v1636 = vadd.f32 %v1240, %v1572
    %v1637 = vadd.f32 %v1241, %v1573
    %v1638 = vadd.f32 %v1242, %v1574
    %v1639 = vadd.f32 %v1243, %v1575
    %v1640 = vadd.f32 %v1244, %v1576
    %v1641 = vadd.f32 %v1245, %v1577
    %v1642 = vadd.f32 %v1246, %v1578
    %v1643 = vadd.f32 %v1247, %v1579
    %v1644 = vadd.f32 %v1248, %v1580
    %v1645 = vadd.f32 %v1249, %v1581
    %v1646 = vadd.f32 %v1250, %v1582
    %v1647 = vadd.f32 %v1251, %v1583
    %v1648 = vadd.f32 %v1252, %v1584
    %v1649 = vadd.f32 %v1253, %v1585
    %v1650 = vadd.f32 %v1254, %v1586
    %v1651 = vadd.f32 %v1255, %v1587
    %v1652 = vadd.f32 %v1256, %v1588
    %v1653 = vadd.f32 %v1257, %v1589
    %v1654 = vadd.f32 %v1258, %v1590
    %v1655 = vadd.f32 %v1259, %v1591
    %v1656 = vadd.f32 %v1260, %v1592
    %v1657 = vadd.f32 %v1261, %v1593
    %v1658 = vadd.f32 %v1262, %v1594
    %v1659 = vadd.f32 %v1263, %v1595
    %v1660 = vadd.f32 %v1264, %v1596
    %v1661 = vadd.f32 %v1265, %v1597
    %v1662 = vadd.f32 %v1266, %v1598
    %v1663 = vadd.f32 %v1267, %v1599
    %v1664 = vadd.f32 %v1268, %v1600
    %v1665 = vadd.f32 %v1269, %v1601
    %v1666 = vadd.f32 %v1270, %v1602
    %v1667 = vadd.f32 %v1271, %v1603
    %v1668 = vlaneseq
    %v1669 = vshrl.u32 %v1668, 7
    %v1670 = vsub.s32 0, %v1669
    %v1671 = vrot.slane %v538, %v1670
    %v1672 = vadd.f32 %v1604, %v1671
    %v1673 = vadd.f32 %v1605, %v1671
    %v1674 = vadd.f32 %v1606, %v1671
    %v1675 = vadd.f32 %v1607, %v1671
    %v1676 = vadd.f32 %v1608, %v1671
    %v1677 = vadd.f32 %v1609, %v1671
    %v1678 = vadd.f32 %v1610, %v1671
    %v1679 = vadd.f32 %v1611, %v1671
    %v1680 = vadd.f32 %v1612, %v1671
    %v1681 = vadd.f32 %v1613, %v1671
    %v1682 = vadd.f32 %v1614, %v1671
    %v1683 = vadd.f32 %v1615, %v1671
    %v1684 = vadd.f32 %v1616, %v1671
    %v1685 = vadd.f32 %v1617, %v1671
    %v1686 = vadd.f32 %v1618, %v1671
    %v1687 = vadd.f32 %v1619, %v1671
    %v1688 = vadd.f32 %v1620, %v1671
    %v1689 = vadd.f32 %v1621, %v1671
    %v1690 = vadd.f32 %v1622, %v1671
    %v1691 = vadd.f32 %v1623, %v1671
    %v1692 = vadd.f32 %v1624, %v1671
    %v1693 = vadd.f32 %v1625, %v1671
    %v1694 = vadd.f32 %v1626, %v1671
    %v1695 = vadd.f32 %v1627, %v1671
    %v1696 = vadd.f32 %v1628, %v1671
    %v1697 = vadd.f32 %v1629, %v1671
    %v1698 = vadd.f32 %v1630, %v1671
    %v1699 = vadd.f32 %v1631, %v1671
    %v1700 = vadd.f32 %v1632, %v1671
    %v1701 = vadd.f32 %v1633, %v1671
    %v1702 = vadd.f32 %v1634, %v1671
    %v1703 = vadd.f32 %v1635, %v1671
    %v1704 = vadd.f32 %v1636, %v1671
    %v1705 = vadd.f32 %v1637, %v1671
    %v1706 = vadd.f32 %v1638, %v1671
    %v1707 = vadd.f32 %v1639, %v1671
    %v1708 = vadd.f32 %v1640, %v1671
    %v1709 = vadd.f32 %v1641, %v1671
    %v1710 = vadd.f32 %v1642, %v1671
    %v1711 = vadd.f32 %v1643, %v1671
    %v1712 = vadd.f32 %v1644, %v1671
    %v1713 = vadd.f32 %v1645, %v1671
    %v1714 = vadd.f32 %v1646, %v1671
    %v1715 = vadd.f32 %v1647, %v1671
    %v1716 = vadd.f32 %v1648, %v1671
    %v1717 = vadd.f32 %v1649, %v1671
    %v1718 = vadd.f32 %v1650, %v1671
    %v1719 = vadd.f32 %v1651, %v1671
    %v1720 = vadd.f32 %v1652, %v1671
    %v1721 = vadd.f32 %v1653, %v1671
    %v1722 = vadd.f32 %v1654, %v1671
    %v1723 = vadd.f32 %v1655, %v1671
    %v1724 = vadd.f32 %v1656, %v1671
    %v1725 = vadd.f32 %v1657, %v1671
    %v1726 = vadd.f32 %v1658, %v1671
    %v1727 = vadd.f32 %v1659, %v1671
    %v1728 = vadd.f32 %v1660, %v1671
    %v1729 = vadd.f32 %v1661, %v1671
    %v1730 = vadd.f32 %v1662, %v1671
    %v1731 = vadd.f32 %v1663, %v1671
    %v1732 = vadd.f32 %v1664, %v1671
    %v1733 = vadd.f32 %v1665, %v1671
    %v1734 = vadd.f32 %v1666, %v1671
    %v1735 = vadd.f32 %v1667, %v1671
    %v1736 = vmul.f32 %v1672, 0.5
    %v1737 = vmul.f32 %v1673, 0.5
    %v1738 = vmul.f32 %v1674, 0.5
    %v1739 = vmul.f32 %v1675, 0.5
    %v1740 = vmul.f32 %v1676, 0.5
    %v1741 = vmul.f32 %v1677, 0.5
    %v1742 = vmul.f32 %v1678, 0.5
    %v1743 = vmul.f32 %v1679, 0.5
    %v1744 = vmul.f32 %v1680, 0.5
    %v1745 = vmul.f32 %v1681, 0.5
    %v1746 = vmul.f32 %v1682, 0.5
    %v1747 = vmul.f32 %v1683, 0.5
    %v1748 = vmul.f32 %v1684, 0.5
    %v1749 = vmul.f32 %v1685, 0.5
    %v1750 = vmul.f32 %v1686, 0.5
    %v1751 = vmul.f32 %v1687, 0.5
    %v1752 = vmul.f32 %v1688, 0.5
    %v1753 = vmul.f32 %v1689, 0.5
    %v1754 = vmul.f32 %v1690, 0.5
    %v1755 = vmul.f32 %v1691, 0.5
    %v1756 = vmul.f32 %v1692, 0.5
    %v1757 = vmul.f32 %v1693, 0.5
    %v1758 = vmul.f32 %v1694, 0.5
    %v1759 = vmul.f32 %v1695, 0.5
    %v1760 = vmul.f32 %v1696, 0.5
    %v1761 = vmul.f32 %v1697, 0.5
    %v1762 = vmul.f32 %v1698, 0.5
    %v1763 = vmul.f32 %v1699, 0.5
    %v1764 = vmul.f32 %v1700, 0.5
    %v1765 = vmul.f32 %v1701, 0.5
    %v1766 = vmul.f32 %v1702, 0.5
    %v1767 = vmul.f32 %v1703, 0.5
    %v1768 = vmul.f32 %v1704, 0.5
    %v1769 = vmul.f32 %v1705, 0.5
    %v1770 = vmul.f32 %v1706, 0.5
    %v1771 = vmul.f32 %v1707, 0.5
    %v1772 = vmul.f32 %v1708, 0.5
    %v1773 = vmul.f32 %v1709, 0.5
    %v1774 = vmul.f32 %v1710, 0.5
    %v1775 = vmul.f32 %v1711, 0.5
    %v1776 = vmul.f32 %v1712, 0.5
    %v1777 = vmul.f32 %v1713, 0.5
    %v1778 = vmul.f32 %v1714, 0.5
    %v1779 = vmul.f32 %v1715, 0.5
    %v1780 = vmul.f32 %v1716, 0.5
    %v1781 = vmul.f32 %v1717, 0.5
    %v1782 = vmul.f32 %v1718, 0.5
    %v1783 = vmul.f32 %v1719, 0.5
    %v1784 = vmul.f32 %v1720, 0.5
    %v1785 = vmul.f32 %v1721, 0.5
    %v1786 = vmul.f32 %v1722, 0.5
    %v1787 = vmul.f32 %v1723, 0.5
    %v1788 = vmul.f32 %v1724, 0.5
    %v1789 = vmul.f32 %v1725, 0.5
    %v1790 = vmul.f32 %v1726, 0.5
    %v1791 = vmul.f32 %v1727, 0.5
    %v1792 = vmul.f32 %v1728, 0.5
    %v1793 = vmul.f32 %v1729, 0.5
    %v1794 = vmul.f32 %v1730, 0.5
    %v1795 = vmul.f32 %v1731, 0.5
    %v1796 = vmul.f32 %v1732, 0.5
    %v1797 = vmul.f32 %v1733, 0.5
    %v1798 = vmul.f32 %v1734, 0.5
    %v1799 = vmul.f32 %v1735, 0.5
    %v1800 = vmul.f32 %v1672, 0.044715
    %v1801 = vmul.f32 %v1673, 0.044715
    %v1802 = vmul.f32 %v1674, 0.044715
    %v1803 = vmul.f32 %v1675, 0.044715
    %v1804 = vmul.f32 %v1676, 0.044715
    %v1805 = vmul.f32 %v1677, 0.044715
    %v1806 = vmul.f32 %v1678, 0.044715
    %v1807 = vmul.f32 %v1679, 0.044715
    %v1808 = vmul.f32 %v1680, 0.044715
    %v1809 = vmul.f32 %v1681, 0.044715
    %v1810 = vmul.f32 %v1682, 0.044715
    %v1811 = vmul.f32 %v1683, 0.044715
    %v1812 = vmul.f32 %v1684, 0.044715
    %v1813 = vmul.f32 %v1685, 0.044715
    %v1814 = vmul.f32 %v1686, 0.044715
    %v1815 = vmul.f32 %v1687, 0.044715
    %v1816 = vmul.f32 %v1688, 0.044715
    %v1817 = vmul.f32 %v1689, 0.044715
    %v1818 = vmul.f32 %v1690, 0.044715
    %v1819 = vmul.f32 %v1691, 0.044715
    %v1820 = vmul.f32 %v1692, 0.044715
    %v1821 = vmul.f32 %v1693, 0.044715
    %v1822 = vmul.f32 %v1694, 0.044715
    %v1823 = vmul.f32 %v1695, 0.044715
    %v1824 = vmul.f32 %v1696, 0.044715
    %v1825 = vmul.f32 %v1697, 0.044715
    %v1826 = vmul.f32 %v1698, 0.044715
    %v1827 = vmul.f32 %v1699, 0.044715
    %v1828 = vmul.f32 %v1700, 0.044715
    %v1829 = vmul.f32 %v1701, 0.044715
    %v1830 = vmul.f32 %v1702, 0.044715
    %v1831 = vmul.f32 %v1703, 0.044715
    %v1832 = vmul.f32 %v1704, 0.044715
    %v1833 = vmul.f32 %v1705, 0.044715
    %v1834 = vmul.f32 %v1706, 0.044715
    %v1835 = vmul.f32 %v1707, 0.044715
    %v1836 = vmul.f32 %v1708, 0.044715
    %v1837 = vmul.f32 %v1709, 0.044715
    %v1838 = vmul.f32 %v1710, 0.044715
    %v1839 = vmul.f32 %v1711, 0.044715
    %v1840 = vmul.f32 %v1712, 0.044715
    %v1841 = vmul.f32 %v1713, 0.044715
    %v1842 = vmul.f32 %v1714, 0.044715
    %v1843 = vmul.f32 %v1715, 0.044715
    %v1844 = vmul.f32 %v1716, 0.044715
    %v1845 = vmul.f32 %v1717, 0.044715
    %v1846 = vmul.f32 %v1718, 0.044715
    %v1847 = vmul.f32 %v1719, 0.044715
    %v1848 = vmul.f32 %v1720, 0.044715
    %v1849 = vmul.f32 %v1721, 0.044715
    %v1850 = vmul.f32 %v1722, 0.044715
    %v1851 = vmul.f32 %v1723, 0.044715
    %v1852 = vmul.f32 %v1724, 0.044715
    %v1853 = vmul.f32 %v1725, 0.044715
    %v1854 = vmul.f32 %v1726, 0.044715
    %v1855 = vmul.f32 %v1727, 0.044715
    %v1856 = vmul.f32 %v1728, 0.044715
    %v1857 = vmul.f32 %v1729, 0.044715
    %v1858 = vmul.f32 %v1730, 0.044715
    %v1859 = vmul.f32 %v1731, 0.044715
    %v1860 = vmul.f32 %v1732, 0.044715
    %v1861 = vmul.f32 %v1733, 0.044715
    %v1862 = vmul.f32 %v1734, 0.044715
    %v1863 = vmul.f32 %v1735, 0.044715
    %v1864 = vmul.f32 %v1800, %v1672
    %v1865 = vmul.f32 %v1801, %v1673
    %v1866 = vmul.f32 %v1802, %v1674
    %v1867 = vmul.f32 %v1803, %v1675
    %v1868 = vmul.f32 %v1804, %v1676
    %v1869 = vmul.f32 %v1805, %v1677
    %v1870 = vmul.f32 %v1806, %v1678
    %v1871 = vmul.f32 %v1807, %v1679
    %v1872 = vmul.f32 %v1808, %v1680
    %v1873 = vmul.f32 %v1809, %v1681
    %v1874 = vmul.f32 %v1810, %v1682
    %v1875 = vmul.f32 %v1811, %v1683
    %v1876 = vmul.f32 %v1812, %v1684
    %v1877 = vmul.f32 %v1813, %v1685
    %v1878 = vmul.f32 %v1814, %v1686
    %v1879 = vmul.f32 %v1815, %v1687
    %v1880 = vmul.f32 %v1816, %v1688
    %v1881 = vmul.f32 %v1817, %v1689
    %v1882 = vmul.f32 %v1818, %v1690
    %v1883 = vmul.f32 %v1819, %v1691
    %v1884 = vmul.f32 %v1820, %v1692
    %v1885 = vmul.f32 %v1821, %v1693
    %v1886 = vmul.f32 %v1822, %v1694
    %v1887 = vmul.f32 %v1823, %v1695
    %v1888 = vmul.f32 %v1824, %v1696
    %v1889 = vmul.f32 %v1825, %v1697
    %v1890 = vmul.f32 %v1826, %v1698
    %v1891 = vmul.f32 %v1827, %v1699
    %v1892 = vmul.f32 %v1828, %v1700
    %v1893 = vmul.f32 %v1829, %v1701
    %v1894 = vmul.f32 %v1830, %v1702
    %v1895 = vmul.f32 %v1831, %v1703
    %v1896 = vmul.f32 %v1832, %v1704
    %v1897 = vmul.f32 %v1833, %v1705
    %v1898 = vmul.f32 %v1834, %v1706
    %v1899 = vmul.f32 %v1835, %v1707
    %v1900 = vmul.f32 %v1836, %v1708
    %v1901 = vmul.f32 %v1837, %v1709
    %v1902 = vmul.f32 %v1838, %v1710
    %v1903 = vmul.f32 %v1839, %v1711
    %v1904 = vmul.f32 %v1840, %v1712
    %v1905 = vmul.f32 %v1841, %v1713
    %v1906 = vmul.f32 %v1842, %v1714
    %v1907 = vmul.f32 %v1843, %v1715
    %v1908 = vmul.f32 %v1844, %v1716
    %v1909 = vmul.f32 %v1845, %v1717
    %v1910 = vmul.f32 %v1846, %v1718
    %v1911 = vmul.f32 %v1847, %v1719
    %v1912 = vmul.f32 %v1848, %v1720
    %v1913 = vmul.f32 %v1849, %v1721
    %v1914 = vmul.f32 %v1850, %v1722
    %v1915 = vmul.f32 %v1851, %v1723
    %v1916 = vmul.f32 %v1852, %v1724
    %v1917 = vmul.f32 %v1853, %v1725
    %v1918 = vmul.f32 %v1854, %v1726
    %v1919 = vmul.f32 %v1855, %v1727
    %v1920 = vmul.f32 %v1856, %v1728
    %v1921 = vmul.f32 %v1857, %v1729
    %v1922 = vmul.f32 %v1858, %v1730
    %v1923 = vmul.f32 %v1859, %v1731
    %v1924 = vmul.f32 %v1860, %v1732
    %v1925 = vmul.f32 %v1861, %v1733
    %v1926 = vmul.f32 %v1862, %v1734
    %v1927 = vmul.f32 %v1863, %v1735
    %v1928 = vmul.f32 %v1864, %v1672
    %v1929 = vmul.f32 %v1865, %v1673
    %v1930 = vmul.f32 %v1866, %v1674
    %v1931 = vmul.f32 %v1867, %v1675
    %v1932 = vmul.f32 %v1868, %v1676
    %v1933 = vmul.f32 %v1869, %v1677
    %v1934 = vmul.f32 %v1870, %v1678
    %v1935 = vmul.f32 %v1871, %v1679
    %v1936 = vmul.f32 %v1872, %v1680
    %v1937 = vmul.f32 %v1873, %v1681
    %v1938 = vmul.f32 %v1874, %v1682
    %v1939 = vmul.f32 %v1875, %v1683
    %v1940 = vmul.f32 %v1876, %v1684
    %v1941 = vmul.f32 %v1877, %v1685
    %v1942 = vmul.f32 %v1878, %v1686
    %v1943 = vmul.f32 %v1879, %v1687
    %v1944 = vmul.f32 %v1880, %v1688
    %v1945 = vmul.f32 %v1881, %v1689
    %v1946 = vmul.f32 %v1882, %v1690
    %v1947 = vmul.f32 %v1883, %v1691
    %v1948 = vmul.f32 %v1884, %v1692
    %v1949 = vmul.f32 %v1885, %v1693
    %v1950 = vmul.f32 %v1886, %v1694
    %v1951 = vmul.f32 %v1887, %v1695
    %v1952 = vmul.f32 %v1888, %v1696
    %v1953 = vmul.f32 %v1889, %v1697
    %v1954 = vmul.f32 %v1890, %v1698
    %v1955 = vmul.f32 %v1891, %v1699
    %v1956 = vmul.f32 %v1892, %v1700
    %v1957 = vmul.f32 %v1893, %v1701
    %v1958 = vmul.f32 %v1894, %v1702
    %v1959 = vmul.f32 %v1895, %v1703
    %v1960 = vmul.f32 %v1896, %v1704
    %v1961 = vmul.f32 %v1897, %v1705
    %v1962 = vmul.f32 %v1898, %v1706
    %v1963 = vmul.f32 %v1899, %v1707
    %v1964 = vmul.f32 %v1900, %v1708
    %v1965 = vmul.f32 %v1901, %v1709
    %v1966 = vmul.f32 %v1902, %v1710
    %v1967 = vmul.f32 %v1903, %v1711
    %v1968 = vmul.f32 %v1904, %v1712
    %v1969 = vmul.f32 %v1905, %v1713
    %v1970 = vmul.f32 %v1906, %v1714
    %v1971 = vmul.f32 %v1907, %v1715
    %v1972 = vmul.f32 %v1908, %v1716
    %v1973 = vmul.f32 %v1909, %v1717
    %v1974 = vmul.f32 %v1910, %v1718
    %v1975 = vmul.f32 %v1911, %v1719
    %v1976 = vmul.f32 %v1912, %v1720
    %v1977 = vmul.f32 %v1913, %v1721
    %v1978 = vmul.f32 %v1914, %v1722
    %v1979 = vmul.f32 %v1915, %v1723
    %v1980 = vmul.f32 %v1916, %v1724
    %v1981 = vmul.f32 %v1917, %v1725
    %v1982 = vmul.f32 %v1918, %v1726
    %v1983 = vmul.f32 %v1919, %v1727
    %v1984 = vmul.f32 %v1920, %v1728
    %v1985 = vmul.f32 %v1921, %v1729
    %v1986 = vmul.f32 %v1922, %v1730
    %v1987 = vmul.f32 %v1923, %v1731
    %v1988 = vmul.f32 %v1924, %v1732
    %v1989 = vmul.f32 %v1925, %v1733
    %v1990 = vmul.f32 %v1926, %v1734
    %v1991 = vmul.f32 %v1927, %v1735
    %v1992 = vadd.f32 %v1672, %v1928
    %v1993 = vadd.f32 %v1673, %v1929
    %v1994 = vadd.f32 %v1674, %v1930
    %v1995 = vadd.f32 %v1675, %v1931
    %v1996 = vadd.f32 %v1676, %v1932
    %v1997 = vadd.f32 %v1677, %v1933
    %v1998 = vadd.f32 %v1678, %v1934
    %v1999 = vadd.f32 %v1679, %v1935
    %v2000 = vadd.f32 %v1680, %v1936
    %v2001 = vadd.f32 %v1681, %v1937
    %v2002 = vadd.f32 %v1682, %v1938
    %v2003 = vadd.f32 %v1683, %v1939
    %v2004 = vadd.f32 %v1684, %v1940
    %v2005 = vadd.f32 %v1685, %v1941
    %v2006 = vadd.f32 %v1686, %v1942
    %v2007 = vadd.f32 %v1687, %v1943
    %v2008 = vadd.f32 %v1688, %v1944
    %v2009 = vadd.f32 %v1689, %v1945
    %v2010 = vadd.f32 %v1690, %v1946
    %v2011 = vadd.f32 %v1691, %v1947
    %v2012 = vadd.f32 %v1692, %v1948
    %v2013 = vadd.f32 %v1693, %v1949
    %v2014 = vadd.f32 %v1694, %v1950
    %v2015 = vadd.f32 %v1695, %v1951
    %v2016 = vadd.f32 %v1696, %v1952
    %v2017 = vadd.f32 %v1697, %v1953
    %v2018 = vadd.f32 %v1698, %v1954
    %v2019 = vadd.f32 %v1699, %v1955
    %v2020 = vadd.f32 %v1700, %v1956
    %v2021 = vadd.f32 %v1701, %v1957
    %v2022 = vadd.f32 %v1702, %v1958
    %v2023 = vadd.f32 %v1703, %v1959
    %v2024 = vadd.f32 %v1704, %v1960
    %v2025 = vadd.f32 %v1705, %v1961
    %v2026 = vadd.f32 %v1706, %v1962
    %v2027 = vadd.f32 %v1707, %v1963
    %v2028 = vadd.f32 %v1708, %v1964
    %v2029 = vadd.f32 %v1709, %v1965
    %v2030 = vadd.f32 %v1710, %v1966
    %v2031 = vadd.f32 %v1711, %v1967
    %v2032 = vadd.f32 %v1712, %v1968
    %v2033 = vadd.f32 %v1713, %v1969
    %v2034 = vadd.f32 %v1714, %v1970
    %v2035 = vadd.f32 %v1715, %v1971
    %v2036 = vadd.f32 %v1716, %v1972
    %v2037 = vadd.f32 %v1717, %v1973
    %v2038 = vadd.f32 %v1718, %v1974
    %v2039 = vadd.f32 %v1719, %v1975
    %v2040 = vadd.f32 %v1720, %v1976
    %v2041 = vadd.f32 %v1721, %v1977
    %v2042 = vadd.f32 %v1722, %v1978
    %v2043 = vadd.f32 %v1723, %v1979
    %v2044 = vadd.f32 %v1724, %v1980
    %v2045 = vadd.f32 %v1725, %v1981
    %v2046 = vadd.f32 %v1726, %v1982
    %v2047 = vadd.f32 %v1727, %v1983
    %v2048 = vadd.f32 %v1728, %v1984
    %v2049 = vadd.f32 %v1729, %v1985
    %v2050 = vadd.f32 %v1730, %v1986
    %v2051 = vadd.f32 %v1731, %v1987
    %v2052 = vadd.f32 %v1732, %v1988
    %v2053 = vadd.f32 %v1733, %v1989
    %v2054 = vadd.f32 %v1734, %v1990
    %v2055 = vadd.f32 %v1735, %v1991
    %v2056 = vmul.f32 %v1992, 0.7978846
    %v2057 = vmul.f32 %v1993, 0.7978846
    %v2058 = vmul.f32 %v1994, 0.7978846
    %v2059 = vmul.f32 %v1995, 0.7978846
    %v2060 = vmul.f32 %v1996, 0.7978846
    %v2061 = vmul.f32 %v1997, 0.7978846
    %v2062 = vmul.f32 %v1998, 0.7978846
    %v2063 = vmul.f32 %v1999, 0.7978846
    %v2064 = vmul.f32 %v2000, 0.7978846
    %v2065 = vmul.f32 %v2001, 0.7978846
    %v2066 = vmul.f32 %v2002, 0.7978846
    %v2067 = vmul.f32 %v2003, 0.7978846
    %v2068 = vmul.f32 %v2004, 0.7978846
    %v2069 = vmul.f32 %v2005, 0.7978846
    %v2070 = vmul.f32 %v2006, 0.7978846
    %v2071 = vmul.f32 %v2007, 0.7978846
    %v2072 = vmul.f32 %v2008, 0.7978846
    %v2073 = vmul.f32 %v2009, 0.7978846
    %v2074 = vmul.f32 %v2010, 0.7978846
    %v2075 = vmul.f32 %v2011, 0.7978846
    %v2076 = vmul.f32 %v2012, 0.7978846
    %v2077 = vmul.f32 %v2013, 0.7978846
    %v2078 = vmul.f32 %v2014, 0.7978846
    %v2079 = vmul.f32 %v2015, 0.7978846
    %v2080 = vmul.f32 %v2016, 0.7978846
    %v2081 = vmul.f32 %v2017, 0.7978846
    %v2082 = vmul.f32 %v2018, 0.7978846
    %v2083 = vmul.f32 %v2019, 0.7978846
    %v2084 = vmul.f32 %v2020, 0.7978846
    %v2085 = vmul.f32 %v2021, 0.7978846
    %v2086 = vmul.f32 %v2022, 0.7978846
    %v2087 = vmul.f32 %v2023, 0.7978846
    %v2088 = vmul.f32 %v2024, 0.7978846
    %v2089 = vmul.f32 %v2025, 0.7978846
    %v2090 = vmul.f32 %v2026, 0.7978846
    %v2091 = vmul.f32 %v2027, 0.7978846
    %v2092 = vmul.f32 %v2028, 0.7978846
    %v2093 = vmul.f32 %v2029, 0.7978846
    %v2094 = vmul.f32 %v2030, 0.7978846
    %v2095 = vmul.f32 %v2031, 0.7978846
    %v2096 = vmul.f32 %v2032, 0.7978846
    %v2097 = vmul.f32 %v2033, 0.7978846
    %v2098 = vmul.f32 %v2034, 0.7978846
    %v2099 = vmul.f32 %v2035, 0.7978846
    %v2100 = vmul.f32 %v2036, 0.7978846
    %v2101 = vmul.f32 %v2037, 0.7978846
    %v2102 = vmul.f32 %v2038, 0.7978846
    %v2103 = vmul.f32 %v2039, 0.7978846
    %v2104 = vmul.f32 %v2040, 0.7978846
    %v2105 = vmul.f32 %v2041, 0.7978846
    %v2106 = vmul.f32 %v2042, 0.7978846
    %v2107 = vmul.f32 %v2043, 0.7978846
    %v2108 = vmul.f32 %v2044, 0.7978846
    %v2109 = vmul.f32 %v2045, 0.7978846
    %v2110 = vmul.f32 %v2046, 0.7978846
    %v2111 = vmul.f32 %v2047, 0.7978846
    %v2112 = vmul.f32 %v2048, 0.7978846
    %v2113 = vmul.f32 %v2049, 0.7978846
    %v2114 = vmul.f32 %v2050, 0.7978846
    %v2115 = vmul.f32 %v2051, 0.7978846
    %v2116 = vmul.f32 %v2052, 0.7978846
    %v2117 = vmul.f32 %v2053, 0.7978846
    %v2118 = vmul.f32 %v2054, 0.7978846
    %v2119 = vmul.f32 %v2055, 0.7978846
    %v2120 = vtanh.pop %v2056
    %v2121 = vtanh.pop %v2057
    %v2122 = vtanh.pop %v2058
    %v2123 = vtanh.pop %v2059
    %v2124 = vtanh.pop %v2060
    %v2125 = vtanh.pop %v2061
    %v2126 = vtanh.pop %v2062
    %v2127 = vtanh.pop %v2063
    %v2128 = vtanh.pop %v2064
    %v2129 = vtanh.pop %v2065
    %v2130 = vtanh.pop %v2066
    %v2131 = vtanh.pop %v2067
    %v2132 = vtanh.pop %v2068
    %v2133 = vtanh.pop %v2069
    %v2134 = vtanh.pop %v2070
    %v2135 = vtanh.pop %v2071
    %v2136 = vtanh.pop %v2072
    %v2137 = vtanh.pop %v2073
    %v2138 = vtanh.pop %v2074
    %v2139 = vtanh.pop %v2075
    %v2140 = vtanh.pop %v2076
    %v2141 = vtanh.pop %v2077
    %v2142 = vtanh.pop %v2078
    %v2143 = vtanh.pop %v2079
    %v2144 = vtanh.pop %v2080
    %v2145 = vtanh.pop %v2081
    %v2146 = vtanh.pop %v2082
    %v2147 = vtanh.pop %v2083
    %v2148 = vtanh.pop %v2084
    %v2149 = vtanh.pop %v2085
    %v2150 = vtanh.pop %v2086
    %v2151 = vtanh.pop %v2087
    %v2152 = vtanh.pop %v2088
    %v2153 = vtanh.pop %v2089
    %v2154 = vtanh.pop %v2090
    %v2155 = vtanh.pop %v2091
    %v2156 = vtanh.pop %v2092
    %v2157 = vtanh.pop %v2093
    %v2158 = vtanh.pop %v2094
    %v2159 = vtanh.pop %v2095
    %v2160 = vtanh.pop %v2096
    %v2161 = vtanh.pop %v2097
    %v2162 = vtanh.pop %v2098
    %v2163 = vtanh.pop %v2099
    %v2164 = vtanh.pop %v2100
    %v2165 = vtanh.pop %v2101
    %v2166 = vtanh.pop %v2102
    %v2167 = vtanh.pop %v2103
    %v2168 = vtanh.pop %v2104
    %v2169 = vtanh.pop %v2105
    %v2170 = vtanh.pop %v2106
    %v2171 = vtanh.pop %v2107
    %v2172 = vtanh.pop %v2108
    %v2173 = vtanh.pop %v2109
    %v2174 = vtanh.pop %v2110
    %v2175 = vtanh.pop %v2111
    %v2176 = vtanh.pop %v2112
    %v2177 = vtanh.pop %v2113
    %v2178 = vtanh.pop %v2114
    %v2179 = vtanh.pop %v2115
    %v2180 = vtanh.pop %v2116
    %v2181 = vtanh.pop %v2117
    %v2182 = vtanh.pop %v2118
    %v2183 = vtanh.pop %v2119
    %v2184 = vadd.f32 %v2120, 1.0
    %v2185 = vadd.f32 %v2121, 1.0
    %v2186 = vadd.f32 %v2122, 1.0
    %v2187 = vadd.f32 %v2123, 1.0
    %v2188 = vadd.f32 %v2124, 1.0
    %v2189 = vadd.f32 %v2125, 1.0
    %v2190 = vadd.f32 %v2126, 1.0
    %v2191 = vadd.f32 %v2127, 1.0
    %v2192 = vadd.f32 %v2128, 1.0
    %v2193 = vadd.f32 %v2129, 1.0
    %v2194 = vadd.f32 %v2130, 1.0
    %v2195 = vadd.f32 %v2131, 1.0
    %v2196 = vadd.f32 %v2132, 1.0
    %v2197 = vadd.f32 %v2133, 1.0
    %v2198 = vadd.f32 %v2134, 1.0
    %v2199 = vadd.f32 %v2135, 1.0
    %v2200 = vadd.f32 %v2136, 1.0
    %v2201 = vadd.f32 %v2137, 1.0
    %v2202 = vadd.f32 %v2138, 1.0
    %v2203 = vadd.f32 %v2139, 1.0
    %v2204 = vadd.f32 %v2140, 1.0
    %v2205 = vadd.f32 %v2141, 1.0
    %v2206 = vadd.f32 %v2142, 1.0
    %v2207 = vadd.f32 %v2143, 1.0
    %v2208 = vadd.f32 %v2144, 1.0
    %v2209 = vadd.f32 %v2145, 1.0
    %v2210 = vadd.f32 %v2146, 1.0
    %v2211 = vadd.f32 %v2147, 1.0
    %v2212 = vadd.f32 %v2148, 1.0
    %v2213 = vadd.f32 %v2149, 1.0
    %v2214 = vadd.f32 %v2150, 1.0
    %v2215 = vadd.f32 %v2151, 1.0
    %v2216 = vadd.f32 %v2152, 1.0
    %v2217 = vadd.f32 %v2153, 1.0
    %v2218 = vadd.f32 %v2154, 1.0
    %v2219 = vadd.f32 %v2155, 1.0
    %v2220 = vadd.f32 %v2156, 1.0
    %v2221 = vadd.f32 %v2157, 1.0
    %v2222 = vadd.f32 %v2158, 1.0
    %v2223 = vadd.f32 %v2159, 1.0
    %v2224 = vadd.f32 %v2160, 1.0
    %v2225 = vadd.f32 %v2161, 1.0
    %v2226 = vadd.f32 %v2162, 1.0
    %v2227 = vadd.f32 %v2163, 1.0
    %v2228 = vadd.f32 %v2164, 1.0
    %v2229 = vadd.f32 %v2165, 1.0
    %v2230 = vadd.f32 %v2166, 1.0
    %v2231 = vadd.f32 %v2167, 1.0
    %v2232 = vadd.f32 %v2168, 1.0
    %v2233 = vadd.f32 %v2169, 1.0
    %v2234 = vadd.f32 %v2170, 1.0
    %v2235 = vadd.f32 %v2171, 1.0
    %v2236 = vadd.f32 %v2172, 1.0
    %v2237 = vadd.f32 %v2173, 1.0
    %v2238 = vadd.f32 %v2174, 1.0
    %v2239 = vadd.f32 %v2175, 1.0
    %v2240 = vadd.f32 %v2176, 1.0
    %v2241 = vadd.f32 %v2177, 1.0
    %v2242 = vadd.f32 %v2178, 1.0
    %v2243 = vadd.f32 %v2179, 1.0
    %v2244 = vadd.f32 %v2180, 1.0
    %v2245 = vadd.f32 %v2181, 1.0
    %v2246 = vadd.f32 %v2182, 1.0
    %v2247 = vadd.f32 %v2183, 1.0
    %v2248 = vmul.f32 %v1736, %v2184
    %v2249 = vmul.f32 %v1737, %v2185
    %v2250 = vmul.f32 %v1738, %v2186
    %v2251 = vmul.f32 %v1739, %v2187
    %v2252 = vmul.f32 %v1740, %v2188
    %v2253 = vmul.f32 %v1741, %v2189
    %v2254 = vmul.f32 %v1742, %v2190
    %v2255 = vmul.f32 %v1743, %v2191
    %v2256 = vmul.f32 %v1744, %v2192
    %v2257 = vmul.f32 %v1745, %v2193
    %v2258 = vmul.f32 %v1746, %v2194
    %v2259 = vmul.f32 %v1747, %v2195
    %v2260 = vmul.f32 %v1748, %v2196
    %v2261 = vmul.f32 %v1749, %v2197
    %v2262 = vmul.f32 %v1750, %v2198
    %v2263 = vmul.f32 %v1751, %v2199
    %v2264 = vmul.f32 %v1752, %v2200
    %v2265 = vmul.f32 %v1753, %v2201
    %v2266 = vmul.f32 %v1754, %v2202
    %v2267 = vmul.f32 %v1755, %v2203
    %v2268 = vmul.f32 %v1756, %v2204
    %v2269 = vmul.f32 %v1757, %v2205
    %v2270 = vmul.f32 %v1758, %v2206
    %v2271 = vmul.f32 %v1759, %v2207
    %v2272 = vmul.f32 %v1760, %v2208
    %v2273 = vmul.f32 %v1761, %v2209
    %v2274 = vmul.f32 %v1762, %v2210
    %v2275 = vmul.f32 %v1763, %v2211
    %v2276 = vmul.f32 %v1764, %v2212
    %v2277 = vmul.f32 %v1765, %v2213
    %v2278 = vmul.f32 %v1766, %v2214
    %v2279 = vmul.f32 %v1767, %v2215
    %v2280 = vmul.f32 %v1768, %v2216
    %v2281 = vmul.f32 %v1769, %v2217
    %v2282 = vmul.f32 %v1770, %v2218
    %v2283 = vmul.f32 %v1771, %v2219
    %v2284 = vmul.f32 %v1772, %v2220
    %v2285 = vmul.f32 %v1773, %v2221
    %v2286 = vmul.f32 %v1774, %v2222
    %v2287 = vmul.f32 %v1775, %v2223
    %v2288 = vmul.f32 %v1776, %v2224
    %v2289 = vmul.f32 %v1777, %v2225
    %v2290 = vmul.f32 %v1778, %v2226
    %v2291 = vmul.f32 %v1779, %v2227
    %v2292 = vmul.f32 %v1780, %v2228
    %v2293 = vmul.f32 %v1781, %v2229
    %v2294 = vmul.f32 %v1782, %v2230
    %v2295 = vmul.f32 %v1783, %v2231
    %v2296 = vmul.f32 %v1784, %v2232
    %v2297 = vmul.f32 %v1785, %v2233
    %v2298 = vmul.f32 %v1786, %v2234
    %v2299 = vmul.f32 %v1787, %v2235
    %v2300 = vmul.f32 %v1788, %v2236
    %v2301 = vmul.f32 %v1789, %v2237
    %v2302 = vmul.f32 %v1790, %v2238
    %v2303 = vmul.f32 %v1791, %v2239
    %v2304 = vmul.f32 %v1792, %v2240
    %v2305 = vmul.f32 %v1793, %v2241
    %v2306 = vmul.f32 %v1794, %v2242
    %v2307 = vmul.f32 %v1795, %v2243
    %v2308 = vmul.f32 %v1796, %v2244
    %v2309 = vmul.f32 %v1797, %v2245
    %v2310 = vmul.f32 %v1798, %v2246
    %v2311 = vmul.f32 %v1799, %v2247
    %v2312 = vadd.f32 %v2248, %v2249
    %v2313 = vadd.f32 %v2312, %v2250
    %v2314 = vadd.f32 %v2313, %v2251
    %v2315 = vadd.f32 %v2314, %v2252
    %v2316 = vadd.f32 %v2315, %v2253
    %v2317 = vadd.f32 %v2316, %v2254
    %v2318 = vadd.f32 %v2317, %v2255
    %v2319 = vadd.f32 %v2318, %v2256
    %v2320 = vadd.f32 %v2319, %v2257
    %v2321 = vadd.f32 %v2320, %v2258
    %v2322 = vadd.f32 %v2321, %v2259
    %v2323 = vadd.f32 %v2322, %v2260
    %v2324 = vadd.f32 %v2323, %v2261
    %v2325 = vadd.f32 %v2324, %v2262
    %v2326 = vadd.f32 %v2325, %v2263
    %v2327 = vadd.f32 %v2326, %v2264
    %v2328 = vadd.f32 %v2327, %v2265
    %v2329 = vadd.f32 %v2328, %v2266
    %v2330 = vadd.f32 %v2329, %v2267
    %v2331 = vadd.f32 %v2330, %v2268
    %v2332 = vadd.f32 %v2331, %v2269
    %v2333 = vadd.f32 %v2332, %v2270
    %v2334 = vadd.f32 %v2333, %v2271
    %v2335 = vadd.f32 %v2334, %v2272
    %v2336 = vadd.f32 %v2335, %v2273
    %v2337 = vadd.f32 %v2336, %v2274
    %v2338 = vadd.f32 %v2337, %v2275
    %v2339 = vadd.f32 %v2338, %v2276
    %v2340 = vadd.f32 %v2339, %v2277
    %v2341 = vadd.f32 %v2340, %v2278
    %v2342 = vadd.f32 %v2341, %v2279
    %v2343 = vadd.f32 %v2342, %v2280
    %v2344 = vadd.f32 %v2343, %v2281
    %v2345 = vadd.f32 %v2344, %v2282
    %v2346 = vadd.f32 %v2345, %v2283
    %v2347 = vadd.f32 %v2346, %v2284
    %v2348 = vadd.f32 %v2347, %v2285
    %v2349 = vadd.f32 %v2348, %v2286
    %v2350 = vadd.f32 %v2349, %v2287
    %v2351 = vadd.f32 %v2350, %v2288
    %v2352 = vadd.f32 %v2351, %v2289
    %v2353 = vadd.f32 %v2352, %v2290
    %v2354 = vadd.f32 %v2353, %v2291
    %v2355 = vadd.f32 %v2354, %v2292
    %v2356 = vadd.f32 %v2355, %v2293
    %v2357 = vadd.f32 %v2356, %v2294
    %v2358 = vadd.f32 %v2357, %v2295
    %v2359 = vadd.f32 %v2358, %v2296
    %v2360 = vadd.f32 %v2359, %v2297
    %v2361 = vadd.f32 %v2360, %v2298
    %v2362 = vadd.f32 %v2361, %v2299
    %v2363 = vadd.f32 %v2362, %v2300
    %v2364 = vadd.f32 %v2363, %v2301
    %v2365 = vadd.f32 %v2364, %v2302
    %v2366 = vadd.f32 %v2365, %v2303
    %v2367 = vadd.f32 %v2366, %v2304
    %v2368 = vadd.f32 %v2367, %v2305
    %v2369 = vadd.f32 %v2368, %v2306
    %v2370 = vadd.f32 %v2369, %v2307
    %v2371 = vadd.f32 %v2370, %v2308
    %v2372 = vadd.f32 %v2371, %v2309
    %v2373 = vadd.f32 %v2372, %v2310
    %v2374 = vadd.f32 %v2373, %v2311
    %v2375 = vrot.slane %v2374, 4
    %v2376 = vadd.f32 %v2374, %v2375
    %v2377 = vrot.slane %v2376, 2
    %v2378 = vadd.f32 %v2376, %v2377
    %v2379 = vrot.slane %v2378, 1
    %v2380 = vadd.f32 %v2378, %v2379
    %v2381 = vmul.f32 %v2248, %v2248
    %v2382 = vmul.f32 %v2249, %v2249
    %v2383 = vmul.f32 %v2250, %v2250
    %v2384 = vmul.f32 %v2251, %v2251
    %v2385 = vmul.f32 %v2252, %v2252
    %v2386 = vmul.f32 %v2253, %v2253
    %v2387 = vmul.f32 %v2254, %v2254
    %v2388 = vmul.f32 %v2255, %v2255
    %v2389 = vmul.f32 %v2256, %v2256
    %v2390 = vmul.f32 %v2257, %v2257
    %v2391 = vmul.f32 %v2258, %v2258
    %v2392 = vmul.f32 %v2259, %v2259
    %v2393 = vmul.f32 %v2260, %v2260
    %v2394 = vmul.f32 %v2261, %v2261
    %v2395 = vmul.f32 %v2262, %v2262
    %v2396 = vmul.f32 %v2263, %v2263
    %v2397 = vmul.f32 %v2264, %v2264
    %v2398 = vmul.f32 %v2265, %v2265
    %v2399 = vmul.f32 %v2266, %v2266
    %v2400 = vmul.f32 %v2267, %v2267
    %v2401 = vmul.f32 %v2268, %v2268
    %v2402 = vmul.f32 %v2269, %v2269
    %v2403 = vmul.f32 %v2270, %v2270
    %v2404 = vmul.f32 %v2271, %v2271
    %v2405 = vmul.f32 %v2272, %v2272
    %v2406 = vmul.f32 %v2273, %v2273
    %v2407 = vmul.f32 %v2274, %v2274
    %v2408 = vmul.f32 %v2275, %v2275
    %v2409 = vmul.f32 %v2276, %v2276
    %v2410 = vmul.f32 %v2277, %v2277
    %v2411 = vmul.f32 %v2278, %v2278
    %v2412 = vmul.f32 %v2279, %v2279
    %v2413 = vmul.f32 %v2280, %v2280
    %v2414 = vmul.f32 %v2281, %v2281
    %v2415 = vmul.f32 %v2282, %v2282
    %v2416 = vmul.f32 %v2283, %v2283
    %v2417 = vmul.f32 %v2284, %v2284
    %v2418 = vmul.f32 %v2285, %v2285
    %v2419 = vmul.f32 %v2286, %v2286
    %v2420 = vmul.f32 %v2287, %v2287
    %v2421 = vmul.f32 %v2288, %v2288
    %v2422 = vmul.f32 %v2289, %v2289
    %v2423 = vmul.f32 %v2290, %v2290
    %v2424 = vmul.f32 %v2291, %v2291
    %v2425 = vmul.f32 %v2292, %v2292
    %v2426 = vmul.f32 %v2293, %v2293
    %v2427 = vmul.f32 %v2294, %v2294
    %v2428 = vmul.f32 %v2295, %v2295
    %v2429 = vmul.f32 %v2296, %v2296
    %v2430 = vmul.f32 %v2297, %v2297
    %v2431 = vmul.f32 %v2298, %v2298
    %v2432 = vmul.f32 %v2299, %v2299
    %v2433 = vmul.f32 %v2300, %v2300
    %v2434 = vmul.f32 %v2301, %v2301
    %v2435 = vmul.f32 %v2302, %v2302
    %v2436 = vmul.f32 %v2303, %v2303
    %v2437 = vmul.f32 %v2304, %v2304
    %v2438 = vmul.f32 %v2305, %v2305
    %v2439 = vmul.f32 %v2306, %v2306
    %v2440 = vmul.f32 %v2307, %v2307
    %v2441 = vmul.f32 %v2308, %v2308
    %v2442 = vmul.f32 %v2309, %v2309
    %v2443 = vmul.f32 %v2310, %v2310
    %v2444 = vmul.f32 %v2311, %v2311
    %v2445 = vadd.f32 %v2381, %v2382
    %v2446 = vadd.f32 %v2445, %v2383
    %v2447 = vadd.f32 %v2446, %v2384
    %v2448 = vadd.f32 %v2447, %v2385
    %v2449 = vadd.f32 %v2448, %v2386
    %v2450 = vadd.f32 %v2449, %v2387
    %v2451 = vadd.f32 %v2450, %v2388
    %v2452 = vadd.f32 %v2451, %v2389
    %v2453 = vadd.f32 %v2452, %v2390
    %v2454 = vadd.f32 %v2453, %v2391
    %v2455 = vadd.f32 %v2454, %v2392
    %v2456 = vadd.f32 %v2455, %v2393
    %v2457 = vadd.f32 %v2456, %v2394
    %v2458 = vadd.f32 %v2457, %v2395
    %v2459 = vadd.f32 %v2458, %v2396
    %v2460 = vadd.f32 %v2459, %v2397
    %v2461 = vadd.f32 %v2460, %v2398
    %v2462 = vadd.f32 %v2461, %v2399
    %v2463 = vadd.f32 %v2462, %v2400
    %v2464 = vadd.f32 %v2463, %v2401
    %v2465 = vadd.f32 %v2464, %v2402
    %v2466 = vadd.f32 %v2465, %v2403
    %v2467 = vadd.f32 %v2466, %v2404
    %v2468 = vadd.f32 %v2467, %v2405
    %v2469 = vadd.f32 %v2468, %v2406
    %v2470 = vadd.f32 %v2469, %v2407
    %v2471 = vadd.f32 %v2470, %v2408
    %v2472 = vadd.f32 %v2471, %v2409
    %v2473 = vadd.f32 %v2472, %v2410
    %v2474 = vadd.f32 %v2473, %v2411
    %v2475 = vadd.f32 %v2474, %v2412
    %v2476 = vadd.f32 %v2475, %v2413
    %v2477 = vadd.f32 %v2476, %v2414
    %v2478 = vadd.f32 %v2477, %v2415
    %v2479 = vadd.f32 %v2478, %v2416
    %v2480 = vadd.f32 %v2479, %v2417
    %v2481 = vadd.f32 %v2480, %v2418
    %v2482 = vadd.f32 %v2481, %v2419
    %v2483 = vadd.f32 %v2482, %v2420
    %v2484 = vadd.f32 %v2483, %v2421
    %v2485 = vadd.f32 %v2484, %v2422
    %v2486 = vadd.f32 %v2485, %v2423
    %v2487 = vadd.f32 %v2486, %v2424
    %v2488 = vadd.f32 %v2487, %v2425
    %v2489 = vadd.f32 %v2488, %v2426
    %v2490 = vadd.f32 %v2489, %v2427
    %v2491 = vadd.f32 %v2490, %v2428
    %v2492 = vadd.f32 %v2491, %v2429
    %v2493 = vadd.f32 %v2492, %v2430
    %v2494 = vadd.f32 %v2493, %v2431
    %v2495 = vadd.f32 %v2494, %v2432
    %v2496 = vadd.f32 %v2495, %v2433
    %v2497 = vadd.f32 %v2496, %v2434
    %v2498 = vadd.f32 %v2497, %v2435
    %v2499 = vadd.f32 %v2498, %v2436
    %v2500 = vadd.f32 %v2499, %v2437
    %v2501 = vadd.f32 %v2500, %v2438
    %v2502 = vadd.f32 %v2501, %v2439
    %v2503 = vadd.f32 %v2502, %v2440
    %v2504 = vadd.f32 %v2503, %v2441
    %v2505 = vadd.f32 %v2504, %v2442
    %v2506 = vadd.f32 %v2505, %v2443
    %v2507 = vadd.f32 %v2506, %v2444
    %v2508 = vrot.slane %v2507, 4
    %v2509 = vadd.f32 %v2507, %v2508
    %v2510 = vrot.slane %v2509, 2
    %v2511 = vadd.f32 %v2509, %v2510
    %v2512 = vrot.slane %v2511, 1
    %v2513 = vadd.f32 %v2511, %v2512
    %v2514 = vmul.f32 %v2380, 0.001953125
    %v2515 = vmul.f32 %v2513, 0.001953125
    %v2516 = vmul.f32 %v2514, %v2514
    %v2517 = vsub.f32 %v2515, %v2516
    %v2518 = vmax.f32 %v2517, 0.0
    %v2519 = vadd.f32 %v2518, 1e-05
    %v2520 = vrsqrt.pop %v2519
    %v2521 = vmul.f32 %v2520, %v539
    %v2522 = vmul.f32 %v2514, %v2521
    %v2523 = vsub.f32 %v540, %v2522
    %v2524 = vlaneseq
    %v2525 = vshrl.u32 %v2524, 7
    %v2526 = vsub.s32 0, %v2525
    %v2527 = vrot.slane %v2521, %v2526
    %v2528 = vmul.f32 %v2248, %v2527
    %v2529 = vmul.f32 %v2249, %v2527
    %v2530 = vmul.f32 %v2250, %v2527
    %v2531 = vmul.f32 %v2251, %v2527
    %v2532 = vmul.f32 %v2252, %v2527
    %v2533 = vmul.f32 %v2253, %v2527
    %v2534 = vmul.f32 %v2254, %v2527
    %v2535 = vmul.f32 %v2255, %v2527
    %v2536 = vmul.f32 %v2256, %v2527
    %v2537 = vmul.f32 %v2257, %v2527
    %v2538 = vmul.f32 %v2258, %v2527
    %v2539 = vmul.f32 %v2259, %v2527
    %v2540 = vmul.f32 %v2260, %v2527
    %v2541 = vmul.f32 %v2261, %v2527
    %v2542 = vmul.f32 %v2262, %v2527
    %v2543 = vmul.f32 %v2263, %v2527
    %v2544 = vmul.f32 %v2264, %v2527
    %v2545 = vmul.f32 %v2265, %v2527
    %v2546 = vmul.f32 %v2266, %v2527
    %v2547 = vmul.f32 %v2267, %v2527
    %v2548 = vmul.f32 %v2268, %v2527
    %v2549 = vmul.f32 %v2269, %v2527
    %v2550 = vmul.f32 %v2270, %v2527
    %v2551 = vmul.f32 %v2271, %v2527
    %v2552 = vmul.f32 %v2272, %v2527
    %v2553 = vmul.f32 %v2273, %v2527
    %v2554 = vmul.f32 %v2274, %v2527
    %v2555 = vmul.f32 %v2275, %v2527
    %v2556 = vmul.f32 %v2276, %v2527
    %v2557 = vmul.f32 %v2277, %v2527
    %v2558 = vmul.f32 %v2278, %v2527
    %v2559 = vmul.f32 %v2279, %v2527
    %v2560 = vmul.f32 %v2280, %v2527
    %v2561 = vmul.f32 %v2281, %v2527
    %v2562 = vmul.f32 %v2282, %v2527
    %v2563 = vmul.f32 %v2283, %v2527
    %v2564 = vmul.f32 %v2284, %v2527
    %v2565 = vmul.f32 %v2285, %v2527
    %v2566 = vmul.f32 %v2286, %v2527
    %v2567 = vmul.f32 %v2287, %v2527
    %v2568 = vmul.f32 %v2288, %v2527
    %v2569 = vmul.f32 %v2289, %v2527
    %v2570 = vmul.f32 %v2290, %v2527
    %v2571 = vmul.f32 %v2291, %v2527
    %v2572 = vmul.f32 %v2292, %v2527
    %v2573 = vmul.f32 %v2293, %v2527
    %v2574 = vmul.f32 %v2294, %v2527
    %v2575 = vmul.f32 %v2295, %v2527
    %v2576 = vmul.f32 %v2296, %v2527
    %v2577 = vmul.f32 %v2297, %v2527
    %v2578 = vmul.f32 %v2298, %v2527
    %v2579 = vmul.f32 %v2299, %v2527
    %v2580 = vmul.f32 %v2300, %v2527
    %v2581 = vmul.f32 %v2301, %v2527
    %v2582 = vmul.f32 %v2302, %v2527
    %v2583 = vmul.f32 %v2303, %v2527
    %v2584 = vmul.f32 %v2304, %v2527
    %v2585 = vmul.f32 %v2305, %v2527
    %v2586 = vmul.f32 %v2306, %v2527
    %v2587 = vmul.f32 %v2307, %v2527
    %v2588 = vmul.f32 %v2308, %v2527
    %v2589 = vmul.f32 %v2309, %v2527
    %v2590 = vmul.f32 %v2310, %v2527
    %v2591 = vmul.f32 %v2311, %v2527
    %v2592 = vlaneseq
    %v2593 = vshrl.u32 %v2592, 7
    %v2594 = vsub.s32 0, %v2593
    %v2595 = vrot.slane %v2523, %v2594
    %v2596 = vadd.f32 %v2528, %v2595
    %v2597 = vadd.f32 %v2529, %v2595
    %v2598 = vadd.f32 %v2530, %v2595
    %v2599 = vadd.f32 %v2531, %v2595
    %v2600 = vadd.f32 %v2532, %v2595
    %v2601 = vadd.f32 %v2533, %v2595
    %v2602 = vadd.f32 %v2534, %v2595
    %v2603 = vadd.f32 %v2535, %v2595
    %v2604 = vadd.f32 %v2536, %v2595
    %v2605 = vadd.f32 %v2537, %v2595
    %v2606 = vadd.f32 %v2538, %v2595
    %v2607 = vadd.f32 %v2539, %v2595
    %v2608 = vadd.f32 %v2540, %v2595
    %v2609 = vadd.f32 %v2541, %v2595
    %v2610 = vadd.f32 %v2542, %v2595
    %v2611 = vadd.f32 %v2543, %v2595
    %v2612 = vadd.f32 %v2544, %v2595
    %v2613 = vadd.f32 %v2545, %v2595
    %v2614 = vadd.f32 %v2546, %v2595
    %v2615 = vadd.f32 %v2547, %v2595
    %v2616 = vadd.f32 %v2548, %v2595
    %v2617 = vadd.f32 %v2549, %v2595
    %v2618 = vadd.f32 %v2550, %v2595
    %v2619 = vadd.f32 %v2551, %v2595
    %v2620 = vadd.f32 %v2552, %v2595
    %v2621 = vadd.f32 %v2553, %v2595
    %v2622 = vadd.f32 %v2554, %v2595
    %v2623 = vadd.f32 %v2555, %v2595
    %v2624 = vadd.f32 %v2556, %v2595
    %v2625 = vadd.f32 %v2557, %v2595
    %v2626 = vadd.f32 %v2558, %v2595
    %v2627 = vadd.f32 %v2559, %v2595
    %v2628 = vadd.f32 %v2560, %v2595
    %v2629 = vadd.f32 %v2561, %v2595
    %v2630 = vadd.f32 %v2562, %v2595
    %v2631 = vadd.f32 %v2563, %v2595
    %v2632 = vadd.f32 %v2564, %v2595
    %v2633 = vadd.f32 %v2565, %v2595
    %v2634 = vadd.f32 %v2566, %v2595
    %v2635 = vadd.f32 %v2567, %v2595
    %v2636 = vadd.f32 %v2568, %v2595
    %v2637 = vadd.f32 %v2569, %v2595
    %v2638 = vadd.f32 %v2570, %v2595
    %v2639 = vadd.f32 %v2571, %v2595
    %v2640 = vadd.f32 %v2572, %v2595
    %v2641 = vadd.f32 %v2573, %v2595
    %v2642 = vadd.f32 %v2574, %v2595
    %v2643 = vadd.f32 %v2575, %v2595
    %v2644 = vadd.f32 %v2576, %v2595
    %v2645 = vadd.f32 %v2577, %v2595
    %v2646 = vadd.f32 %v2578, %v2595
    %v2647 = vadd.f32 %v2579, %v2595
    %v2648 = vadd.f32 %v2580, %v2595
    %v2649 = vadd.f32 %v2581, %v2595
    %v2650 = vadd.f32 %v2582, %v2595
    %v2651 = vadd.f32 %v2583, %v2595
    %v2652 = vadd.f32 %v2584, %v2595
    %v2653 = vadd.f32 %v2585, %v2595
    %v2654 = vadd.f32 %v2586, %v2595
    %v2655 = vadd.f32 %v2587, %v2595
    %v2656 = vadd.f32 %v2588, %v2595
    %v2657 = vadd.f32 %v2589, %v2595
    %v2658 = vadd.f32 %v2590, %v2595
    %v2659 = vadd.f32 %v2591, %v2595
    %v2660 = vadd.f32 %v18, %v2596
    %v2661 = vadd.f32 %v19, %v2597
    %v2662 = vadd.f32 %v20, %v2598
    %v2663 = vadd.f32 %v21, %v2599
    %v2664 = vadd.f32 %v22, %v2600
    %v2665 = vadd.f32 %v23, %v2601
    %v2666 = vadd.f32 %v24, %v2602
    %v2667 = vadd.f32 %v25, %v2603
    %v2668 = vadd.f32 %v26, %v2604
    %v2669 = vadd.f32 %v27, %v2605
    %v2670 = vadd.f32 %v28, %v2606
    %v2671 = vadd.f32 %v29, %v2607
    %v2672 = vadd.f32 %v30, %v2608
    %v2673 = vadd.f32 %v31, %v2609
    %v2674 = vadd.f32 %v32, %v2610
    %v2675 = vadd.f32 %v33, %v2611
    %v2676 = vadd.f32 %v34, %v2612
    %v2677 = vadd.f32 %v35, %v2613
    %v2678 = vadd.f32 %v36, %v2614
    %v2679 = vadd.f32 %v37, %v2615
    %v2680 = vadd.f32 %v38, %v2616
    %v2681 = vadd.f32 %v39, %v2617
    %v2682 = vadd.f32 %v40, %v2618
    %v2683 = vadd.f32 %v41, %v2619
    %v2684 = vadd.f32 %v42, %v2620
    %v2685 = vadd.f32 %v43, %v2621
    %v2686 = vadd.f32 %v44, %v2622
    %v2687 = vadd.f32 %v45, %v2623
    %v2688 = vadd.f32 %v46, %v2624
    %v2689 = vadd.f32 %v47, %v2625
    %v2690 = vadd.f32 %v48, %v2626
    %v2691 = vadd.f32 %v49, %v2627
    %v2692 = vadd.f32 %v54, %v2628
    %v2693 = vadd.f32 %v55, %v2629
    %v2694 = vadd.f32 %v56, %v2630
    %v2695 = vadd.f32 %v57, %v2631
    %v2696 = vadd.f32 %v58, %v2632
    %v2697 = vadd.f32 %v59, %v2633
    %v2698 = vadd.f32 %v60, %v2634
    %v2699 = vadd.f32 %v61, %v2635
    %v2700 = vadd.f32 %v62, %v2636
    %v2701 = vadd.f32 %v63, %v2637
    %v2702 = vadd.f32 %v64, %v2638
    %v2703 = vadd.f32 %v65, %v2639
    %v2704 = vadd.f32 %v66, %v2640
    %v2705 = vadd.f32 %v67, %v2641
    %v2706 = vadd.f32 %v68, %v2642
    %v2707 = vadd.f32 %v69, %v2643
    %v2708 = vadd.f32 %v70, %v2644
    %v2709 = vadd.f32 %v71, %v2645
    %v2710 = vadd.f32 %v72, %v2646
    %v2711 = vadd.f32 %v73, %v2647
    %v2712 = vadd.f32 %v74, %v2648
    %v2713 = vadd.f32 %v75, %v2649
    %v2714 = vadd.f32 %v76, %v2650
    %v2715 = vadd.f32 %v77, %v2651
    %v2716 = vadd.f32 %v78, %v2652
    %v2717 = vadd.f32 %v79, %v2653
    %v2718 = vadd.f32 %v80, %v2654
    %v2719 = vadd.f32 %v81, %v2655
    %v2720 = vadd.f32 %v82, %v2656
    %v2721 = vadd.f32 %v83, %v2657
    %v2722 = vadd.f32 %v84, %v2658
    %v2723 = vadd.f32 %v85, %v2659
    %v2724 = vpack.c.bf16 %v2661, %v2660
    %v2725 = vpack.c.bf16 %v2663, %v2662
    %v2726 = vpack.c.bf16 %v2665, %v2664
    %v2727 = vpack.c.bf16 %v2667, %v2666
    %v2728 = vpack.c.bf16 %v2669, %v2668
    %v2729 = vpack.c.bf16 %v2671, %v2670
    %v2730 = vpack.c.bf16 %v2673, %v2672
    %v2731 = vpack.c.bf16 %v2675, %v2674
    %v2732 = vpack.c.bf16 %v2677, %v2676
    %v2733 = vpack.c.bf16 %v2679, %v2678
    %v2734 = vpack.c.bf16 %v2681, %v2680
    %v2735 = vpack.c.bf16 %v2683, %v2682
    %v2736 = vpack.c.bf16 %v2685, %v2684
    %v2737 = vpack.c.bf16 %v2687, %v2686
    %v2738 = vpack.c.bf16 %v2689, %v2688
    %v2739 = vpack.c.bf16 %v2691, %v2690
    %v2740 = vpack.c.bf16 %v2693, %v2692
    %v2741 = vpack.c.bf16 %v2695, %v2694
    %v2742 = vpack.c.bf16 %v2697, %v2696
    %v2743 = vpack.c.bf16 %v2699, %v2698
    %v2744 = vpack.c.bf16 %v2701, %v2700
    %v2745 = vpack.c.bf16 %v2703, %v2702
    %v2746 = vpack.c.bf16 %v2705, %v2704
    %v2747 = vpack.c.bf16 %v2707, %v2706
    %v2748 = vpack.c.bf16 %v2709, %v2708
    %v2749 = vpack.c.bf16 %v2711, %v2710
    %v2750 = vpack.c.bf16 %v2713, %v2712
    %v2751 = vpack.c.bf16 %v2715, %v2714
    %v2752 = vpack.c.bf16 %v2717, %v2716
    %v2753 = vpack.c.bf16 %v2719, %v2718
    %v2754 = vpack.c.bf16 %v2721, %v2720
    %v2755 = vpack.c.bf16 %v2723, %v2722
    %v2756 = vld [vmem:[%s2] sm:$0xf]
    %v2757 = vld [vmem:[%s2 + $0x4] sm:$0xf]
    %v2758 = vld [vmem:[%s2 + $0x8] sm:$0xf]
    %v2759 = vld [vmem:[%s2 + $0xc] sm:$0xf]
    %v2760 = vld [vmem:[%s2 + $0x10] sm:$0xf]
    %v2761 = vld [vmem:[%s2 + $0x14] sm:$0xf]
    %v2762 = vld [vmem:[%s2 + $0x18] sm:$0xf]
    %v2763 = vld [vmem:[%s2 + $0x1c] sm:$0xf]
    %v2764 = vld [vmem:[%s2 + $0x20] sm:$0xf]
    %v2765 = vld [vmem:[%s2 + $0x24] sm:$0xf]
    %v2766 = vld [vmem:[%s2 + $0x28] sm:$0xf]
    %v2767 = vld [vmem:[%s2 + $0x2c] sm:$0xf]
    %v2768 = vld [vmem:[%s2 + $0x30] sm:$0xf]
    %v2769 = vld [vmem:[%s2 + $0x34] sm:$0xf]
    %v2770 = vld [vmem:[%s2 + $0x38] sm:$0xf]
    %v2771 = vld [vmem:[%s2 + $0x3c] sm:$0xf]
    %v2772 = vlaneseq
    %v2773 = vshrl.u32 %v2772, 7
    %v2774 = vsub.s32 0, %v2773
    %v2775 = vrot.slane %v541, %v2774
    %v2792 = vunpack.c.l.b16 %v2756
    %v2793 = vunpack.c.l.b16 %v2757
    %v2794 = vunpack.c.l.b16 %v2758
    %v2795 = vunpack.c.l.b16 %v2759
    %v2796 = vunpack.c.l.b16 %v2760
    %v2797 = vunpack.c.l.b16 %v2761
    %v2798 = vunpack.c.l.b16 %v2762
    %v2799 = vunpack.c.l.b16 %v2763
    %v2800 = vunpack.c.l.b16 %v2764
    %v2801 = vunpack.c.l.b16 %v2765
    %v2802 = vunpack.c.l.b16 %v2766
    %v2803 = vunpack.c.l.b16 %v2767
    %v2804 = vunpack.c.l.b16 %v2768
    %v2805 = vunpack.c.l.b16 %v2769
    %v2806 = vunpack.c.l.b16 %v2770
    %v2807 = vunpack.c.l.b16 %v2771
    %v2808 = vpack.c.b16 %v2793, %v2792
    %v2809 = vpack.c.b16 %v2795, %v2794
    %v2810 = vpack.c.b16 %v2797, %v2796
    %v2811 = vpack.c.b16 %v2799, %v2798
    %v2812 = vpack.c.b16 %v2801, %v2800
    %v2813 = vpack.c.b16 %v2803, %v2802
    %v2814 = vpack.c.b16 %v2805, %v2804
    %v2815 = vpack.c.b16 %v2807, %v2806
    %2824 = vmatprep.subr.bf16.mxu0 0
    %2825 = vmatpush1.bf16.msra.mxu0 %v2815
    %2826 = vmatprep.subr.bf16.mxu0 0
    %2827 = vmatpush1.bf16.msra.mxu0 %v2814
    %2828 = vmatprep.subr.bf16.mxu0 0
    %2829 = vmatpush1.bf16.msra.mxu0 %v2813
    %2830 = vmatprep.subr.bf16.mxu0 0
    %2831 = vmatpush1.bf16.msra.mxu0 %v2812
    %2832 = vmatprep.subr.bf16.mxu0 0
    %2833 = vmatpush1.bf16.msra.mxu0 %v2811
    %2834 = vmatprep.subr.bf16.mxu0 0
    %2835 = vmatpush1.bf16.msra.mxu0 %v2810
    %2836 = vmatprep.subr.bf16.mxu0 0
    %2837 = vmatpush1.bf16.msra.mxu0 %v2809
    %2838 = vmatprep.subr.bf16.mxu0 0
    %2839 = vmatpush1.bf16.msra.mxu0 %v2808
    %2840 = vmatprep.subr.bf16.mxu0 0
    %2841 = vmatpush2.bf16.msra.mxu0 0
    %2842 = vmatprep.subr.bf16.mxu0 0
    %2843 = vmatpush2.bf16.msra.mxu0 0
    %2844 = vmatprep.subr.bf16.mxu0 0
    %2845 = vmatpush2.bf16.msra.mxu0 0
    %2846 = vmatprep.subr.bf16.mxu0 0
    %2847 = vmatpush2.bf16.msra.mxu0 0
    %2848 = vmatprep.subr.bf16.mxu0 0
    %2849 = vmatpush2.bf16.msra.mxu0 0
    %2850 = vmatprep.subr.bf16.mxu0 0
    %2851 = vmatpush2.bf16.msra.mxu0 0
    %2852 = vmatprep.subr.bf16.mxu0 0
    %2853 = vmatpush2.bf16.msra.mxu0 0
    %2854 = vmatprep.subr.bf16.mxu0 0
    %2855 = vmatpush2.bf16.msra.mxu0 0
    %2856 = vmatprep.mubr.bf16.mxu0 0
    %2857 = vmatmul.mubr.bf16.gmra.mxu0 %v2724
    %v2858 = vpop.f32.mrf.mxu0
    %v2859 = vadd.f32 %v2775, %v2858
    %v2860 = vpop.f32.mrf.mxu0
    %v2861 = vpop.f32.mrf.mxu0
    %v2862 = vadd.f32 %v2775, %v2861
    %v2863 = vpop.f32.mrf.mxu0
    %2864 = vmatprep.mubr.bf16.mxu0 0
    %2865 = vmatmul.mubr.bf16.gmra.mxu0 %v2725
    %v2866 = vpop.f32.mrf.mxu0
    %v2867 = vadd.f32 %v2775, %v2866
    %v2868 = vpop.f32.mrf.mxu0
    %v2869 = vpop.f32.mrf.mxu0
    %v2870 = vadd.f32 %v2775, %v2869
    %v2871 = vpop.f32.mrf.mxu0
    %2872 = vmatprep.mubr.bf16.mxu0 0
    %2873 = vmatmul.mubr.bf16.gmra.mxu0 %v2726
    %v2874 = vpop.f32.mrf.mxu0
    %v2875 = vadd.f32 %v2775, %v2874
    %v2876 = vpop.f32.mrf.mxu0
    %v2877 = vpop.f32.mrf.mxu0
    %v2878 = vadd.f32 %v2775, %v2877
    %v2879 = vpop.f32.mrf.mxu0
    %2880 = vmatprep.mubr.bf16.mxu0 0
    %2881 = vmatmul.mubr.bf16.gmra.mxu0 %v2727
    %v2882 = vpop.f32.mrf.mxu0
    %v2883 = vadd.f32 %v2775, %v2882
    %v2884 = vpop.f32.mrf.mxu0
    %v2885 = vpop.f32.mrf.mxu0
    %v2886 = vadd.f32 %v2775, %v2885
    %v2887 = vpop.f32.mrf.mxu0
    %2888 = vmatprep.mubr.bf16.mxu0 0
    %2889 = vmatmul.mubr.bf16.gmra.mxu0 %v2728
    %v2890 = vpop.f32.mrf.mxu0
    %v2891 = vadd.f32 %v2775, %v2890
    %v2892 = vpop.f32.mrf.mxu0
    %v2893 = vpop.f32.mrf.mxu0
    %v2894 = vadd.f32 %v2775, %v2893
    %v2895 = vpop.f32.mrf.mxu0
    %2896 = vmatprep.mubr.bf16.mxu0 0
    %2897 = vmatmul.mubr.bf16.gmra.mxu0 %v2729
    %v2898 = vpop.f32.mrf.mxu0
    %v2899 = vadd.f32 %v2775, %v2898
    %v2900 = vpop.f32.mrf.mxu0
    %v2901 = vpop.f32.mrf.mxu0
    %v2902 = vadd.f32 %v2775, %v2901
    %v2903 = vpop.f32.mrf.mxu0
    %2904 = vmatprep.mubr.bf16.mxu0 0
    %2905 = vmatmul.mubr.bf16.gmra.mxu0 %v2730
    %v2906 = vpop.f32.mrf.mxu0
    %v2907 = vadd.f32 %v2775, %v2906
    %v2908 = vpop.f32.mrf.mxu0
    %v2909 = vpop.f32.mrf.mxu0
    %v2910 = vadd.f32 %v2775, %v2909
    %v2911 = vpop.f32.mrf.mxu0
    %2912 = vmatprep.mubr.bf16.mxu0 0
    %2913 = vmatmul.mubr.bf16.gmra.mxu0 %v2731
    %v2914 = vpop.f32.mrf.mxu0
    %v2915 = vadd.f32 %v2775, %v2914
    %v2916 = vpop.f32.mrf.mxu0
    %v2917 = vpop.f32.mrf.mxu0
    %v2918 = vadd.f32 %v2775, %v2917
    %v2919 = vpop.f32.mrf.mxu0
    %2920 = vmatprep.mubr.bf16.mxu0 0
    %2921 = vmatmul.mubr.bf16.gmra.mxu0 %v2732
    %v2922 = vpop.f32.mrf.mxu0
    %v2923 = vadd.f32 %v2775, %v2922
    %v2924 = vpop.f32.mrf.mxu0
    %v2925 = vpop.f32.mrf.mxu0
    %v2926 = vadd.f32 %v2775, %v2925
    %v2927 = vpop.f32.mrf.mxu0
    %2928 = vmatprep.mubr.bf16.mxu0 0
    %2929 = vmatmul.mubr.bf16.gmra.mxu0 %v2733
    %v2930 = vpop.f32.mrf.mxu0
    %v2931 = vadd.f32 %v2775, %v2930
    %v2932 = vpop.f32.mrf.mxu0
    %v2933 = vpop.f32.mrf.mxu0
    %v2934 = vadd.f32 %v2775, %v2933
    %v2935 = vpop.f32.mrf.mxu0
    %2936 = vmatprep.mubr.bf16.mxu0 0
    %2937 = vmatmul.mubr.bf16.gmra.mxu0 %v2734
    %v2938 = vpop.f32.mrf.mxu0
    %v2939 = vadd.f32 %v2775, %v2938
    %v2940 = vpop.f32.mrf.mxu0
    %v2941 = vpop.f32.mrf.mxu0
    %v2942 = vadd.f32 %v2775, %v2941
    %v2943 = vpop.f32.mrf.mxu0
    %2944 = vmatprep.mubr.bf16.mxu0 0
    %2945 = vmatmul.mubr.bf16.gmra.mxu0 %v2735
    %v2946 = vpop.f32.mrf.mxu0
    %v2947 = vadd.f32 %v2775, %v2946
    %v2948 = vpop.f32.mrf.mxu0
    %v2949 = vpop.f32.mrf.mxu0
    %v2950 = vadd.f32 %v2775, %v2949
    %v2951 = vpop.f32.mrf.mxu0
    %2952 = vmatprep.mubr.bf16.mxu0 0
    %2953 = vmatmul.mubr.bf16.gmra.mxu0 %v2736
    %v2954 = vpop.f32.mrf.mxu0
    %v2955 = vadd.f32 %v2775, %v2954
    %v2956 = vpop.f32.mrf.mxu0
    %v2957 = vpop.f32.mrf.mxu0
    %v2958 = vadd.f32 %v2775, %v2957
    %v2959 = vpop.f32.mrf.mxu0
    %2960 = vmatprep.mubr.bf16.mxu0 0
    %2961 = vmatmul.mubr.bf16.gmra.mxu0 %v2737
    %v2962 = vpop.f32.mrf.mxu0
    %v2963 = vadd.f32 %v2775, %v2962
    %v2964 = vpop.f32.mrf.mxu0
    %v2965 = vpop.f32.mrf.mxu0
    %v2966 = vadd.f32 %v2775, %v2965
    %v2967 = vpop.f32.mrf.mxu0
    %2968 = vmatprep.mubr.bf16.mxu0 0
    %2969 = vmatmul.mubr.bf16.gmra.mxu0 %v2738
    %v2970 = vpop.f32.mrf.mxu0
    %v2971 = vadd.f32 %v2775, %v2970
    %v2972 = vpop.f32.mrf.mxu0
    %v2973 = vpop.f32.mrf.mxu0
    %v2974 = vadd.f32 %v2775, %v2973
    %v2975 = vpop.f32.mrf.mxu0
    %2976 = vmatprep.mubr.bf16.mxu0 0
    %2977 = vmatmul.mubr.bf16.gmra.mxu0 %v2739
    %v2978 = vpop.f32.mrf.mxu0
    %v2979 = vadd.f32 %v2775, %v2978
    %v2980 = vpop.f32.mrf.mxu0
    %v2981 = vpop.f32.mrf.mxu0
    %v2982 = vadd.f32 %v2775, %v2981
    %v2983 = vpop.f32.mrf.mxu0
    %2984 = vmatprep.mubr.bf16.mxu0 0
    %2985 = vmatmul.mubr.bf16.gmra.mxu0 %v2740
    %v2986 = vpop.f32.mrf.mxu0
    %v2987 = vadd.f32 %v2775, %v2986
    %v2988 = vpop.f32.mrf.mxu0
    %v2989 = vpop.f32.mrf.mxu0
    %v2990 = vadd.f32 %v2775, %v2989
    %v2991 = vpop.f32.mrf.mxu0
    %2992 = vmatprep.mubr.bf16.mxu0 0
    %2993 = vmatmul.mubr.bf16.gmra.mxu0 %v2741
    %v2994 = vpop.f32.mrf.mxu0
    %v2995 = vadd.f32 %v2775, %v2994
    %v2996 = vpop.f32.mrf.mxu0
    %v2997 = vpop.f32.mrf.mxu0
    %v2998 = vadd.f32 %v2775, %v2997
    %v2999 = vpop.f32.mrf.mxu0
    %3000 = vmatprep.mubr.bf16.mxu0 0
    %3001 = vmatmul.mubr.bf16.gmra.mxu0 %v2742
    %v3002 = vpop.f32.mrf.mxu0
    %v3003 = vadd.f32 %v2775, %v3002
    %v3004 = vpop.f32.mrf.mxu0
    %v3005 = vpop.f32.mrf.mxu0
    %v3006 = vadd.f32 %v2775, %v3005
    %v3007 = vpop.f32.mrf.mxu0
    %3008 = vmatprep.mubr.bf16.mxu0 0
    %3009 = vmatmul.mubr.bf16.gmra.mxu0 %v2743
    %v3010 = vpop.f32.mrf.mxu0
    %v3011 = vadd.f32 %v2775, %v3010
    %v3012 = vpop.f32.mrf.mxu0
    %v3013 = vpop.f32.mrf.mxu0
    %v3014 = vadd.f32 %v2775, %v3013
    %v3015 = vpop.f32.mrf.mxu0
    %3016 = vmatprep.mubr.bf16.mxu0 0
    %3017 = vmatmul.mubr.bf16.gmra.mxu0 %v2744
    %v3018 = vpop.f32.mrf.mxu0
    %v3019 = vadd.f32 %v2775, %v3018
    %v3020 = vpop.f32.mrf.mxu0
    %v3021 = vpop.f32.mrf.mxu0
    %v3022 = vadd.f32 %v2775, %v3021
    %v3023 = vpop.f32.mrf.mxu0
    %3024 = vmatprep.mubr.bf16.mxu0 0
    %3025 = vmatmul.mubr.bf16.gmra.mxu0 %v2745
    %v3026 = vpop.f32.mrf.mxu0
    %v3027 = vadd.f32 %v2775, %v3026
    %v3028 = vpop.f32.mrf.mxu0
    %v3029 = vpop.f32.mrf.mxu0
    %v3030 = vadd.f32 %v2775, %v3029
    %v3031 = vpop.f32.mrf.mxu0
    %3032 = vmatprep.mubr.bf16.mxu0 0
    %3033 = vmatmul.mubr.bf16.gmra.mxu0 %v2746
    %v3034 = vpop.f32.mrf.mxu0
    %v3035 = vadd.f32 %v2775, %v3034
    %v3036 = vpop.f32.mrf.mxu0
    %v3037 = vpop.f32.mrf.mxu0
    %v3038 = vadd.f32 %v2775, %v3037
    %v3039 = vpop.f32.mrf.mxu0
    %3040 = vmatprep.mubr.bf16.mxu0 0
    %3041 = vmatmul.mubr.bf16.gmra.mxu0 %v2747
    %v3042 = vpop.f32.mrf.mxu0
    %v3043 = vadd.f32 %v2775, %v3042
    %v3044 = vpop.f32.mrf.mxu0
    %v3045 = vpop.f32.mrf.mxu0
    %v3046 = vadd.f32 %v2775, %v3045
    %v3047 = vpop.f32.mrf.mxu0
    %3048 = vmatprep.mubr.bf16.mxu0 0
    %3049 = vmatmul.mubr.bf16.gmra.mxu0 %v2748
    %v3050 = vpop.f32.mrf.mxu0
    %v3051 = vadd.f32 %v2775, %v3050
    %v3052 = vpop.f32.mrf.mxu0
    %v3053 = vpop.f32.mrf.mxu0
    %v3054 = vadd.f32 %v2775, %v3053
    %v3055 = vpop.f32.mrf.mxu0
    %3056 = vmatprep.mubr.bf16.mxu0 0
    %3057 = vmatmul.mubr.bf16.gmra.mxu0 %v2749
    %v3058 = vpop.f32.mrf.mxu0
    %v3059 = vadd.f32 %v2775, %v3058
    %v3060 = vpop.f32.mrf.mxu0
    %v3061 = vpop.f32.mrf.mxu0
    %v3062 = vadd.f32 %v2775, %v3061
    %v3063 = vpop.f32.mrf.mxu0
    %3064 = vmatprep.mubr.bf16.mxu0 0
    %3065 = vmatmul.mubr.bf16.gmra.mxu0 %v2750
    %v3066 = vpop.f32.mrf.mxu0
    %v3067 = vadd.f32 %v2775, %v3066
    %v3068 = vpop.f32.mrf.mxu0
    %v3069 = vpop.f32.mrf.mxu0
    %v3070 = vadd.f32 %v2775, %v3069
    %v3071 = vpop.f32.mrf.mxu0
    %3072 = vmatprep.mubr.bf16.mxu0 0
    %3073 = vmatmul.mubr.bf16.gmra.mxu0 %v2751
    %v3074 = vpop.f32.mrf.mxu0
    %v3075 = vadd.f32 %v2775, %v3074
    %v3076 = vpop.f32.mrf.mxu0
    %v3077 = vpop.f32.mrf.mxu0
    %v3078 = vadd.f32 %v2775, %v3077
    %v3079 = vpop.f32.mrf.mxu0
    %3080 = vmatprep.mubr.bf16.mxu0 0
    %3081 = vmatmul.mubr.bf16.gmra.mxu0 %v2752
    %v3082 = vpop.f32.mrf.mxu0
    %v3083 = vadd.f32 %v2775, %v3082
    %v3084 = vpop.f32.mrf.mxu0
    %v3085 = vpop.f32.mrf.mxu0
    %v3086 = vadd.f32 %v2775, %v3085
    %v3087 = vpop.f32.mrf.mxu0
    %3088 = vmatprep.mubr.bf16.mxu0 0
    %3089 = vmatmul.mubr.bf16.gmra.mxu0 %v2753
    %v3090 = vpop.f32.mrf.mxu0
    %v3091 = vadd.f32 %v2775, %v3090
    %v3092 = vpop.f32.mrf.mxu0
    %v3093 = vpop.f32.mrf.mxu0
    %v3094 = vadd.f32 %v2775, %v3093
    %v3095 = vpop.f32.mrf.mxu0
    %3096 = vmatprep.mubr.bf16.mxu0 0
    %3097 = vmatmul.mubr.bf16.gmra.mxu0 %v2754
    %v3098 = vpop.f32.mrf.mxu0
    %v3099 = vadd.f32 %v2775, %v3098
    %v3100 = vpop.f32.mrf.mxu0
    %v3101 = vpop.f32.mrf.mxu0
    %v3102 = vadd.f32 %v2775, %v3101
    %v3103 = vpop.f32.mrf.mxu0
    %3104 = vmatprep.mubr.bf16.mxu0 0
    %3105 = vmatmul.mubr.bf16.gmra.mxu0 %v2755
    %v3106 = vpop.f32.mrf.mxu0
    %v3107 = vadd.f32 %v2775, %v3106
    %v3108 = vpop.f32.mrf.mxu0
    %v3109 = vpop.f32.mrf.mxu0
    %v3110 = vadd.f32 %v2775, %v3109
    %v3111 = vpop.f32.mrf.mxu0
    %3112 = vdwg.mxu0
    %v3113 = vmul.f32 %v2859, 0.5
    %v3114 = vmul.f32 %v2862, 0.5
    %v3115 = vmul.f32 %v2867, 0.5
    %v3116 = vmul.f32 %v2870, 0.5
    %v3117 = vmul.f32 %v2875, 0.5
    %v3118 = vmul.f32 %v2878, 0.5
    %v3119 = vmul.f32 %v2883, 0.5
    %v3120 = vmul.f32 %v2886, 0.5
    %v3121 = vmul.f32 %v2891, 0.5
    %v3122 = vmul.f32 %v2894, 0.5
    %v3123 = vmul.f32 %v2899, 0.5
    %v3124 = vmul.f32 %v2902, 0.5
    %v3125 = vmul.f32 %v2907, 0.5
    %v3126 = vmul.f32 %v2910, 0.5
    %v3127 = vmul.f32 %v2915, 0.5
    %v3128 = vmul.f32 %v2918, 0.5
    %v3129 = vmul.f32 %v2923, 0.5
    %v3130 = vmul.f32 %v2926, 0.5
    %v3131 = vmul.f32 %v2931, 0.5
    %v3132 = vmul.f32 %v2934, 0.5
    %v3133 = vmul.f32 %v2939, 0.5
    %v3134 = vmul.f32 %v2942, 0.5
    %v3135 = vmul.f32 %v2947, 0.5
    %v3136 = vmul.f32 %v2950, 0.5
    %v3137 = vmul.f32 %v2955, 0.5
    %v3138 = vmul.f32 %v2958, 0.5
    %v3139 = vmul.f32 %v2963, 0.5
    %v3140 = vmul.f32 %v2966, 0.5
    %v3141 = vmul.f32 %v2971, 0.5
    %v3142 = vmul.f32 %v2974, 0.5
    %v3143 = vmul.f32 %v2979, 0.5
    %v3144 = vmul.f32 %v2982, 0.5
    %v3145 = vmul.f32 %v2987, 0.5
    %v3146 = vmul.f32 %v2990, 0.5
    %v3147 = vmul.f32 %v2995, 0.5
    %v3148 = vmul.f32 %v2998, 0.5
    %v3149 = vmul.f32 %v3003, 0.5
    %v3150 = vmul.f32 %v3006, 0.5
    %v3151 = vmul.f32 %v3011, 0.5
    %v3152 = vmul.f32 %v3014, 0.5
    %v3153 = vmul.f32 %v3019, 0.5
    %v3154 = vmul.f32 %v3022, 0.5
    %v3155 = vmul.f32 %v3027, 0.5
    %v3156 = vmul.f32 %v3030, 0.5
    %v3157 = vmul.f32 %v3035, 0.5
    %v3158 = vmul.f32 %v3038, 0.5
    %v3159 = vmul.f32 %v3043, 0.5
    %v3160 = vmul.f32 %v3046, 0.5
    %v3161 = vmul.f32 %v3051, 0.5
    %v3162 = vmul.f32 %v3054, 0.5
    %v3163 = vmul.f32 %v3059, 0.5
    %v3164 = vmul.f32 %v3062, 0.5
    %v3165 = vmul.f32 %v3067, 0.5
    %v3166 = vmul.f32 %v3070, 0.5
    %v3167 = vmul.f32 %v3075, 0.5
    %v3168 = vmul.f32 %v3078, 0.5
    %v3169 = vmul.f32 %v3083, 0.5
    %v3170 = vmul.f32 %v3086, 0.5
    %v3171 = vmul.f32 %v3091, 0.5
    %v3172 = vmul.f32 %v3094, 0.5
    %v3173 = vmul.f32 %v3099, 0.5
    %v3174 = vmul.f32 %v3102, 0.5
    %v3175 = vmul.f32 %v3107, 0.5
    %v3176 = vmul.f32 %v3110, 0.5
    %v3177 = vmul.f32 %v2859, 0.044715
    %v3178 = vmul.f32 %v2862, 0.044715
    %v3179 = vmul.f32 %v2867, 0.044715
    %v3180 = vmul.f32 %v2870, 0.044715
    %v3181 = vmul.f32 %v2875, 0.044715
    %v3182 = vmul.f32 %v2878, 0.044715
    %v3183 = vmul.f32 %v2883, 0.044715
    %v3184 = vmul.f32 %v2886, 0.044715
    %v3185 = vmul.f32 %v2891, 0.044715
    %v3186 = vmul.f32 %v2894, 0.044715
    %v3187 = vmul.f32 %v2899, 0.044715
    %v3188 = vmul.f32 %v2902, 0.044715
    %v3189 = vmul.f32 %v2907, 0.044715
    %v3190 = vmul.f32 %v2910, 0.044715
    %v3191 = vmul.f32 %v2915, 0.044715
    %v3192 = vmul.f32 %v2918, 0.044715
    %v3193 = vmul.f32 %v2923, 0.044715
    %v3194 = vmul.f32 %v2926, 0.044715
    %v3195 = vmul.f32 %v2931, 0.044715
    %v3196 = vmul.f32 %v2934, 0.044715
    %v3197 = vmul.f32 %v2939, 0.044715
    %v3198 = vmul.f32 %v2942, 0.044715
    %v3199 = vmul.f32 %v2947, 0.044715
    %v3200 = vmul.f32 %v2950, 0.044715
    %v3201 = vmul.f32 %v2955, 0.044715
    %v3202 = vmul.f32 %v2958, 0.044715
    %v3203 = vmul.f32 %v2963, 0.044715
    %v3204 = vmul.f32 %v2966, 0.044715
    %v3205 = vmul.f32 %v2971, 0.044715
    %v3206 = vmul.f32 %v2974, 0.044715
    %v3207 = vmul.f32 %v2979, 0.044715
    %v3208 = vmul.f32 %v2982, 0.044715
    %v3209 = vmul.f32 %v2987, 0.044715
    %v3210 = vmul.f32 %v2990, 0.044715
    %v3211 = vmul.f32 %v2995, 0.044715
    %v3212 = vmul.f32 %v2998, 0.044715
    %v3213 = vmul.f32 %v3003, 0.044715
    %v3214 = vmul.f32 %v3006, 0.044715
    %v3215 = vmul.f32 %v3011, 0.044715
    %v3216 = vmul.f32 %v3014, 0.044715
    %v3217 = vmul.f32 %v3019, 0.044715
    %v3218 = vmul.f32 %v3022, 0.044715
    %v3219 = vmul.f32 %v3027, 0.044715
    %v3220 = vmul.f32 %v3030, 0.044715
    %v3221 = vmul.f32 %v3035, 0.044715
    %v3222 = vmul.f32 %v3038, 0.044715
    %v3223 = vmul.f32 %v3043, 0.044715
    %v3224 = vmul.f32 %v3046, 0.044715
    %v3225 = vmul.f32 %v3051, 0.044715
    %v3226 = vmul.f32 %v3054, 0.044715
    %v3227 = vmul.f32 %v3059, 0.044715
    %v3228 = vmul.f32 %v3062, 0.044715
    %v3229 = vmul.f32 %v3067, 0.044715
    %v3230 = vmul.f32 %v3070, 0.044715
    %v3231 = vmul.f32 %v3075, 0.044715
    %v3232 = vmul.f32 %v3078, 0.044715
    %v3233 = vmul.f32 %v3083, 0.044715
    %v3234 = vmul.f32 %v3086, 0.044715
    %v3235 = vmul.f32 %v3091, 0.044715
    %v3236 = vmul.f32 %v3094, 0.044715
    %v3237 = vmul.f32 %v3099, 0.044715
    %v3238 = vmul.f32 %v3102, 0.044715
    %v3239 = vmul.f32 %v3107, 0.044715
    %v3240 = vmul.f32 %v3110, 0.044715
    %v3241 = vmul.f32 %v3177, %v2859
    %v3242 = vmul.f32 %v3178, %v2862
    %v3243 = vmul.f32 %v3179, %v2867
    %v3244 = vmul.f32 %v3180, %v2870
    %v3245 = vmul.f32 %v3181, %v2875
    %v3246 = vmul.f32 %v3182, %v2878
    %v3247 = vmul.f32 %v3183, %v2883
    %v3248 = vmul.f32 %v3184, %v2886
    %v3249 = vmul.f32 %v3185, %v2891
    %v3250 = vmul.f32 %v3186, %v2894
    %v3251 = vmul.f32 %v3187, %v2899
    %v3252 = vmul.f32 %v3188, %v2902
    %v3253 = vmul.f32 %v3189, %v2907
    %v3254 = vmul.f32 %v3190, %v2910
    %v3255 = vmul.f32 %v3191, %v2915
    %v3256 = vmul.f32 %v3192, %v2918
    %v3257 = vmul.f32 %v3193, %v2923
    %v3258 = vmul.f32 %v3194, %v2926
    %v3259 = vmul.f32 %v3195, %v2931
    %v3260 = vmul.f32 %v3196, %v2934
    %v3261 = vmul.f32 %v3197, %v2939
    %v3262 = vmul.f32 %v3198, %v2942
    %v3263 = vmul.f32 %v3199, %v2947
    %v3264 = vmul.f32 %v3200, %v2950
    %v3265 = vmul.f32 %v3201, %v2955
    %v3266 = vmul.f32 %v3202, %v2958
    %v3267 = vmul.f32 %v3203, %v2963
    %v3268 = vmul.f32 %v3204, %v2966
    %v3269 = vmul.f32 %v3205, %v2971
    %v3270 = vmul.f32 %v3206, %v2974
    %v3271 = vmul.f32 %v3207, %v2979
    %v3272 = vmul.f32 %v3208, %v2982
    %v3273 = vmul.f32 %v3209, %v2987
    %v3274 = vmul.f32 %v3210, %v2990
    %v3275 = vmul.f32 %v3211, %v2995
    %v3276 = vmul.f32 %v3212, %v2998
    %v3277 = vmul.f32 %v3213, %v3003
    %v3278 = vmul.f32 %v3214, %v3006
    %v3279 = vmul.f32 %v3215, %v3011
    %v3280 = vmul.f32 %v3216, %v3014
    %v3281 = vmul.f32 %v3217, %v3019
    %v3282 = vmul.f32 %v3218, %v3022
    %v3283 = vmul.f32 %v3219, %v3027
    %v3284 = vmul.f32 %v3220, %v3030
    %v3285 = vmul.f32 %v3221, %v3035
    %v3286 = vmul.f32 %v3222, %v3038
    %v3287 = vmul.f32 %v3223, %v3043
    %v3288 = vmul.f32 %v3224, %v3046
    %v3289 = vmul.f32 %v3225, %v3051
    %v3290 = vmul.f32 %v3226, %v3054
    %v3291 = vmul.f32 %v3227, %v3059
    %v3292 = vmul.f32 %v3228, %v3062
    %v3293 = vmul.f32 %v3229, %v3067
    %v3294 = vmul.f32 %v3230, %v3070
    %v3295 = vmul.f32 %v3231, %v3075
    %v3296 = vmul.f32 %v3232, %v3078
    %v3297 = vmul.f32 %v3233, %v3083
    %v3298 = vmul.f32 %v3234, %v3086
    %v3299 = vmul.f32 %v3235, %v3091
    %v3300 = vmul.f32 %v3236, %v3094
    %v3301 = vmul.f32 %v3237, %v3099
    %v3302 = vmul.f32 %v3238, %v3102
    %v3303 = vmul.f32 %v3239, %v3107
    %v3304 = vmul.f32 %v3240, %v3110
    %v3305 = vmul.f32 %v3241, %v2859
    %v3306 = vmul.f32 %v3242, %v2862
    %v3307 = vmul.f32 %v3243, %v2867
    %v3308 = vmul.f32 %v3244, %v2870
    %v3309 = vmul.f32 %v3245, %v2875
    %v3310 = vmul.f32 %v3246, %v2878
    %v3311 = vmul.f32 %v3247, %v2883
    %v3312 = vmul.f32 %v3248, %v2886
    %v3313 = vmul.f32 %v3249, %v2891
    %v3314 = vmul.f32 %v3250, %v2894
    %v3315 = vmul.f32 %v3251, %v2899
    %v3316 = vmul.f32 %v3252, %v2902
    %v3317 = vmul.f32 %v3253, %v2907
    %v3318 = vmul.f32 %v3254, %v2910
    %v3319 = vmul.f32 %v3255, %v2915
    %v3320 = vmul.f32 %v3256, %v2918
    %v3321 = vmul.f32 %v3257, %v2923
    %v3322 = vmul.f32 %v3258, %v2926
    %v3323 = vmul.f32 %v3259, %v2931
    %v3324 = vmul.f32 %v3260, %v2934
    %v3325 = vmul.f32 %v3261, %v2939
    %v3326 = vmul.f32 %v3262, %v2942
    %v3327 = vmul.f32 %v3263, %v2947
    %v3328 = vmul.f32 %v3264, %v2950
    %v3329 = vmul.f32 %v3265, %v2955
    %v3330 = vmul.f32 %v3266, %v2958
    %v3331 = vmul.f32 %v3267, %v2963
    %v3332 = vmul.f32 %v3268, %v2966
    %v3333 = vmul.f32 %v3269, %v2971
    %v3334 = vmul.f32 %v3270, %v2974
    %v3335 = vmul.f32 %v3271, %v2979
    %v3336 = vmul.f32 %v3272, %v2982
    %v3337 = vmul.f32 %v3273, %v2987
    %v3338 = vmul.f32 %v3274, %v2990
    %v3339 = vmul.f32 %v3275, %v2995
    %v3340 = vmul.f32 %v3276, %v2998
    %v3341 = vmul.f32 %v3277, %v3003
    %v3342 = vmul.f32 %v3278, %v3006
    %v3343 = vmul.f32 %v3279, %v3011
    %v3344 = vmul.f32 %v3280, %v3014
    %v3345 = vmul.f32 %v3281, %v3019
    %v3346 = vmul.f32 %v3282, %v3022
    %v3347 = vmul.f32 %v3283, %v3027
    %v3348 = vmul.f32 %v3284, %v3030
    %v3349 = vmul.f32 %v3285, %v3035
    %v3350 = vmul.f32 %v3286, %v3038
    %v3351 = vmul.f32 %v3287, %v3043
    %v3352 = vmul.f32 %v3288, %v3046
    %v3353 = vmul.f32 %v3289, %v3051
    %v3354 = vmul.f32 %v3290, %v3054
    %v3355 = vmul.f32 %v3291, %v3059
    %v3356 = vmul.f32 %v3292, %v3062
    %v3357 = vmul.f32 %v3293, %v3067
    %v3358 = vmul.f32 %v3294, %v3070
    %v3359 = vmul.f32 %v3295, %v3075
    %v3360 = vmul.f32 %v3296, %v3078
    %v3361 = vmul.f32 %v3297, %v3083
    %v3362 = vmul.f32 %v3298, %v3086
    %v3363 = vmul.f32 %v3299, %v3091
    %v3364 = vmul.f32 %v3300, %v3094
    %v3365 = vmul.f32 %v3301, %v3099
    %v3366 = vmul.f32 %v3302, %v3102
    %v3367 = vmul.f32 %v3303, %v3107
    %v3368 = vmul.f32 %v3304, %v3110
    %v3369 = vadd.f32 %v2859, %v3305
    %v3370 = vadd.f32 %v2862, %v3306
    %v3371 = vadd.f32 %v2867, %v3307
    %v3372 = vadd.f32 %v2870, %v3308
    %v3373 = vadd.f32 %v2875, %v3309
    %v3374 = vadd.f32 %v2878, %v3310
    %v3375 = vadd.f32 %v2883, %v3311
    %v3376 = vadd.f32 %v2886, %v3312
    %v3377 = vadd.f32 %v2891, %v3313
    %v3378 = vadd.f32 %v2894, %v3314
    %v3379 = vadd.f32 %v2899, %v3315
    %v3380 = vadd.f32 %v2902, %v3316
    %v3381 = vadd.f32 %v2907, %v3317
    %v3382 = vadd.f32 %v2910, %v3318
    %v3383 = vadd.f32 %v2915, %v3319
    %v3384 = vadd.f32 %v2918, %v3320
    %v3385 = vadd.f32 %v2923, %v3321
    %v3386 = vadd.f32 %v2926, %v3322
    %v3387 = vadd.f32 %v2931, %v3323
    %v3388 = vadd.f32 %v2934, %v3324
    %v3389 = vadd.f32 %v2939, %v3325
    %v3390 = vadd.f32 %v2942, %v3326
    %v3391 = vadd.f32 %v2947, %v3327
    %v3392 = vadd.f32 %v2950, %v3328
    %v3393 = vadd.f32 %v2955, %v3329
    %v3394 = vadd.f32 %v2958, %v3330
    %v3395 = vadd.f32 %v2963, %v3331
    %v3396 = vadd.f32 %v2966, %v3332
    %v3397 = vadd.f32 %v2971, %v3333
    %v3398 = vadd.f32 %v2974, %v3334
    %v3399 = vadd.f32 %v2979, %v3335
    %v3400 = vadd.f32 %v2982, %v3336
    %v3401 = vadd.f32 %v2987, %v3337
    %v3402 = vadd.f32 %v2990, %v3338
    %v3403 = vadd.f32 %v2995, %v3339
    %v3404 = vadd.f32 %v2998, %v3340
    %v3405 = vadd.f32 %v3003, %v3341
    %v3406 = vadd.f32 %v3006, %v3342
    %v3407 = vadd.f32 %v3011, %v3343
    %v3408 = vadd.f32 %v3014, %v3344
    %v3409 = vadd.f32 %v3019, %v3345
    %v3410 = vadd.f32 %v3022, %v3346
    %v3411 = vadd.f32 %v3027, %v3347
    %v3412 = vadd.f32 %v3030, %v3348
    %v3413 = vadd.f32 %v3035, %v3349
    %v3414 = vadd.f32 %v3038, %v3350
    %v3415 = vadd.f32 %v3043, %v3351
    %v3416 = vadd.f32 %v3046, %v3352
    %v3417 = vadd.f32 %v3051, %v3353
    %v3418 = vadd.f32 %v3054, %v3354
    %v3419 = vadd.f32 %v3059, %v3355
    %v3420 = vadd.f32 %v3062, %v3356
    %v3421 = vadd.f32 %v3067, %v3357
    %v3422 = vadd.f32 %v3070, %v3358
    %v3423 = vadd.f32 %v3075, %v3359
    %v3424 = vadd.f32 %v3078, %v3360
    %v3425 = vadd.f32 %v3083, %v3361
    %v3426 = vadd.f32 %v3086, %v3362
    %v3427 = vadd.f32 %v3091, %v3363
    %v3428 = vadd.f32 %v3094, %v3364
    %v3429 = vadd.f32 %v3099, %v3365
    %v3430 = vadd.f32 %v3102, %v3366
    %v3431 = vadd.f32 %v3107, %v3367
    %v3432 = vadd.f32 %v3110, %v3368
    %v3433 = vmul.f32 %v3369, 0.7978846
    %v3434 = vmul.f32 %v3370, 0.7978846
    %v3435 = vmul.f32 %v3371, 0.7978846
    %v3436 = vmul.f32 %v3372, 0.7978846
    %v3437 = vmul.f32 %v3373, 0.7978846
    %v3438 = vmul.f32 %v3374, 0.7978846
    %v3439 = vmul.f32 %v3375, 0.7978846
    %v3440 = vmul.f32 %v3376, 0.7978846
    %v3441 = vmul.f32 %v3377, 0.7978846
    %v3442 = vmul.f32 %v3378, 0.7978846
    %v3443 = vmul.f32 %v3379, 0.7978846
    %v3444 = vmul.f32 %v3380, 0.7978846
    %v3445 = vmul.f32 %v3381, 0.7978846
    %v3446 = vmul.f32 %v3382, 0.7978846
    %v3447 = vmul.f32 %v3383, 0.7978846
    %v3448 = vmul.f32 %v3384, 0.7978846
    %v3449 = vmul.f32 %v3385, 0.7978846
    %v3450 = vmul.f32 %v3386, 0.7978846
    %v3451 = vmul.f32 %v3387, 0.7978846
    %v3452 = vmul.f32 %v3388, 0.7978846
    %v3453 = vmul.f32 %v3389, 0.7978846
    %v3454 = vmul.f32 %v3390, 0.7978846
    %v3455 = vmul.f32 %v3391, 0.7978846
    %v3456 = vmul.f32 %v3392, 0.7978846
    %v3457 = vmul.f32 %v3393, 0.7978846
    %v3458 = vmul.f32 %v3394, 0.7978846
    %v3459 = vmul.f32 %v3395, 0.7978846
    %v3460 = vmul.f32 %v3396, 0.7978846
    %v3461 = vmul.f32 %v3397, 0.7978846
    %v3462 = vmul.f32 %v3398, 0.7978846
    %v3463 = vmul.f32 %v3399, 0.7978846
    %v3464 = vmul.f32 %v3400, 0.7978846
    %v3465 = vmul.f32 %v3401, 0.7978846
    %v3466 = vmul.f32 %v3402, 0.7978846
    %v3467 = vmul.f32 %v3403, 0.7978846
    %v3468 = vmul.f32 %v3404, 0.7978846
    %v3469 = vmul.f32 %v3405, 0.7978846
    %v3470 = vmul.f32 %v3406, 0.7978846
    %v3471 = vmul.f32 %v3407, 0.7978846
    %v3472 = vmul.f32 %v3408, 0.7978846
    %v3473 = vmul.f32 %v3409, 0.7978846
    %v3474 = vmul.f32 %v3410, 0.7978846
    %v3475 = vmul.f32 %v3411, 0.7978846
    %v3476 = vmul.f32 %v3412, 0.7978846
    %v3477 = vmul.f32 %v3413, 0.7978846
    %v3478 = vmul.f32 %v3414, 0.7978846
    %v3479 = vmul.f32 %v3415, 0.7978846
    %v3480 = vmul.f32 %v3416, 0.7978846
    %v3481 = vmul.f32 %v3417, 0.7978846
    %v3482 = vmul.f32 %v3418, 0.7978846
    %v3483 = vmul.f32 %v3419, 0.7978846
    %v3484 = vmul.f32 %v3420, 0.7978846
    %v3485 = vmul.f32 %v3421, 0.7978846
    %v3486 = vmul.f32 %v3422, 0.7978846
    %v3487 = vmul.f32 %v3423, 0.7978846
    %v3488 = vmul.f32 %v3424, 0.7978846
    %v3489 = vmul.f32 %v3425, 0.7978846
    %v3490 = vmul.f32 %v3426, 0.7978846
    %v3491 = vmul.f32 %v3427, 0.7978846
    %v3492 = vmul.f32 %v3428, 0.7978846
    %v3493 = vmul.f32 %v3429, 0.7978846
    %v3494 = vmul.f32 %v3430, 0.7978846
    %v3495 = vmul.f32 %v3431, 0.7978846
    %v3496 = vmul.f32 %v3432, 0.7978846
    %v3497 = vtanh.pop %v3433
    %v3498 = vtanh.pop %v3434
    %v3499 = vtanh.pop %v3435
    %v3500 = vtanh.pop %v3436
    %v3501 = vtanh.pop %v3437
    %v3502 = vtanh.pop %v3438
    %v3503 = vtanh.pop %v3439
    %v3504 = vtanh.pop %v3440
    %v3505 = vtanh.pop %v3441
    %v3506 = vtanh.pop %v3442
    %v3507 = vtanh.pop %v3443
    %v3508 = vtanh.pop %v3444
    %v3509 = vtanh.pop %v3445
    %v3510 = vtanh.pop %v3446
    %v3511 = vtanh.pop %v3447
    %v3512 = vtanh.pop %v3448
    %v3513 = vtanh.pop %v3449
    %v3514 = vtanh.pop %v3450
    %v3515 = vtanh.pop %v3451
    %v3516 = vtanh.pop %v3452
    %v3517 = vtanh.pop %v3453
    %v3518 = vtanh.pop %v3454
    %v3519 = vtanh.pop %v3455
    %v3520 = vtanh.pop %v3456
    %v3521 = vtanh.pop %v3457
    %v3522 = vtanh.pop %v3458
    %v3523 = vtanh.pop %v3459
    %v3524 = vtanh.pop %v3460
    %v3525 = vtanh.pop %v3461
    %v3526 = vtanh.pop %v3462
    %v3527 = vtanh.pop %v3463
    %v3528 = vtanh.pop %v3464
    %v3529 = vtanh.pop %v3465
    %v3530 = vtanh.pop %v3466
    %v3531 = vtanh.pop %v3467
    %v3532 = vtanh.pop %v3468
    %v3533 = vtanh.pop %v3469
    %v3534 = vtanh.pop %v3470
    %v3535 = vtanh.pop %v3471
    %v3536 = vtanh.pop %v3472
    %v3537 = vtanh.pop %v3473
    %v3538 = vtanh.pop %v3474
    %v3539 = vtanh.pop %v3475
    %v3540 = vtanh.pop %v3476
    %v3541 = vtanh.pop %v3477
    %v3542 = vtanh.pop %v3478
    %v3543 = vtanh.pop %v3479
    %v3544 = vtanh.pop %v3480
    %v3545 = vtanh.pop %v3481
    %v3546 = vtanh.pop %v3482
    %v3547 = vtanh.pop %v3483
    %v3548 = vtanh.pop %v3484
    %v3549 = vtanh.pop %v3485
    %v3550 = vtanh.pop %v3486
    %v3551 = vtanh.pop %v3487
    %v3552 = vtanh.pop %v3488
    %v3553 = vtanh.pop %v3489
    %v3554 = vtanh.pop %v3490
    %v3555 = vtanh.pop %v3491
    %v3556 = vtanh.pop %v3492
    %v3557 = vtanh.pop %v3493
    %v3558 = vtanh.pop %v3494
    %v3559 = vtanh.pop %v3495
    %v3560 = vtanh.pop %v3496
    %v3561 = vadd.f32 %v3497, 1.0
    %v3562 = vadd.f32 %v3498, 1.0
    %v3563 = vadd.f32 %v3499, 1.0
    %v3564 = vadd.f32 %v3500, 1.0
    %v3565 = vadd.f32 %v3501, 1.0
    %v3566 = vadd.f32 %v3502, 1.0
    %v3567 = vadd.f32 %v3503, 1.0
    %v3568 = vadd.f32 %v3504, 1.0
    %v3569 = vadd.f32 %v3505, 1.0
    %v3570 = vadd.f32 %v3506, 1.0
    %v3571 = vadd.f32 %v3507, 1.0
    %v3572 = vadd.f32 %v3508, 1.0
    %v3573 = vadd.f32 %v3509, 1.0
    %v3574 = vadd.f32 %v3510, 1.0
    %v3575 = vadd.f32 %v3511, 1.0
    %v3576 = vadd.f32 %v3512, 1.0
    %v3577 = vadd.f32 %v3513, 1.0
    %v3578 = vadd.f32 %v3514, 1.0
    %v3579 = vadd.f32 %v3515, 1.0
    %v3580 = vadd.f32 %v3516, 1.0
    %v3581 = vadd.f32 %v3517, 1.0
    %v3582 = vadd.f32 %v3518, 1.0
    %v3583 = vadd.f32 %v3519, 1.0
    %v3584 = vadd.f32 %v3520, 1.0
    %v3585 = vadd.f32 %v3521, 1.0
    %v3586 = vadd.f32 %v3522, 1.0
    %v3587 = vadd.f32 %v3523, 1.0
    %v3588 = vadd.f32 %v3524, 1.0
    %v3589 = vadd.f32 %v3525, 1.0
    %v3590 = vadd.f32 %v3526, 1.0
    %v3591 = vadd.f32 %v3527, 1.0
    %v3592 = vadd.f32 %v3528, 1.0
    %v3593 = vadd.f32 %v3529, 1.0
    %v3594 = vadd.f32 %v3530, 1.0
    %v3595 = vadd.f32 %v3531, 1.0
    %v3596 = vadd.f32 %v3532, 1.0
    %v3597 = vadd.f32 %v3533, 1.0
    %v3598 = vadd.f32 %v3534, 1.0
    %v3599 = vadd.f32 %v3535, 1.0
    %v3600 = vadd.f32 %v3536, 1.0
    %v3601 = vadd.f32 %v3537, 1.0
    %v3602 = vadd.f32 %v3538, 1.0
    %v3603 = vadd.f32 %v3539, 1.0
    %v3604 = vadd.f32 %v3540, 1.0
    %v3605 = vadd.f32 %v3541, 1.0
    %v3606 = vadd.f32 %v3542, 1.0
    %v3607 = vadd.f32 %v3543, 1.0
    %v3608 = vadd.f32 %v3544, 1.0
    %v3609 = vadd.f32 %v3545, 1.0
    %v3610 = vadd.f32 %v3546, 1.0
    %v3611 = vadd.f32 %v3547, 1.0
    %v3612 = vadd.f32 %v3548, 1.0
    %v3613 = vadd.f32 %v3549, 1.0
    %v3614 = vadd.f32 %v3550, 1.0
    %v3615 = vadd.f32 %v3551, 1.0
    %v3616 = vadd.f32 %v3552, 1.0
    %v3617 = vadd.f32 %v3553, 1.0
    %v3618 = vadd.f32 %v3554, 1.0
    %v3619 = vadd.f32 %v3555, 1.0
    %v3620 = vadd.f32 %v3556, 1.0
    %v3621 = vadd.f32 %v3557, 1.0
    %v3622 = vadd.f32 %v3558, 1.0
    %v3623 = vadd.f32 %v3559, 1.0
    %v3624 = vadd.f32 %v3560, 1.0
    %v3625 = vmul.f32 %v3113, %v3561
    %v3626 = vmul.f32 %v3114, %v3562
    %v3627 = vmul.f32 %v3115, %v3563
    %v3628 = vmul.f32 %v3116, %v3564
    %v3629 = vmul.f32 %v3117, %v3565
    %v3630 = vmul.f32 %v3118, %v3566
    %v3631 = vmul.f32 %v3119, %v3567
    %v3632 = vmul.f32 %v3120, %v3568
    %v3633 = vmul.f32 %v3121, %v3569
    %v3634 = vmul.f32 %v3122, %v3570
    %v3635 = vmul.f32 %v3123, %v3571
    %v3636 = vmul.f32 %v3124, %v3572
    %v3637 = vmul.f32 %v3125, %v3573
    %v3638 = vmul.f32 %v3126, %v3574
    %v3639 = vmul.f32 %v3127, %v3575
    %v3640 = vmul.f32 %v3128, %v3576
    %v3641 = vmul.f32 %v3129, %v3577
    %v3642 = vmul.f32 %v3130, %v3578
    %v3643 = vmul.f32 %v3131, %v3579
    %v3644 = vmul.f32 %v3132, %v3580
    %v3645 = vmul.f32 %v3133, %v3581
    %v3646 = vmul.f32 %v3134, %v3582
    %v3647 = vmul.f32 %v3135, %v3583
    %v3648 = vmul.f32 %v3136, %v3584
    %v3649 = vmul.f32 %v3137, %v3585
    %v3650 = vmul.f32 %v3138, %v3586
    %v3651 = vmul.f32 %v3139, %v3587
    %v3652 = vmul.f32 %v3140, %v3588
    %v3653 = vmul.f32 %v3141, %v3589
    %v3654 = vmul.f32 %v3142, %v3590
    %v3655 = vmul.f32 %v3143, %v3591
    %v3656 = vmul.f32 %v3144, %v3592
    %v3657 = vmul.f32 %v3145, %v3593
    %v3658 = vmul.f32 %v3146, %v3594
    %v3659 = vmul.f32 %v3147, %v3595
    %v3660 = vmul.f32 %v3148, %v3596
    %v3661 = vmul.f32 %v3149, %v3597
    %v3662 = vmul.f32 %v3150, %v3598
    %v3663 = vmul.f32 %v3151, %v3599
    %v3664 = vmul.f32 %v3152, %v3600
    %v3665 = vmul.f32 %v3153, %v3601
    %v3666 = vmul.f32 %v3154, %v3602
    %v3667 = vmul.f32 %v3155, %v3603
    %v3668 = vmul.f32 %v3156, %v3604
    %v3669 = vmul.f32 %v3157, %v3605
    %v3670 = vmul.f32 %v3158, %v3606
    %v3671 = vmul.f32 %v3159, %v3607
    %v3672 = vmul.f32 %v3160, %v3608
    %v3673 = vmul.f32 %v3161, %v3609
    %v3674 = vmul.f32 %v3162, %v3610
    %v3675 = vmul.f32 %v3163, %v3611
    %v3676 = vmul.f32 %v3164, %v3612
    %v3677 = vmul.f32 %v3165, %v3613
    %v3678 = vmul.f32 %v3166, %v3614
    %v3679 = vmul.f32 %v3167, %v3615
    %v3680 = vmul.f32 %v3168, %v3616
    %v3681 = vmul.f32 %v3169, %v3617
    %v3682 = vmul.f32 %v3170, %v3618
    %v3683 = vmul.f32 %v3171, %v3619
    %v3684 = vmul.f32 %v3172, %v3620
    %v3685 = vmul.f32 %v3173, %v3621
    %v3686 = vmul.f32 %v3174, %v3622
    %v3687 = vmul.f32 %v3175, %v3623
    %v3688 = vmul.f32 %v3176, %v3624
    %v3689 = vadd.f32 %v3625, %v3626
    %v3690 = vadd.f32 %v3689, %v3627
    %v3691 = vadd.f32 %v3690, %v3628
    %v3692 = vadd.f32 %v3691, %v3629
    %v3693 = vadd.f32 %v3692, %v3630
    %v3694 = vadd.f32 %v3693, %v3631
    %v3695 = vadd.f32 %v3694, %v3632
    %v3696 = vadd.f32 %v3695, %v3633
    %v3697 = vadd.f32 %v3696, %v3634
    %v3698 = vadd.f32 %v3697, %v3635
    %v3699 = vadd.f32 %v3698, %v3636
    %v3700 = vadd.f32 %v3699, %v3637
    %v3701 = vadd.f32 %v3700, %v3638
    %v3702 = vadd.f32 %v3701, %v3639
    %v3703 = vadd.f32 %v3702, %v3640
    %v3704 = vadd.f32 %v3703, %v3641
    %v3705 = vadd.f32 %v3704, %v3642
    %v3706 = vadd.f32 %v3705, %v3643
    %v3707 = vadd.f32 %v3706, %v3644
    %v3708 = vadd.f32 %v3707, %v3645
    %v3709 = vadd.f32 %v3708, %v3646
    %v3710 = vadd.f32 %v3709, %v3647
    %v3711 = vadd.f32 %v3710, %v3648
    %v3712 = vadd.f32 %v3711, %v3649
    %v3713 = vadd.f32 %v3712, %v3650
    %v3714 = vadd.f32 %v3713, %v3651
    %v3715 = vadd.f32 %v3714, %v3652
    %v3716 = vadd.f32 %v3715, %v3653
    %v3717 = vadd.f32 %v3716, %v3654
    %v3718 = vadd.f32 %v3717, %v3655
    %v3719 = vadd.f32 %v3718, %v3656
    %v3720 = vadd.f32 %v3719, %v3657
    %v3721 = vadd.f32 %v3720, %v3658
    %v3722 = vadd.f32 %v3721, %v3659
    %v3723 = vadd.f32 %v3722, %v3660
    %v3724 = vadd.f32 %v3723, %v3661
    %v3725 = vadd.f32 %v3724, %v3662
    %v3726 = vadd.f32 %v3725, %v3663
    %v3727 = vadd.f32 %v3726, %v3664
    %v3728 = vadd.f32 %v3727, %v3665
    %v3729 = vadd.f32 %v3728, %v3666
    %v3730 = vadd.f32 %v3729, %v3667
    %v3731 = vadd.f32 %v3730, %v3668
    %v3732 = vadd.f32 %v3731, %v3669
    %v3733 = vadd.f32 %v3732, %v3670
    %v3734 = vadd.f32 %v3733, %v3671
    %v3735 = vadd.f32 %v3734, %v3672
    %v3736 = vadd.f32 %v3735, %v3673
    %v3737 = vadd.f32 %v3736, %v3674
    %v3738 = vadd.f32 %v3737, %v3675
    %v3739 = vadd.f32 %v3738, %v3676
    %v3740 = vadd.f32 %v3739, %v3677
    %v3741 = vadd.f32 %v3740, %v3678
    %v3742 = vadd.f32 %v3741, %v3679
    %v3743 = vadd.f32 %v3742, %v3680
    %v3744 = vadd.f32 %v3743, %v3681
    %v3745 = vadd.f32 %v3744, %v3682
    %v3746 = vadd.f32 %v3745, %v3683
    %v3747 = vadd.f32 %v3746, %v3684
    %v3748 = vadd.f32 %v3747, %v3685
    %v3749 = vadd.f32 %v3748, %v3686
    %v3750 = vadd.f32 %v3749, %v3687
    %v3751 = vadd.f32 %v3750, %v3688
    %v3752 = vrot.slane %v3751, 4
    %v3753 = vadd.f32 %v3751, %v3752
    %v3754 = vrot.slane %v3753, 2
    %v3755 = vadd.f32 %v3753, %v3754
    %v3756 = vrot.slane %v3755, 1
    %v3757 = vadd.f32 %v3755, %v3756
    %v3758 = vmul.f32 %v3625, %v3625
    %v3759 = vmul.f32 %v3626, %v3626
    %v3760 = vmul.f32 %v3627, %v3627
    %v3761 = vmul.f32 %v3628, %v3628
    %v3762 = vmul.f32 %v3629, %v3629
    %v3763 = vmul.f32 %v3630, %v3630
    %v3764 = vmul.f32 %v3631, %v3631
    %v3765 = vmul.f32 %v3632, %v3632
    %v3766 = vmul.f32 %v3633, %v3633
    %v3767 = vmul.f32 %v3634, %v3634
    %v3768 = vmul.f32 %v3635, %v3635
    %v3769 = vmul.f32 %v3636, %v3636
    %v3770 = vmul.f32 %v3637, %v3637
    %v3771 = vmul.f32 %v3638, %v3638
    %v3772 = vmul.f32 %v3639, %v3639
    %v3773 = vmul.f32 %v3640, %v3640
    %v3774 = vmul.f32 %v3641, %v3641
    %v3775 = vmul.f32 %v3642, %v3642
    %v3776 = vmul.f32 %v3643, %v3643
    %v3777 = vmul.f32 %v3644, %v3644
    %v3778 = vmul.f32 %v3645, %v3645
    %v3779 = vmul.f32 %v3646, %v3646
    %v3780 = vmul.f32 %v3647, %v3647
    %v3781 = vmul.f32 %v3648, %v3648
    %v3782 = vmul.f32 %v3649, %v3649
    %v3783 = vmul.f32 %v3650, %v3650
    %v3784 = vmul.f32 %v3651, %v3651
    %v3785 = vmul.f32 %v3652, %v3652
    %v3786 = vmul.f32 %v3653, %v3653
    %v3787 = vmul.f32 %v3654, %v3654
    %v3788 = vmul.f32 %v3655, %v3655
    %v3789 = vmul.f32 %v3656, %v3656
    %v3790 = vmul.f32 %v3657, %v3657
    %v3791 = vmul.f32 %v3658, %v3658
    %v3792 = vmul.f32 %v3659, %v3659
    %v3793 = vmul.f32 %v3660, %v3660
    %v3794 = vmul.f32 %v3661, %v3661
    %v3795 = vmul.f32 %v3662, %v3662
    %v3796 = vmul.f32 %v3663, %v3663
    %v3797 = vmul.f32 %v3664, %v3664
    %v3798 = vmul.f32 %v3665, %v3665
    %v3799 = vmul.f32 %v3666, %v3666
    %v3800 = vmul.f32 %v3667, %v3667
    %v3801 = vmul.f32 %v3668, %v3668
    %v3802 = vmul.f32 %v3669, %v3669
    %v3803 = vmul.f32 %v3670, %v3670
    %v3804 = vmul.f32 %v3671, %v3671
    %v3805 = vmul.f32 %v3672, %v3672
    %v3806 = vmul.f32 %v3673, %v3673
    %v3807 = vmul.f32 %v3674, %v3674
    %v3808 = vmul.f32 %v3675, %v3675
    %v3809 = vmul.f32 %v3676, %v3676
    %v3810 = vmul.f32 %v3677, %v3677
    %v3811 = vmul.f32 %v3678, %v3678
    %v3812 = vmul.f32 %v3679, %v3679
    %v3813 = vmul.f32 %v3680, %v3680
    %v3814 = vmul.f32 %v3681, %v3681
    %v3815 = vmul.f32 %v3682, %v3682
    %v3816 = vmul.f32 %v3683, %v3683
    %v3817 = vmul.f32 %v3684, %v3684
    %v3818 = vmul.f32 %v3685, %v3685
    %v3819 = vmul.f32 %v3686, %v3686
    %v3820 = vmul.f32 %v3687, %v3687
    %v3821 = vmul.f32 %v3688, %v3688
    %v3822 = vadd.f32 %v3758, %v3759
    %v3823 = vadd.f32 %v3822, %v3760
    %v3824 = vadd.f32 %v3823, %v3761
    %v3825 = vadd.f32 %v3824, %v3762
    %v3826 = vadd.f32 %v3825, %v3763
    %v3827 = vadd.f32 %v3826, %v3764
    %v3828 = vadd.f32 %v3827, %v3765
    %v3829 = vadd.f32 %v3828, %v3766
    %v3830 = vadd.f32 %v3829, %v3767
    %v3831 = vadd.f32 %v3830, %v3768
    %v3832 = vadd.f32 %v3831, %v3769
    %v3833 = vadd.f32 %v3832, %v3770
    %v3834 = vadd.f32 %v3833, %v3771
    %v3835 = vadd.f32 %v3834, %v3772
    %v3836 = vadd.f32 %v3835, %v3773
    %v3837 = vadd.f32 %v3836, %v3774
    %v3838 = vadd.f32 %v3837, %v3775
    %v3839 = vadd.f32 %v3838, %v3776
    %v3840 = vadd.f32 %v3839, %v3777
    %v3841 = vadd.f32 %v3840, %v3778
    %v3842 = vadd.f32 %v3841, %v3779
    %v3843 = vadd.f32 %v3842, %v3780
    %v3844 = vadd.f32 %v3843, %v3781
    %v3845 = vadd.f32 %v3844, %v3782
    %v3846 = vadd.f32 %v3845, %v3783
    %v3847 = vadd.f32 %v3846, %v3784
    %v3848 = vadd.f32 %v3847, %v3785
    %v3849 = vadd.f32 %v3848, %v3786
    %v3850 = vadd.f32 %v3849, %v3787
    %v3851 = vadd.f32 %v3850, %v3788
    %v3852 = vadd.f32 %v3851, %v3789
    %v3853 = vadd.f32 %v3852, %v3790
    %v3854 = vadd.f32 %v3853, %v3791
    %v3855 = vadd.f32 %v3854, %v3792
    %v3856 = vadd.f32 %v3855, %v3793
    %v3857 = vadd.f32 %v3856, %v3794
    %v3858 = vadd.f32 %v3857, %v3795
    %v3859 = vadd.f32 %v3858, %v3796
    %v3860 = vadd.f32 %v3859, %v3797
    %v3861 = vadd.f32 %v3860, %v3798
    %v3862 = vadd.f32 %v3861, %v3799
    %v3863 = vadd.f32 %v3862, %v3800
    %v3864 = vadd.f32 %v3863, %v3801
    %v3865 = vadd.f32 %v3864, %v3802
    %v3866 = vadd.f32 %v3865, %v3803
    %v3867 = vadd.f32 %v3866, %v3804
    %v3868 = vadd.f32 %v3867, %v3805
    %v3869 = vadd.f32 %v3868, %v3806
    %v3870 = vadd.f32 %v3869, %v3807
    %v3871 = vadd.f32 %v3870, %v3808
    %v3872 = vadd.f32 %v3871, %v3809
    %v3873 = vadd.f32 %v3872, %v3810
    %v3874 = vadd.f32 %v3873, %v3811
    %v3875 = vadd.f32 %v3874, %v3812
    %v3876 = vadd.f32 %v3875, %v3813
    %v3877 = vadd.f32 %v3876, %v3814
    %v3878 = vadd.f32 %v3877, %v3815
    %v3879 = vadd.f32 %v3878, %v3816
    %v3880 = vadd.f32 %v3879, %v3817
    %v3881 = vadd.f32 %v3880, %v3818
    %v3882 = vadd.f32 %v3881, %v3819
    %v3883 = vadd.f32 %v3882, %v3820
    %v3884 = vadd.f32 %v3883, %v3821
    %v3885 = vrot.slane %v3884, 4
    %v3886 = vadd.f32 %v3884, %v3885
    %v3887 = vrot.slane %v3886, 2
    %v3888 = vadd.f32 %v3886, %v3887
    %v3889 = vrot.slane %v3888, 1
    %v3890 = vadd.f32 %v3888, %v3889
    %v3891 = vmul.f32 %v3757, 0.001953125
    %v3892 = vmul.f32 %v3890, 0.001953125
    %v3893 = vmul.f32 %v3891, %v3891
    %v3894 = vsub.f32 %v3892, %v3893
    %v3895 = vmax.f32 %v3894, 0.0
    %v3896 = vadd.f32 %v3895, 1e-05
    %v3897 = vrsqrt.pop %v3896
    %v3898 = vmul.f32 %v3897, %v542
    %v3899 = vmul.f32 %v3891, %v3898
    %v3900 = vsub.f32 %v543, %v3899
    %v3901 = vlaneseq
    %v3902 = vshrl.u32 %v3901, 7
    %v3903 = vsub.s32 0, %v3902
    %v3904 = vrot.slane %v3898, %v3903
    %v3905 = vmul.f32 %v3625, %v3904
    %v3906 = vmul.f32 %v3626, %v3904
    %v3907 = vmul.f32 %v3627, %v3904
    %v3908 = vmul.f32 %v3628, %v3904
    %v3909 = vmul.f32 %v3629, %v3904
    %v3910 = vmul.f32 %v3630, %v3904
    %v3911 = vmul.f32 %v3631, %v3904
    %v3912 = vmul.f32 %v3632, %v3904
    %v3913 = vmul.f32 %v3633, %v3904
    %v3914 = vmul.f32 %v3634, %v3904
    %v3915 = vmul.f32 %v3635, %v3904
    %v3916 = vmul.f32 %v3636, %v3904
    %v3917 = vmul.f32 %v3637, %v3904
    %v3918 = vmul.f32 %v3638, %v3904
    %v3919 = vmul.f32 %v3639, %v3904
    %v3920 = vmul.f32 %v3640, %v3904
    %v3921 = vmul.f32 %v3641, %v3904
    %v3922 = vmul.f32 %v3642, %v3904
    %v3923 = vmul.f32 %v3643, %v3904
    %v3924 = vmul.f32 %v3644, %v3904
    %v3925 = vmul.f32 %v3645, %v3904
    %v3926 = vmul.f32 %v3646, %v3904
    %v3927 = vmul.f32 %v3647, %v3904
    %v3928 = vmul.f32 %v3648, %v3904
    %v3929 = vmul.f32 %v3649, %v3904
    %v3930 = vmul.f32 %v3650, %v3904
    %v3931 = vmul.f32 %v3651, %v3904
    %v3932 = vmul.f32 %v3652, %v3904
    %v3933 = vmul.f32 %v3653, %v3904
    %v3934 = vmul.f32 %v3654, %v3904
    %v3935 = vmul.f32 %v3655, %v3904
    %v3936 = vmul.f32 %v3656, %v3904
    %v3937 = vmul.f32 %v3657, %v3904
    %v3938 = vmul.f32 %v3658, %v3904
    %v3939 = vmul.f32 %v3659, %v3904
    %v3940 = vmul.f32 %v3660, %v3904
    %v3941 = vmul.f32 %v3661, %v3904
    %v3942 = vmul.f32 %v3662, %v3904
    %v3943 = vmul.f32 %v3663, %v3904
    %v3944 = vmul.f32 %v3664, %v3904
    %v3945 = vmul.f32 %v3665, %v3904
    %v3946 = vmul.f32 %v3666, %v3904
    %v3947 = vmul.f32 %v3667, %v3904
    %v3948 = vmul.f32 %v3668, %v3904
    %v3949 = vmul.f32 %v3669, %v3904
    %v3950 = vmul.f32 %v3670, %v3904
    %v3951 = vmul.f32 %v3671, %v3904
    %v3952 = vmul.f32 %v3672, %v3904
    %v3953 = vmul.f32 %v3673, %v3904
    %v3954 = vmul.f32 %v3674, %v3904
    %v3955 = vmul.f32 %v3675, %v3904
    %v3956 = vmul.f32 %v3676, %v3904
    %v3957 = vmul.f32 %v3677, %v3904
    %v3958 = vmul.f32 %v3678, %v3904
    %v3959 = vmul.f32 %v3679, %v3904
    %v3960 = vmul.f32 %v3680, %v3904
    %v3961 = vmul.f32 %v3681, %v3904
    %v3962 = vmul.f32 %v3682, %v3904
    %v3963 = vmul.f32 %v3683, %v3904
    %v3964 = vmul.f32 %v3684, %v3904
    %v3965 = vmul.f32 %v3685, %v3904
    %v3966 = vmul.f32 %v3686, %v3904
    %v3967 = vmul.f32 %v3687, %v3904
    %v3968 = vmul.f32 %v3688, %v3904
    %v3969 = vlaneseq
    %v3970 = vshrl.u32 %v3969, 7
    %v3971 = vsub.s32 0, %v3970
    %v3972 = vrot.slane %v3900, %v3971
    %v3973 = vadd.f32 %v3905, %v3972
    %v3974 = vadd.f32 %v3906, %v3972
    %v3975 = vadd.f32 %v3907, %v3972
    %v3976 = vadd.f32 %v3908, %v3972
    %v3977 = vadd.f32 %v3909, %v3972
    %v3978 = vadd.f32 %v3910, %v3972
    %v3979 = vadd.f32 %v3911, %v3972
    %v3980 = vadd.f32 %v3912, %v3972
    %v3981 = vadd.f32 %v3913, %v3972
    %v3982 = vadd.f32 %v3914, %v3972
    %v3983 = vadd.f32 %v3915, %v3972
    %v3984 = vadd.f32 %v3916, %v3972
    %v3985 = vadd.f32 %v3917, %v3972
    %v3986 = vadd.f32 %v3918, %v3972
    %v3987 = vadd.f32 %v3919, %v3972
    %v3988 = vadd.f32 %v3920, %v3972
    %v3989 = vadd.f32 %v3921, %v3972
    %v3990 = vadd.f32 %v3922, %v3972
    %v3991 = vadd.f32 %v3923, %v3972
    %v3992 = vadd.f32 %v3924, %v3972
    %v3993 = vadd.f32 %v3925, %v3972
    %v3994 = vadd.f32 %v3926, %v3972
    %v3995 = vadd.f32 %v3927, %v3972
    %v3996 = vadd.f32 %v3928, %v3972
    %v3997 = vadd.f32 %v3929, %v3972
    %v3998 = vadd.f32 %v3930, %v3972
    %v3999 = vadd.f32 %v3931, %v3972
    %v4000 = vadd.f32 %v3932, %v3972
    %v4001 = vadd.f32 %v3933, %v3972
    %v4002 = vadd.f32 %v3934, %v3972
    %v4003 = vadd.f32 %v3935, %v3972
    %v4004 = vadd.f32 %v3936, %v3972
    %v4005 = vadd.f32 %v3937, %v3972
    %v4006 = vadd.f32 %v3938, %v3972
    %v4007 = vadd.f32 %v3939, %v3972
    %v4008 = vadd.f32 %v3940, %v3972
    %v4009 = vadd.f32 %v3941, %v3972
    %v4010 = vadd.f32 %v3942, %v3972
    %v4011 = vadd.f32 %v3943, %v3972
    %v4012 = vadd.f32 %v3944, %v3972
    %v4013 = vadd.f32 %v3945, %v3972
    %v4014 = vadd.f32 %v3946, %v3972
    %v4015 = vadd.f32 %v3947, %v3972
    %v4016 = vadd.f32 %v3948, %v3972
    %v4017 = vadd.f32 %v3949, %v3972
    %v4018 = vadd.f32 %v3950, %v3972
    %v4019 = vadd.f32 %v3951, %v3972
    %v4020 = vadd.f32 %v3952, %v3972
    %v4021 = vadd.f32 %v3953, %v3972
    %v4022 = vadd.f32 %v3954, %v3972
    %v4023 = vadd.f32 %v3955, %v3972
    %v4024 = vadd.f32 %v3956, %v3972
    %v4025 = vadd.f32 %v3957, %v3972
    %v4026 = vadd.f32 %v3958, %v3972
    %v4027 = vadd.f32 %v3959, %v3972
    %v4028 = vadd.f32 %v3960, %v3972
    %v4029 = vadd.f32 %v3961, %v3972
    %v4030 = vadd.f32 %v3962, %v3972
    %v4031 = vadd.f32 %v3963, %v3972
    %v4032 = vadd.f32 %v3964, %v3972
    %v4033 = vadd.f32 %v3965, %v3972
    %v4034 = vadd.f32 %v3966, %v3972
    %v4035 = vadd.f32 %v3967, %v3972
    %v4036 = vadd.f32 %v3968, %v3972
    %v4037 = vadd.f32 %v2660, %v3973
    %v4038 = vadd.f32 %v2661, %v3974
    %v4039 = vadd.f32 %v2662, %v3975
    %v4040 = vadd.f32 %v2663, %v3976
    %v4041 = vadd.f32 %v2664, %v3977
    %v4042 = vadd.f32 %v2665, %v3978
    %v4043 = vadd.f32 %v2666, %v3979
    %v4044 = vadd.f32 %v2667, %v3980
    %v4045 = vadd.f32 %v2668, %v3981
    %v4046 = vadd.f32 %v2669, %v3982
    %v4047 = vadd.f32 %v2670, %v3983
    %v4048 = vadd.f32 %v2671, %v3984
    %v4049 = vadd.f32 %v2672, %v3985
    %v4050 = vadd.f32 %v2673, %v3986
    %v4051 = vadd.f32 %v2674, %v3987
    %v4052 = vadd.f32 %v2675, %v3988
    %v4053 = vadd.f32 %v2676, %v3989
    %v4054 = vadd.f32 %v2677, %v3990
    %v4055 = vadd.f32 %v2678, %v3991
    %v4056 = vadd.f32 %v2679, %v3992
    %v4057 = vadd.f32 %v2680, %v3993
    %v4058 = vadd.f32 %v2681, %v3994
    %v4059 = vadd.f32 %v2682, %v3995
    %v4060 = vadd.f32 %v2683, %v3996
    %v4061 = vadd.f32 %v2684, %v3997
    %v4062 = vadd.f32 %v2685, %v3998
    %v4063 = vadd.f32 %v2686, %v3999
    %v4064 = vadd.f32 %v2687, %v4000
    %v4065 = vadd.f32 %v2688, %v4001
    %v4066 = vadd.f32 %v2689, %v4002
    %v4067 = vadd.f32 %v2690, %v4003
    %v4068 = vadd.f32 %v2691, %v4004
    %v4069 = vadd.f32 %v2692, %v4005
    %v4070 = vadd.f32 %v2693, %v4006
    %v4071 = vadd.f32 %v2694, %v4007
    %v4072 = vadd.f32 %v2695, %v4008
    %v4073 = vadd.f32 %v2696, %v4009
    %v4074 = vadd.f32 %v2697, %v4010
    %v4075 = vadd.f32 %v2698, %v4011
    %v4076 = vadd.f32 %v2699, %v4012
    %v4077 = vadd.f32 %v2700, %v4013
    %v4078 = vadd.f32 %v2701, %v4014
    %v4079 = vadd.f32 %v2702, %v4015
    %v4080 = vadd.f32 %v2703, %v4016
    %v4081 = vadd.f32 %v2704, %v4017
    %v4082 = vadd.f32 %v2705, %v4018
    %v4083 = vadd.f32 %v2706, %v4019
    %v4084 = vadd.f32 %v2707, %v4020
    %v4085 = vadd.f32 %v2708, %v4021
    %v4086 = vadd.f32 %v2709, %v4022
    %v4087 = vadd.f32 %v2710, %v4023
    %v4088 = vadd.f32 %v2711, %v4024
    %v4089 = vadd.f32 %v2712, %v4025
    %v4090 = vadd.f32 %v2713, %v4026
    %v4091 = vadd.f32 %v2714, %v4027
    %v4092 = vadd.f32 %v2715, %v4028
    %v4093 = vadd.f32 %v2716, %v4029
    %v4094 = vadd.f32 %v2717, %v4030
    %v4095 = vadd.f32 %v2718, %v4031
    %v4096 = vadd.f32 %v2719, %v4032
    %v4097 = vadd.f32 %v2720, %v4033
    %v4098 = vadd.f32 %v2721, %v4034
    %v4099 = vadd.f32 %v2722, %v4035
    %v4100 = vadd.f32 %v2723, %v4036
    %4101 = vst [vmem:[#allocation2] sm:$0xff] %v4037
    %4102 = vst [vmem:[#allocation2 + $0x8] sm:$0xff] %v4038
    %4103 = vst [vmem:[#allocation2 + $0x10] sm:$0xff] %v4039
    %4104 = vst [vmem:[#allocation2 + $0x18] sm:$0xff] %v4040
    %4105 = vst [vmem:[#allocation2 + $0x20] sm:$0xff] %v4041
    %4106 = vst [vmem:[#allocation2 + $0x28] sm:$0xff] %v4042
    %4107 = vst [vmem:[#allocation2 + $0x30] sm:$0xff] %v4043
    %4108 = vst [vmem:[#allocation2 + $0x38] sm:$0xff] %v4044
    %4109 = vst [vmem:[#allocation2 + $0x40] sm:$0xff] %v4045
    %4110 = vst [vmem:[#allocation2 + $0x48] sm:$0xff] %v4046
    %4111 = vst [vmem:[#allocation2 + $0x50] sm:$0xff] %v4047
    %4112 = vst [vmem:[#allocation2 + $0x58] sm:$0xff] %v4048
    %4113 = vst [vmem:[#allocation2 + $0x60] sm:$0xff] %v4049
    %4114 = vst [vmem:[#allocation2 + $0x68] sm:$0xff] %v4050
    %4115 = vst [vmem:[#allocation2 + $0x70] sm:$0xff] %v4051
    %4116 = vst [vmem:[#allocation2 + $0x78] sm:$0xff] %v4052
    %4117 = vst [vmem:[#allocation2 + $0x80] sm:$0xff] %v4053
    %4118 = vst [vmem:[#allocation2 + $0x88] sm:$0xff] %v4054
    %4119 = vst [vmem:[#allocation2 + $0x90] sm:$0xff] %v4055
    %4120 = vst [vmem:[#allocation2 + $0x98] sm:$0xff] %v4056
    %4121 = vst [vmem:[#allocation2 + $0xa0] sm:$0xff] %v4057
    %4122 = vst [vmem:[#allocation2 + $0xa8] sm:$0xff] %v4058
    %4123 = vst [vmem:[#allocation2 + $0xb0] sm:$0xff] %v4059
    %4124 = vst [vmem:[#allocation2 + $0xb8] sm:$0xff] %v4060
    %4125 = vst [vmem:[#allocation2 + $0xc0] sm:$0xff] %v4061
    %4126 = vst [vmem:[#allocation2 + $0xc8] sm:$0xff] %v4062
    %4127 = vst [vmem:[#allocation2 + $0xd0] sm:$0xff] %v4063
    %4128 = vst [vmem:[#allocation2 + $0xd8] sm:$0xff] %v4064
    %4129 = vst [vmem:[#allocation2 + $0xe0] sm:$0xff] %v4065
    %4130 = vst [vmem:[#allocation2 + $0xe8] sm:$0xff] %v4066
    %4131 = vst [vmem:[#allocation2 + $0xf0] sm:$0xff] %v4067
    %4132 = vst [vmem:[#allocation2 + $0xf8] sm:$0xff] %v4068
    %4133 = vst [vmem:[#allocation2 + $0x100] sm:$0xff] %v4069
    %4134 = vst [vmem:[#allocation2 + $0x108] sm:$0xff] %v4070
    %4135 = vst [vmem:[#allocation2 + $0x110] sm:$0xff] %v4071
    %4136 = vst [vmem:[#allocation2 + $0x118] sm:$0xff] %v4072
    %4137 = vst [vmem:[#allocation2 + $0x120] sm:$0xff] %v4073
    %4138 = vst [vmem:[#allocation2 + $0x128] sm:$0xff] %v4074
    %4139 = vst [vmem:[#allocation2 + $0x130] sm:$0xff] %v4075
    %4140 = vst [vmem:[#allocation2 + $0x138] sm:$0xff] %v4076
    %4141 = vst [vmem:[#allocation2 + $0x140] sm:$0xff] %v4077
    %4142 = vst [vmem:[#allocation2 + $0x148] sm:$0xff] %v4078
    %4143 = vst [vmem:[#allocation2 + $0x150] sm:$0xff] %v4079
    %4144 = vst [vmem:[#allocation2 + $0x158] sm:$0xff] %v4080
    %4145 = vst [vmem:[#allocation2 + $0x160] sm:$0xff] %v4081
    %4146 = vst [vmem:[#allocation2 + $0x168] sm:$0xff] %v4082
    %4147 = vst [vmem:[#allocation2 + $0x170] sm:$0xff] %v4083
    %4148 = vst [vmem:[#allocation2 + $0x178] sm:$0xff] %v4084
    %4149 = vst [vmem:[#allocation2 + $0x180] sm:$0xff] %v4085
    %4150 = vst [vmem:[#allocation2 + $0x188] sm:$0xff] %v4086
    %4151 = vst [vmem:[#allocation2 + $0x190] sm:$0xff] %v4087
    %4152 = vst [vmem:[#allocation2 + $0x198] sm:$0xff] %v4088
    %4153 = vst [vmem:[#allocation2 + $0x1a0] sm:$0xff] %v4089
    %4154 = vst [vmem:[#allocation2 + $0x1a8] sm:$0xff] %v4090
    %4155 = vst [vmem:[#allocation2 + $0x1b0] sm:$0xff] %v4091
    %4156 = vst [vmem:[#allocation2 + $0x1b8] sm:$0xff] %v4092
    %4157 = vst [vmem:[#allocation2 + $0x1c0] sm:$0xff] %v4093
    %4158 = vst [vmem:[#allocation2 + $0x1c8] sm:$0xff] %v4094
    %4159 = vst [vmem:[#allocation2 + $0x1d0] sm:$0xff] %v4095
    %4160 = vst [vmem:[#allocation2 + $0x1d8] sm:$0xff] %v4096
    %4161 = vst [vmem:[#allocation2 + $0x1e0] sm:$0xff] %v4097
    %4162 = vst [vmem:[#allocation2 + $0x1e8] sm:$0xff] %v4098
    %4163 = vst [vmem:[#allocation2 + $0x1f0] sm:$0xff] %v4099
    %4164 = vst [vmem:[#allocation2 + $0x1f8] sm:$0xff] %v4100
    // Predicated region
    $region14: #{wsconvmixer_block.1} parent=1 // pred_check
      _
    $region15: #{wsconvmixer_block.1} parent=1 // pred_check_branch
      %4166 = sbr.rel (0) target = $region17
    $region16: #{wsconvmixer_block.1} parent=1 // pred_region
      %s4168 = ssub.s32 8192, 8192
      %4169 = vsyncadd [#allocation3], %s4168
      %s4170 = sshll.u32 [#allocation2], 4
      %s4171 = int_to_ptr.vmem [resolvable:$true] %s4170
      %4176 = dma.vmem_to_hbm [thread:$0]  %s4171, 8192, %s3, [#allocation3], 128, 128, 8
    $region17: #{wsconvmixer_block.1} parent=1 // pred_fallthru
      _
    // Predicated region
    $region18: #{wsconvmixer_block.1} parent=1 // pred_check
      _
    $region19: #{wsconvmixer_block.1} parent=1 // pred_check_branch
      %4178 = sbr.rel (0) target = $region21
    $region20: #{wsconvmixer_block.1} parent=1 // pred_region
      %4179 = dma.done [#allocation3], 8192
    $region21: #{wsconvmixer_block.1} parent=1 // pred_fallthru
      _
    %4180 = vsyncpa [#allocation3], 1

</llo_original>
